<compile_context>
chip_gen: v6e
topology: v6e:2x2x1
jax: 0.10.0
libtpu: 0.0.40
codegen_flags: <defaults>
</compile_context>

<pallas_src>
import functools

import jax
import jax.numpy as jnp
from jax import lax
from jax.experimental import pallas as pl
from jax.experimental.pallas import tpu as pltpu


def _gated_conv_res_norm_kernel(
    xpad_ref,   # (1, Hp, Wp, Cin)        padded input (residual read from interior)
    w_ref,      # (Keff, K, Cin, 2*Cout)  non-masked kernel rows only (HWIO)
    b_ref,      # (1, 2*Cout)             conv bias
    gamma_ref,  # (1, Cout)
    beta_ref,   # (1, Cout)
    o_ref,      # (1, H*W, Cout)
    *, H, W, K, Keff, dil, pad, eps):
  Cout = o_ref.shape[-1]
  HW = H * W

  # f32 accumulator initialized with the (hoisted) broadcast conv bias.
  acc = jnp.broadcast_to(b_ref[...], (HW, 2 * Cout)).astype(jnp.float32)

  # Masked conv: only rows di < Keff = K//2+1 survive the mask, and only those
  # rows were shipped to the kernel.  One whole-image MXU matmul per tap,
  # K*(K//2+1) taps total (6 for K=3) instead of H*K*K tiny per-row matmuls.
  for di in range(Keff):
    for dj in range(K):
      win = xpad_ref[0, di * dil:di * dil + H, dj * dil:dj * dil + W, :]
      lhs = win.reshape(HW, win.shape[-1])            # (H*W, Cin), cheap merge
      acc = acc + jnp.dot(lhs, w_ref[di, dj],
                          preferred_element_type=jnp.float32)

  # GatedConv2d: chunk(2, dim=channels) -> (gate, value); value * sigmoid(gate).
  gated = acc[:, Cout:] * jax.nn.sigmoid(acc[:, :Cout])       # sigmoid -> EUP

  # Residual read straight from the interior of the padded input
  # (single HBM copy of the activation, no second input array).
  resid = xpad_ref[0, pad:pad + H, pad:pad + W, :]
  z = jnp.maximum(resid.reshape(HW, resid.shape[-1]).astype(jnp.float32) + gated,
                  0.0)

  # LayerNormalization over channels: unbiased std, eps added to the std.
  mu = jnp.mean(z, axis=-1, keepdims=True)
  var = jnp.sum((z - mu) ** 2, axis=-1, keepdims=True) * (1.0 / (Cout - 1))
  inv = pl.reciprocal(jnp.sqrt(var) + eps, approx=False)      # EUP, not VPU div
  o_ref[0] = ((z - mu) * inv * gamma_ref[...] + beta_ref[...]).astype(o_ref.dtype)


def gated_conv_res_norm(x_nchw, params, *, kernel_size, dilation, groups=1,
                        eps=1e-6, compute_dtype=jnp.float32):
  """Forward pass of GatedConvResNorm. Input/output are NCHW like PyTorch.

  params = (w, b, gamma, beta) with
    w: (K, K, Cin, 2*Cout) HWIO conv weight, "future" rows (K//2+1:) zeroed
       (equivalent to PyTorch OIHW weight permuted (2,3,1,0)),
    b: (2*Cout,) conv bias, gamma/beta: (Cout,) LayerNormalization affine.
  compute_dtype=jnp.bfloat16 runs the conv matmuls with bf16 operands
  (v6e/v7x MXU) while accumulating and normalizing in f32.
  """
  # TODO(synk): grouped conv (groups > 1) not implemented in this kernel.
  assert groups == 1
  w, b, gamma, beta = params
  N, C, Tt, Ts = x_nchw.shape
  K, dil = kernel_size, dilation
  pad = dil * (K - 1) // 2
  Keff = K // 2 + 1                 # masked conv: rows >= K//2+1 are zero
  Cout2 = w.shape[-1]
  Cout = Cout2 // 2
  assert Cout == C                  # residual add needs in_channels == out_channels

  # NCHW -> NHWC, pad once ("same" padding); the kernel reads the residual
  # from the interior of this single padded copy.
  x_nhwc = jnp.transpose(x_nchw, (0, 2, 3, 1)).astype(compute_dtype)
  xpad = jnp.pad(x_nhwc, ((0, 0), (pad, pad), (pad, pad), (0, 0)))
  Hp, Wp = Tt + 2 * pad, Ts + 2 * pad

  w_eff = w[:Keff].astype(compute_dtype)          # drop masked-zero kernel rows
  b_2d = b.reshape(1, Cout2).astype(jnp.float32)
  g_2d = gamma.reshape(1, Cout).astype(jnp.float32)
  bt_2d = beta.reshape(1, Cout).astype(jnp.float32)

  kernel = functools.partial(
      _gated_conv_res_norm_kernel,
      H=Tt, W=Ts, K=K, Keff=Keff, dil=dil, pad=pad, eps=eps)

  # TODO(synk): for very large Tt*Ts (v7x: 64 MiB VMEM, 2 TensorCores at N=1)
  # add a halo'd Tt-tile grid axis; whole-image blocks fit comfortably at NMT
  # sentence lengths.
  out_flat = pl.pallas_call(
      kernel,
      out_shape=jax.ShapeDtypeStruct((N, Tt * Ts, Cout), jnp.float32),
      grid_spec=pltpu.PrefetchScalarGridSpec(
          num_scalar_prefetch=0,
          grid=(N,),
          in_specs=[
              pl.BlockSpec((1, Hp, Wp, C), lambda n: (n, 0, 0, 0)),
              pl.BlockSpec((Keff, K, C, Cout2), lambda n: (0, 0, 0, 0)),
              pl.BlockSpec((1, Cout2), lambda n: (0, 0)),
              pl.BlockSpec((1, Cout), lambda n: (0, 0)),
              pl.BlockSpec((1, Cout), lambda n: (0, 0)),
          ],
          out_specs=pl.BlockSpec((1, Tt * Ts, Cout), lambda n: (n, 0, 0)),
      ),
      compiler_params=pltpu.CompilerParams(
          dimension_semantics=("parallel",),
          vmem_limit_bytes=32 * 1024 * 1024),
  )(xpad, w_eff, b_2d, g_2d, bt_2d)

  out = out_flat.reshape(N, Tt, Ts, Cout)
  return jnp.transpose(out, (0, 3, 1, 2))          # back to NCHW


def _reference(x_nchw, params, kernel_size, dilation, eps=1e-6):
  """Pure-JAX reference of the same forward pass (for correctness check)."""
  w, b, gamma, beta = params
  pad = dilation * (kernel_size - 1) // 2
  x = jnp.transpose(x_nchw, (0, 2, 3, 1)).astype(jnp.float32)   # NHWC
  conv = lax.conv_general_dilated(
      x, w.astype(jnp.float32), window_strides=(1, 1),
      padding=((pad, pad), (pad, pad)),
      rhs_dilation=(dilation, dilation),
      dimension_numbers=("NHWC", "HWIO", "NHWC")) + b
  C = x.shape[-1]
  gate = jax.nn.sigmoid(conv[..., :C])       # chunk(2, dim=channels): 1st half
  val = conv[..., C:]
  z = jnp.maximum(x + val * gate, 0.0)
  mu = jnp.mean(z, axis=-1, keepdims=True)
  var = jnp.sum((z - mu) ** 2, axis=-1, keepdims=True) / (C - 1)
  out = gamma * (z - mu) / (jnp.sqrt(var) + eps) + beta
  return jnp.transpose(out, (0, 3, 1, 2))


if __name__ == "__main__":
  # Small shapes implied by the module's forward: NCHW = (N, D, Tt, Ts).
  N, C, Tt, Ts = 2, 4, 16, 16
  K, dil = 3, 1

  key = jax.random.PRNGKey(0)
  k_x, k_w, k_b, k_g, k_bt = jax.random.split(key, 5)

  x = jax.random.normal(k_x, (N, C, Tt, Ts), jnp.float32)

  # GatedConv2d weight, HWIO (K, K, Cin, 2*Cout); MaskedConv2d zeroes the
  # "future" kernel rows along the target-time axis.
  w = 0.1 * jax.random.normal(k_w, (K, K, C, 2 * C), jnp.float32)
  w = w.at[K // 2 + 1:].set(0.0)
  b = 0.1 * jax.random.normal(k_b, (2 * C,), jnp.float32)
  gamma = 1.0 + 0.1 * jax.random.normal(k_g, (C,), jnp.float32)
  beta = 0.1 * jax.random.normal(k_bt, (C,), jnp.float32)
  params = (w, b, gamma, beta)

  ref = _reference(x, params, K, dil)

  # f32 path (strict check).
  out = gated_conv_res_norm(x, params, kernel_size=K, dilation=dil, groups=1)
  out = jax.block_until_ready(out)
  assert out.shape == (N, C, Tt, Ts)
  max_err = float(jnp.max(jnp.abs(out - ref)))
  assert jnp.allclose(out, ref, rtol=2e-4, atol=2e-4), max_err

  # bf16 MXU path (v6e/v7x): bf16 conv inputs, f32 accumulation + epilogue.
  out_bf16 = gated_conv_res_norm(x, params, kernel_size=K, dilation=dil,
                                 groups=1, compute_dtype=jnp.bfloat16)
  out_bf16 = jax.block_until_ready(out_bf16)
  max_err_bf16 = float(jnp.max(jnp.abs(out_bf16 - ref)))
  assert jnp.allclose(out_bf16, ref, rtol=0.1, atol=0.1), max_err_bf16

  print("KERNEL_OK")
</pallas_src>

<mosaic_0001>
module attributes {stable_mosaic.version = 11 : i64} {
  func.func @_gated_conv_res_norm_kernel(%arg0: i32, %arg1: memref<1x18x18x4xf32, #tpu.memory_space<vmem>>, %arg2: memref<2x3x4x8xf32, #tpu.memory_space<vmem>>, %arg3: memref<1x8xf32, #tpu.memory_space<vmem>>, %arg4: memref<1x4xf32, #tpu.memory_space<vmem>>, %arg5: memref<1x4xf32, #tpu.memory_space<vmem>>, %arg6: memref<1x256x4xf32, #tpu.memory_space<vmem>>) attributes {dimension_semantics = [#tpu.dimension_semantics<parallel>], iteration_bounds = array<i64: 2>, scalar_prefetch = 0 : i64, scratch_operands = 0 : i64, tpu.core_type = #tpu.core_type<tc>, window_params = [{transform_indices = @transform_0, window_bounds = array<i64: 1, 18, 18, 4>}, {pipeline_mode = #tpu.pipeline_mode<synchronous>, transform_indices = @transform_1, window_bounds = array<i64: 2, 3, 4, 8>}, {pipeline_mode = #tpu.pipeline_mode<synchronous>, transform_indices = @transform_2, window_bounds = array<i64: 1, 8>}, {pipeline_mode = #tpu.pipeline_mode<synchronous>, transform_indices = @transform_3, window_bounds = array<i64: 1, 4>}, {pipeline_mode = #tpu.pipeline_mode<synchronous>, transform_indices = @transform_4, window_bounds = array<i64: 1, 4>}, {transform_indices = @transform_5, window_bounds = array<i64: 1, 256, 4>}]} {
    %c0 = arith.constant 0 : index
    %c0_0 = arith.constant 0 : index
    %0 = vector.load %arg3[%c0, %c0_0] : memref<1x8xf32, #tpu.memory_space<vmem>>, vector<1x8xf32>
    %1 = vector.shape_cast %0 : vector<1x8xf32> to vector<1x8xf32>
    %2 = vector.broadcast %1 : vector<1x8xf32> to vector<256x8xf32>
    %c0_1 = arith.constant 0 : index
    %c0_2 = arith.constant 0 : index
    %c0_3 = arith.constant 0 : index
    %c0_4 = arith.constant 0 : index
    %3 = vector.load %arg1[%c0_1, %c0_2, %c0_3, %c0_4] : memref<1x18x18x4xf32, #tpu.memory_space<vmem>>, vector<1x16x16x4xf32>
    %4 = vector.shape_cast %3 : vector<1x16x16x4xf32> to vector<16x16x4xf32>
    %5 = vector.shape_cast %4 : vector<16x16x4xf32> to vector<256x4xf32>
    %c0_5 = arith.constant 0 : index
    %c0_6 = arith.constant 0 : index
    %c0_7 = arith.constant 0 : index
    %c0_8 = arith.constant 0 : index
    %6 = vector.load %arg2[%c0_5, %c0_6, %c0_7, %c0_8] : memref<2x3x4x8xf32, #tpu.memory_space<vmem>>, vector<1x1x4x8xf32>
    %7 = vector.shape_cast %6 : vector<1x1x4x8xf32> to vector<4x8xf32>
    %cst = arith.constant dense<0.000000e+00> : vector<256x8xf32>
    %8 = tpu.matmul %5, %7, %cst {dimension_numbers = #tpu.dot_dimension_numbers<[1], [0], [0], [1], [0, 0, 1, 1], [], []>} : vector<256x4xf32>, vector<4x8xf32>, vector<256x8xf32> -> vector<256x8xf32>
    %9 = arith.addf %2, %8 : vector<256x8xf32>
    %c0_9 = arith.constant 0 : index
    %c0_10 = arith.constant 0 : index
    %c1 = arith.constant 1 : index
    %c0_11 = arith.constant 0 : index
    %10 = vector.load %arg1[%c0_9, %c0_10, %c1, %c0_11] : memref<1x18x18x4xf32, #tpu.memory_space<vmem>>, vector<1x16x16x4xf32>
    %11 = vector.shape_cast %10 : vector<1x16x16x4xf32> to vector<16x16x4xf32>
    %12 = vector.shape_cast %11 : vector<16x16x4xf32> to vector<256x4xf32>
    %c0_12 = arith.constant 0 : index
    %c1_13 = arith.constant 1 : index
    %c0_14 = arith.constant 0 : index
    %c0_15 = arith.constant 0 : index
    %13 = vector.load %arg2[%c0_12, %c1_13, %c0_14, %c0_15] : memref<2x3x4x8xf32, #tpu.memory_space<vmem>>, vector<1x1x4x8xf32>
    %14 = vector.shape_cast %13 : vector<1x1x4x8xf32> to vector<4x8xf32>
    %cst_16 = arith.constant dense<0.000000e+00> : vector<256x8xf32>
    %15 = tpu.matmul %12, %14, %cst_16 {dimension_numbers = #tpu.dot_dimension_numbers<[1], [0], [0], [1], [0, 0, 1, 1], [], []>} : vector<256x4xf32>, vector<4x8xf32>, vector<256x8xf32> -> vector<256x8xf32>
    %16 = arith.addf %9, %15 : vector<256x8xf32>
    %c0_17 = arith.constant 0 : index
    %c0_18 = arith.constant 0 : index
    %c2 = arith.constant 2 : index
    %c0_19 = arith.constant 0 : index
    %17 = vector.load %arg1[%c0_17, %c0_18, %c2, %c0_19] : memref<1x18x18x4xf32, #tpu.memory_space<vmem>>, vector<1x16x16x4xf32>
    %18 = vector.shape_cast %17 : vector<1x16x16x4xf32> to vector<16x16x4xf32>
    %19 = vector.shape_cast %18 : vector<16x16x4xf32> to vector<256x4xf32>
    %c0_20 = arith.constant 0 : index
    %c2_21 = arith.constant 2 : index
    %c0_22 = arith.constant 0 : index
    %c0_23 = arith.constant 0 : index
    %20 = vector.load %arg2[%c0_20, %c2_21, %c0_22, %c0_23] : memref<2x3x4x8xf32, #tpu.memory_space<vmem>>, vector<1x1x4x8xf32>
    %21 = vector.shape_cast %20 : vector<1x1x4x8xf32> to vector<4x8xf32>
    %cst_24 = arith.constant dense<0.000000e+00> : vector<256x8xf32>
    %22 = tpu.matmul %19, %21, %cst_24 {dimension_numbers = #tpu.dot_dimension_numbers<[1], [0], [0], [1], [0, 0, 1, 1], [], []>} : vector<256x4xf32>, vector<4x8xf32>, vector<256x8xf32> -> vector<256x8xf32>
    %23 = arith.addf %16, %22 : vector<256x8xf32>
    %c0_25 = arith.constant 0 : index
    %c1_26 = arith.constant 1 : index
    %c0_27 = arith.constant 0 : index
    %c0_28 = arith.constant 0 : index
    %24 = vector.load %arg1[%c0_25, %c1_26, %c0_27, %c0_28] : memref<1x18x18x4xf32, #tpu.memory_space<vmem>>, vector<1x16x16x4xf32>
    %25 = vector.shape_cast %24 : vector<1x16x16x4xf32> to vector<16x16x4xf32>
    %26 = vector.shape_cast %25 : vector<16x16x4xf32> to vector<256x4xf32>
    %c1_29 = arith.constant 1 : index
    %c0_30 = arith.constant 0 : index
    %c0_31 = arith.constant 0 : index
    %c0_32 = arith.constant 0 : index
    %27 = vector.load %arg2[%c1_29, %c0_30, %c0_31, %c0_32] : memref<2x3x4x8xf32, #tpu.memory_space<vmem>>, vector<1x1x4x8xf32>
    %28 = vector.shape_cast %27 : vector<1x1x4x8xf32> to vector<4x8xf32>
    %cst_33 = arith.constant dense<0.000000e+00> : vector<256x8xf32>
    %29 = tpu.matmul %26, %28, %cst_33 {dimension_numbers = #tpu.dot_dimension_numbers<[1], [0], [0], [1], [0, 0, 1, 1], [], []>} : vector<256x4xf32>, vector<4x8xf32>, vector<256x8xf32> -> vector<256x8xf32>
    %30 = arith.addf %23, %29 : vector<256x8xf32>
    %c0_34 = arith.constant 0 : index
    %c1_35 = arith.constant 1 : index
    %c1_36 = arith.constant 1 : index
    %c0_37 = arith.constant 0 : index
    %31 = vector.load %arg1[%c0_34, %c1_35, %c1_36, %c0_37] : memref<1x18x18x4xf32, #tpu.memory_space<vmem>>, vector<1x16x16x4xf32>
    %32 = vector.shape_cast %31 : vector<1x16x16x4xf32> to vector<16x16x4xf32>
    %33 = vector.shape_cast %32 : vector<16x16x4xf32> to vector<256x4xf32>
    %c1_38 = arith.constant 1 : index
    %c1_39 = arith.constant 1 : index
    %c0_40 = arith.constant 0 : index
    %c0_41 = arith.constant 0 : index
    %34 = vector.load %arg2[%c1_38, %c1_39, %c0_40, %c0_41] : memref<2x3x4x8xf32, #tpu.memory_space<vmem>>, vector<1x1x4x8xf32>
    %35 = vector.shape_cast %34 : vector<1x1x4x8xf32> to vector<4x8xf32>
    %cst_42 = arith.constant dense<0.000000e+00> : vector<256x8xf32>
    %36 = tpu.matmul %33, %35, %cst_42 {dimension_numbers = #tpu.dot_dimension_numbers<[1], [0], [0], [1], [0, 0, 1, 1], [], []>} : vector<256x4xf32>, vector<4x8xf32>, vector<256x8xf32> -> vector<256x8xf32>
    %37 = arith.addf %30, %36 : vector<256x8xf32>
    %c0_43 = arith.constant 0 : index
    %c1_44 = arith.constant 1 : index
    %c2_45 = arith.constant 2 : index
    %c0_46 = arith.constant 0 : index
    %38 = vector.load %arg1[%c0_43, %c1_44, %c2_45, %c0_46] : memref<1x18x18x4xf32, #tpu.memory_space<vmem>>, vector<1x16x16x4xf32>
    %39 = vector.shape_cast %38 : vector<1x16x16x4xf32> to vector<16x16x4xf32>
    %40 = vector.shape_cast %39 : vector<16x16x4xf32> to vector<256x4xf32>
    %c1_47 = arith.constant 1 : index
    %c2_48 = arith.constant 2 : index
    %c0_49 = arith.constant 0 : index
    %c0_50 = arith.constant 0 : index
    %41 = vector.load %arg2[%c1_47, %c2_48, %c0_49, %c0_50] : memref<2x3x4x8xf32, #tpu.memory_space<vmem>>, vector<1x1x4x8xf32>
    %42 = vector.shape_cast %41 : vector<1x1x4x8xf32> to vector<4x8xf32>
    %cst_51 = arith.constant dense<0.000000e+00> : vector<256x8xf32>
    %43 = tpu.matmul %40, %42, %cst_51 {dimension_numbers = #tpu.dot_dimension_numbers<[1], [0], [0], [1], [0, 0, 1, 1], [], []>} : vector<256x4xf32>, vector<4x8xf32>, vector<256x8xf32> -> vector<256x8xf32>
    %44 = arith.addf %37, %43 : vector<256x8xf32>
    %45 = vector.extract_strided_slice %44 {offsets = [0, 4], sizes = [256, 4], strides = [1, 1]} : vector<256x8xf32> to vector<256x4xf32>
    %46 = vector.extract_strided_slice %44 {offsets = [0, 0], sizes = [256, 4], strides = [1, 1]} : vector<256x8xf32> to vector<256x4xf32>
    %47 = arith.negf %46 : vector<256x4xf32>
    %48 = math.exp %47 : vector<256x4xf32>
    %cst_52 = arith.constant 1.000000e+00 : f32
    %49 = vector.broadcast %cst_52 : f32 to vector<256x4xf32>
    %50 = arith.addf %49, %48 : vector<256x4xf32>
    %51 = arith.divf %49, %50 : vector<256x4xf32>
    %52 = arith.mulf %45, %51 : vector<256x4xf32>
    %c0_53 = arith.constant 0 : index
    %c1_54 = arith.constant 1 : index
    %c1_55 = arith.constant 1 : index
    %c0_56 = arith.constant 0 : index
    %53 = vector.load %arg1[%c0_53, %c1_54, %c1_55, %c0_56] : memref<1x18x18x4xf32, #tpu.memory_space<vmem>>, vector<1x16x16x4xf32>
    %54 = vector.shape_cast %53 : vector<1x16x16x4xf32> to vector<16x16x4xf32>
    %55 = vector.shape_cast %54 : vector<16x16x4xf32> to vector<256x4xf32>
    %56 = arith.addf %55, %52 : vector<256x4xf32>
    %cst_57 = arith.constant 0.000000e+00 : f32
    %57 = vector.broadcast %cst_57 : f32 to vector<256x4xf32>
    %58 = arith.maximumf %56, %57 : vector<256x4xf32>
    %cst_58 = arith.constant dense<0.000000e+00> : vector<256xf32>
    %59 = vector.multi_reduction <add>, %58, %cst_58 [1] : vector<256x4xf32> to vector<256xf32>
    %60 = vector.shape_cast %59 : vector<256xf32> to vector<256x1xf32>
    %cst_59 = arith.constant 4.000000e+00 : f32
    %61 = vector.broadcast %cst_59 : f32 to vector<256x1xf32>
    %62 = arith.divf %60, %61 : vector<256x1xf32>
    %63 = vector.broadcast %62 : vector<256x1xf32> to vector<256x4xf32>
    %64 = arith.subf %58, %63 : vector<256x4xf32>
    %65 = arith.mulf %64, %64 : vector<256x4xf32>
    %cst_60 = arith.constant dense<0.000000e+00> : vector<256xf32>
    %66 = vector.multi_reduction <add>, %65, %cst_60 [1] : vector<256x4xf32> to vector<256xf32>
    %67 = vector.shape_cast %66 : vector<256xf32> to vector<256x1xf32>
    %cst_61 = arith.constant 0.333333343 : f32
    %68 = vector.broadcast %cst_61 : f32 to vector<256x1xf32>
    %69 = arith.mulf %67, %68 : vector<256x1xf32>
    %70 = math.sqrt %69 : vector<256x1xf32>
    %cst_62 = arith.constant 9.99999997E-7 : f32
    %71 = vector.broadcast %cst_62 : f32 to vector<256x1xf32>
    %72 = arith.addf %70, %71 : vector<256x1xf32>
    %73 = tpu.reciprocal %72 : vector<256x1xf32> -> vector<256x1xf32>
    %74 = vector.broadcast %62 : vector<256x1xf32> to vector<256x4xf32>
    %75 = arith.subf %58, %74 : vector<256x4xf32>
    %76 = vector.broadcast %73 : vector<256x1xf32> to vector<256x4xf32>
    %77 = arith.mulf %75, %76 : vector<256x4xf32>
    %c0_63 = arith.constant 0 : index
    %c0_64 = arith.constant 0 : index
    %78 = vector.load %arg4[%c0_63, %c0_64] : memref<1x4xf32, #tpu.memory_space<vmem>>, vector<1x4xf32>
    %79 = vector.broadcast %78 : vector<1x4xf32> to vector<256x4xf32>
    %80 = arith.mulf %77, %79 : vector<256x4xf32>
    %c0_65 = arith.constant 0 : index
    %c0_66 = arith.constant 0 : index
    %81 = vector.load %arg5[%c0_65, %c0_66] : memref<1x4xf32, #tpu.memory_space<vmem>>, vector<1x4xf32>
    %82 = vector.broadcast %81 : vector<1x4xf32> to vector<256x4xf32>
    %83 = arith.addf %80, %82 : vector<256x4xf32>
    %c0_67 = arith.constant 0 : index
    %c0_68 = arith.constant 0 : index
    %c0_69 = arith.constant 0 : index
    %84 = vector.load %arg6[%c0_67, %c0_68, %c0_69] : memref<1x256x4xf32, #tpu.memory_space<vmem>>, vector<1x256x4xf32>
    %85 = vector.shape_cast %84 : vector<1x256x4xf32> to vector<256x4xf32>
    %86 = vector.shape_cast %83 : vector<256x4xf32> to vector<1x256x4xf32>
    tpu.vector_store %arg6[%c0_67, %c0_68, %c0_69], %86 {strides = array<i32>} : memref<1x256x4xf32, #tpu.memory_space<vmem>>, vector<1x256x4xf32>,
    return
  }
  func.func @transform_0(%arg0: i32) -> (i32, i32, i32, i32) {
    %c0_i32 = arith.constant 0 : i32
    %c0_i32_0 = arith.constant 0 : i32
    %c0_i32_1 = arith.constant 0 : i32
    %c0_i32_2 = arith.constant 0 : i32
    return %arg0, %c0_i32, %c0_i32_0, %c0_i32_1 : i32, i32, i32, i32
  }
  func.func @transform_1(%arg0: i32) -> (i32, i32, i32, i32) {
    %c0_i32 = arith.constant 0 : i32
    %c0_i32_0 = arith.constant 0 : i32
    %c0_i32_1 = arith.constant 0 : i32
    %c0_i32_2 = arith.constant 0 : i32
    %c0_i32_3 = arith.constant 0 : i32
    return %c0_i32, %c0_i32_0, %c0_i32_1, %c0_i32_2 : i32, i32, i32, i32
  }
  func.func @transform_2(%arg0: i32) -> (i32, i32) {
    %c0_i32 = arith.constant 0 : i32
    %c0_i32_0 = arith.constant 0 : i32
    %c0_i32_1 = arith.constant 0 : i32
    return %c0_i32, %c0_i32_0 : i32, i32
  }
  func.func @transform_3(%arg0: i32) -> (i32, i32) {
    %c0_i32 = arith.constant 0 : i32
    %c0_i32_0 = arith.constant 0 : i32
    %c0_i32_1 = arith.constant 0 : i32
    return %c0_i32, %c0_i32_0 : i32, i32
  }
  func.func @transform_4(%arg0: i32) -> (i32, i32) {
    %c0_i32 = arith.constant 0 : i32
    %c0_i32_0 = arith.constant 0 : i32
    %c0_i32_1 = arith.constant 0 : i32
    return %c0_i32, %c0_i32_0 : i32, i32
  }
  func.func @transform_5(%arg0: i32) -> (i32, i32, i32) {
    %c0_i32 = arith.constant 0 : i32
    %c0_i32_0 = arith.constant 0 : i32
    %c0_i32_1 = arith.constant 0 : i32
    return %arg0, %c0_i32, %c0_i32_0 : i32, i32, i32
  }
}

</mosaic_0001>

<llo_original>
// kernel: tpu_custom_call.1
$region0: #{tpu_custom_call.1}
  #allocation0 [shape = 'u32[]', space=smem, size = 0x4, offset = 0x4, fixed_abs, tag = 'smem constant byte address 0x4 - core index']
  #allocation1 [shape = 'u32[144,128]{1,0:T(1,128)}', space=vmem, size = 0x12000, scoped, tag = 'internal scratch']
  %s0 = inlined_call_operand.vmem [shape: f32[2,18,18,4], index: 0, kind: input, shape index: {}]
  %s1 = inlined_call_operand.vmem [shape: f32[2,3,4,8], index: 1, kind: input, shape index: {}]
  %s2 = inlined_call_operand.vmem [shape: f32[1,8], index: 2, kind: input, shape index: {}]
  %s3 = inlined_call_operand.vmem [shape: f32[1,4], index: 3, kind: input, shape index: {}]
  %s4 = inlined_call_operand.vmem [shape: f32[1,4], index: 4, kind: input, shape index: {}]
  %s5 = inlined_call_operand.vmem [shape: f32[2,256,4], index: 5, kind: output, shape index: {}]
  %s6 = sld [smem:[#allocation0]]
  $region53: #{tpu_custom_call.1} parent=0
    _
  %s8 = ssub.s32 1, %s6
  %s9 = scalar_select 0, %s8, %s6
  loop: start=0, step=1, limit=4
  $region2: #{tpu_custom_call.1} parent=0 // loop_pre_header
    _
  $region3: #{tpu_custom_call.1} parent=0 // loop_header
    %s11 = sphi 0, %s15
    %p12 = scmp.ge.s32.totalorder %s11, 4
    %s21 = sphi 0, %s23
    %s24 = sphi 0, %s21
    %s25 = sphi 0, %s24
    %s41 = sphi 0, %s25
    %s45 = sphi 0, %s45
    %s47 = sphi 0, %s45
    %s48 = sphi 0, %s47
    %s62 = sphi 0, %s48
    %s66 = sphi 0, %s66
    %s68 = sphi 0, %s66
    %s69 = sphi 0, %s68
    %s83 = sphi 0, %s69
    %s87 = sphi 0, %s87
    %s89 = sphi 0, %s87
    %s90 = sphi 0, %s89
    %s104 = sphi 0, %s90
    %s108 = sphi 0, %s108
    %s110 = sphi 0, %s108
    %s111 = sphi 0, %s110
    %s125 = sphi 0, %s111
    %s131 = sphi 0, %s133
    %s134 = sphi 0, %s131
    %s135 = sphi 0, %s134
    %s151 = sphi 0, %s135
  $region4: #{tpu_custom_call.1} parent=0 // loop_header_branch
    %14 = sbr.rel (%p12) target = $region8
  $region5: #{tpu_custom_call.1} parent=0 // loop_body
    %s16 = ssub.s32 %s11, 1
    %s17 = ssub.s32 %s11, 2
    %s18 = sadd.s32 %s11, 1
    %s19 = ssub.s32 %s11, %s18
    %p20 = scmp.eq.s32.totalorder %s19, 0
    %s22 = sadd.s32 %s21, 1
    %s23 = scalar_select %p20, %s21, %s22
    %p26 = pneg %p20
    %p27 = scmp.eq.s32.totalorder %s11, 1
    %p28 = por %p26, %p27
    %p29 = scmp.ne.s32.totalorder %s21, %s24
    %p30 = scmp.eq.s32.totalorder %s11, 0
    %p31 = por %p29, %p30
    %p32 = scmp.ne.s32.totalorder %s21, %s24
    %p33 = scmp.eq.s32.totalorder %s16, 1
    %p34 = por %p32, %p33
    %p35 = scmp.ne.s32.totalorder %s24, %s25
    %p36 = scmp.eq.s32.totalorder %s16, 0
    %p37 = por %p35, %p36
    %p38 = scmp.ne.s32.totalorder %s24, %s25
    %p39 = scmp.eq.s32.totalorder %s17, 1
    %p40 = por %p38, %p39
    %p42 = scmp.ne.s32.totalorder %s25, %s41
    %p43 = scmp.eq.s32.totalorder %s17, 0
    %p44 = por %p42, %p43
    %s46 = sadd.s32 %s45, 1
    %p49 = scmp.eq.s32.totalorder %s11, 1
    %p50 = scmp.ne.s32.totalorder %s45, %s47
    %p51 = scmp.eq.s32.totalorder %s11, 0
    %p52 = por %p50, %p51
    %p53 = scmp.ne.s32.totalorder %s45, %s47
    %p54 = scmp.eq.s32.totalorder %s16, 1
    %p55 = por %p53, %p54
    %p56 = scmp.ne.s32.totalorder %s47, %s48
    %p57 = scmp.eq.s32.totalorder %s16, 0
    %p58 = por %p56, %p57
    %p59 = scmp.ne.s32.totalorder %s47, %s48
    %p60 = scmp.eq.s32.totalorder %s17, 1
    %p61 = por %p59, %p60
    %p63 = scmp.ne.s32.totalorder %s48, %s62
    %p64 = scmp.eq.s32.totalorder %s17, 0
    %p65 = por %p63, %p64
    %s67 = sadd.s32 %s66, 1
    %p70 = scmp.eq.s32.totalorder %s11, 1
    %p71 = scmp.ne.s32.totalorder %s66, %s68
    %p72 = scmp.eq.s32.totalorder %s11, 0
    %p73 = por %p71, %p72
    %p74 = scmp.ne.s32.totalorder %s66, %s68
    %p75 = scmp.eq.s32.totalorder %s16, 1
    %p76 = por %p74, %p75
    %p77 = scmp.ne.s32.totalorder %s68, %s69
    %p78 = scmp.eq.s32.totalorder %s16, 0
    %p79 = por %p77, %p78
    %p80 = scmp.ne.s32.totalorder %s68, %s69
    %p81 = scmp.eq.s32.totalorder %s17, 1
    %p82 = por %p80, %p81
    %p84 = scmp.ne.s32.totalorder %s69, %s83
    %p85 = scmp.eq.s32.totalorder %s17, 0
    %p86 = por %p84, %p85
    %s88 = sadd.s32 %s87, 1
    %p91 = scmp.eq.s32.totalorder %s11, 1
    %p92 = scmp.ne.s32.totalorder %s87, %s89
    %p93 = scmp.eq.s32.totalorder %s11, 0
    %p94 = por %p92, %p93
    %p95 = scmp.ne.s32.totalorder %s87, %s89
    %p96 = scmp.eq.s32.totalorder %s16, 1
    %p97 = por %p95, %p96
    %p98 = scmp.ne.s32.totalorder %s89, %s90
    %p99 = scmp.eq.s32.totalorder %s16, 0
    %p100 = por %p98, %p99
    %p101 = scmp.ne.s32.totalorder %s89, %s90
    %p102 = scmp.eq.s32.totalorder %s17, 1
    %p103 = por %p101, %p102
    %p105 = scmp.ne.s32.totalorder %s90, %s104
    %p106 = scmp.eq.s32.totalorder %s17, 0
    %p107 = por %p105, %p106
    %s109 = sadd.s32 %s108, 1
    %p112 = scmp.eq.s32.totalorder %s11, 1
    %p113 = scmp.ne.s32.totalorder %s108, %s110
    %p114 = scmp.eq.s32.totalorder %s11, 0
    %p115 = por %p113, %p114
    %p116 = scmp.ne.s32.totalorder %s108, %s110
    %p117 = scmp.eq.s32.totalorder %s16, 1
    %p118 = por %p116, %p117
    %p119 = scmp.ne.s32.totalorder %s110, %s111
    %p120 = scmp.eq.s32.totalorder %s16, 0
    %p121 = por %p119, %p120
    %p122 = scmp.ne.s32.totalorder %s110, %s111
    %p123 = scmp.eq.s32.totalorder %s17, 1
    %p124 = por %p122, %p123
    %p126 = scmp.ne.s32.totalorder %s111, %s125
    %p127 = scmp.eq.s32.totalorder %s17, 0
    %p128 = por %p126, %p127
    %s129 = ssub.s32 %s11, %s18
    %p130 = scmp.eq.s32.totalorder %s129, 0
    %s132 = sadd.s32 %s131, 1
    %s133 = scalar_select %p130, %s131, %s132
    %p136 = pneg %p130
    %p137 = scmp.eq.s32.totalorder %s11, 1
    %p138 = por %p136, %p137
    %p139 = scmp.ne.s32.totalorder %s131, %s134
    %p140 = scmp.eq.s32.totalorder %s11, 0
    %p141 = por %p139, %p140
    %p142 = scmp.ne.s32.totalorder %s131, %s134
    %p143 = scmp.eq.s32.totalorder %s16, 1
    %p144 = por %p142, %p143
    %p145 = scmp.ne.s32.totalorder %s134, %s135
    %p146 = scmp.eq.s32.totalorder %s16, 0
    %p147 = por %p145, %p146
    %p148 = scmp.ne.s32.totalorder %s134, %s135
    %p149 = scmp.eq.s32.totalorder %s17, 1
    %p150 = por %p148, %p149
    %p152 = scmp.ne.s32.totalorder %s135, %s151
    %p153 = scmp.eq.s32.totalorder %s17, 0
    %p154 = por %p152, %p153
    %p155 = scmp.le.s32.totalorder 1, %s11
    %p156 = scmp.lt.s32.totalorder %s11, 3
    %p157 = pnand %p155, %p156
    %p158 = pneg %p157
    // Predicated region
    $region9: #{tpu_custom_call.1} parent=5 // pred_check
      _
    $region10: #{tpu_custom_call.1} parent=5 // pred_check_branch
      %160 = sbr.rel (%p157) target = $region12
    $region11: #{tpu_custom_call.1} parent=5 // pred_region
      %s161 = ssub.s32 %s11, 1
      // Predicated region
      $region13: #{tpu_custom_call.1} parent=11 // pred_check
        %p162 = pneg %p58
      $region14: #{tpu_custom_call.1} parent=11 // pred_check_branch
        %164 = sbr.rel (%p162) target = $region16
      $region15: #{tpu_custom_call.1} parent=11 // pred_region
        _
      $region16: #{tpu_custom_call.1} parent=11 // pred_fallthru
        _
      // Predicated region
      $region17: #{tpu_custom_call.1} parent=11 // pred_check
        %p165 = pneg %p79
      $region18: #{tpu_custom_call.1} parent=11 // pred_check_branch
        %167 = sbr.rel (%p165) target = $region20
      $region19: #{tpu_custom_call.1} parent=11 // pred_region
        _
      $region20: #{tpu_custom_call.1} parent=11 // pred_fallthru
        _
      // Predicated region
      $region21: #{tpu_custom_call.1} parent=11 // pred_check
        %p168 = pneg %p100
      $region22: #{tpu_custom_call.1} parent=11 // pred_check_branch
        %170 = sbr.rel (%p168) target = $region24
      $region23: #{tpu_custom_call.1} parent=11 // pred_region
        _
      $region24: #{tpu_custom_call.1} parent=11 // pred_fallthru
        _
      // Predicated region
      $region25: #{tpu_custom_call.1} parent=11 // pred_check
        %p171 = pneg %p121
      $region26: #{tpu_custom_call.1} parent=11 // pred_check_branch
        %173 = sbr.rel (%p171) target = $region28
      $region27: #{tpu_custom_call.1} parent=11 // pred_region
        _
      $region28: #{tpu_custom_call.1} parent=11 // pred_fallthru
        _
    $region12: #{tpu_custom_call.1} parent=5 // pred_fallthru
      _
    %p174 = scmp.lt.s32.totalorder %s11, 2
    // Predicated region
    $region29: #{tpu_custom_call.1} parent=5 // pred_check
      %p175 = pneg %p174
    $region30: #{tpu_custom_call.1} parent=5 // pred_check_branch
      %177 = sbr.rel (%p175) target = $region32
    $region31: #{tpu_custom_call.1} parent=5 // pred_region
      // Predicated region
      $region33: #{tpu_custom_call.1} parent=31 // pred_check
        %p178 = pneg %p31
      $region34: #{tpu_custom_call.1} parent=31 // pred_check_branch
        %180 = sbr.rel (%p178) target = $region36
      $region35: #{tpu_custom_call.1} parent=31 // pred_region
        %p181 = scmp.lt.s32.totalorder %s11, 1
        %s182 = scalar_select %p181, %s11, 1
        %s183 = smul.addr %s182, 54
        %s184 = smul.addr %s183, 8
        %s185 = scalar_lea.vmem %s0, %s184
      $region36: #{tpu_custom_call.1} parent=31 // pred_fallthru
        _
    $region32: #{tpu_custom_call.1} parent=5 // pred_fallthru
      _
    %p186 = scmp.le.s32.totalorder 1, %s11
    %p187 = scmp.lt.s32.totalorder %s11, 3
    %p188 = pnand %p186, %p187
    %p189 = pneg %p188
    // Predicated region
    $region37: #{tpu_custom_call.1} parent=5 // pred_check
      _
    $region38: #{tpu_custom_call.1} parent=5 // pred_check_branch
      %191 = sbr.rel (%p188) target = $region40
    $region39: #{tpu_custom_call.1} parent=5 // pred_region
      %s192 = ssub.s32 %s11, 1
      %p193 = scmp.lt.s32.totalorder %s16, 1
      %s194 = scalar_select %p193, %s16, 1
      %s195 = smul.addr %s194, 54
      %s196 = smul.addr %s195, 8
      %s197 = scalar_lea.vmem %s0, %s196
      %p198 = pneg %p37
      %p199 = pneg %p34
      %p200 = pneg %p58
      %p201 = pneg %p55
      %p202 = pneg %p79
      %p203 = pneg %p76
      %p204 = pneg %p100
      %p205 = pneg %p97
      %p206 = pneg %p121
      %p207 = pneg %p118
      %p208 = pneg %p147
      %p209 = pneg %p144
      %p210 = scmp.lt.s32.totalorder %s16, 1
      %s211 = scalar_select %p210, %s16, 1
      %s212 = smul.addr %s211, 32
      %s213 = smul.addr %s212, 8
      %s214 = scalar_lea.vmem %s5, %s213
      %p215 = scmp.lt.s32.totalorder %s16, 1
      %s216 = scalar_select %p215, %s16, 1
      %s217 = smul.addr %s216, 54
      %s218 = smul.addr %s217, 8
      %s219 = scalar_lea.vmem %s0, %s218
      %p220 = scmp.lt.s32.totalorder %s16, 1
      %s221 = scalar_select %p220, %s16, 1
      %s222 = smul.addr %s221, 32
      %s223 = smul.addr %s222, 8
      %s224 = scalar_lea.vmem %s5, %s223
      %v225 = vld [vmem:[%s2] sm:$0x1]
      %v227 = vlaneseq
      %v228 = vshrl.u32 %v227, 7
      %v229 = vsub.s32 0, %v228
      %v230 = vrot.slane %v225, %v229
      %v232 = vld [vmem:[%s219] sm:$0xff]
      %v233 = vld [vmem:[%s219 + $0x8] sm:$0xff]
      %v234 = vld [vmem:[%s219 + $0x18] sm:$0xff]
      %v235 = vld [vmem:[%s219 + $0x20] sm:$0xff]
      %v236 = vld [vmem:[%s219 + $0x30] sm:$0xff]
      %v237 = vld [vmem:[%s219 + $0x38] sm:$0xff]
      %v238 = vld [vmem:[%s219 + $0x48] sm:$0xff]
      %v239 = vld [vmem:[%s219 + $0x50] sm:$0xff]
      %v240 = vld [vmem:[%s219 + $0x60] sm:$0xff]
      %v241 = vld [vmem:[%s219 + $0x68] sm:$0xff]
      %v242 = vld [vmem:[%s219 + $0x78] sm:$0xff]
      %v243 = vld [vmem:[%s219 + $0x80] sm:$0xff]
      %v244 = vld [vmem:[%s219 + $0x90] sm:$0xff]
      %v245 = vld [vmem:[%s219 + $0x98] sm:$0xff]
      %v246 = vld [vmem:[%s219 + $0xa8] sm:$0xff]
      %v247 = vld [vmem:[%s219 + $0xb0] sm:$0xff]
      %v248 = vld [vmem:[%s219 + $0xc0] sm:$0xff]
      %v249 = vld [vmem:[%s219 + $0xc8] sm:$0xff]
      %v250 = vld [vmem:[%s219 + $0xd8] sm:$0xff]
      %v251 = vld [vmem:[%s219 + $0xe0] sm:$0xff]
      %v252 = vld [vmem:[%s219 + $0xf0] sm:$0xff]
      %v253 = vld [vmem:[%s219 + $0xf8] sm:$0xff]
      %v254 = vld [vmem:[%s219 + $0x108] sm:$0xff]
      %v255 = vld [vmem:[%s219 + $0x110] sm:$0xff]
      %v256 = vld [vmem:[%s219 + $0x120] sm:$0xff]
      %v257 = vld [vmem:[%s219 + $0x128] sm:$0xff]
      %v258 = vld [vmem:[%s219 + $0x138] sm:$0xff]
      %v259 = vld [vmem:[%s219 + $0x140] sm:$0xff]
      %v260 = vld [vmem:[%s219 + $0x150] sm:$0xff]
      %v261 = vld [vmem:[%s219 + $0x158] sm:$0xff]
      %v262 = vld [vmem:[%s219 + $0x168] sm:$0xff]
      %v263 = vld [vmem:[%s219 + $0x170] sm:$0xff]
      %v264 = vld [vmem:[%s1] sm:$0xf]
      %vm265 = vcmask 31744
      %v267 = vsel %vm265, %v232, 0
      %v270 = vsel %vm265, %v233, 0
      %v273 = vsel %vm265, %v234, 0
      %v276 = vsel %vm265, %v235, 0
      %v279 = vsel %vm265, %v236, 0
      %v282 = vsel %vm265, %v237, 0
      %v285 = vsel %vm265, %v238, 0
      %v288 = vsel %vm265, %v239, 0
      %v291 = vsel %vm265, %v240, 0
      %v294 = vsel %vm265, %v241, 0
      %v297 = vsel %vm265, %v242, 0
      %v300 = vsel %vm265, %v243, 0
      %v303 = vsel %vm265, %v244, 0
      %v306 = vsel %vm265, %v245, 0
      %v309 = vsel %vm265, %v246, 0
      %v312 = vsel %vm265, %v247, 0
      %v315 = vsel %vm265, %v248, 0
      %v318 = vsel %vm265, %v249, 0
      %v321 = vsel %vm265, %v250, 0
      %v324 = vsel %vm265, %v251, 0
      %v327 = vsel %vm265, %v252, 0
      %v330 = vsel %vm265, %v253, 0
      %v333 = vsel %vm265, %v254, 0
      %v336 = vsel %vm265, %v255, 0
      %v339 = vsel %vm265, %v256, 0
      %v342 = vsel %vm265, %v257, 0
      %v345 = vsel %vm265, %v258, 0
      %v348 = vsel %vm265, %v259, 0
      %v351 = vsel %vm265, %v260, 0
      %v354 = vsel %vm265, %v261, 0
      %v357 = vsel %vm265, %v262, 0
      %v360 = vsel %vm265, %v263, 0
      %vm362 = vcmask 1043456
      %v364 = vsel %vm362, %v264, 0
      %366 = vmatprep.subr.mxu0 0.0
      %367 = vmatpush1.msra.mxu0 0.0
      %368 = vmatprep.subr.mxu0 0.0
      %369 = vmatpush1.msra.mxu0 0.0
      %370 = vmatprep.subr.mxu0 0.0
      %371 = vmatpush1.msra.mxu0 0.0
      %372 = vmatprep.subr.mxu0 0.0
      %373 = vmatpush1.msra.mxu0 0.0
      %374 = vmatprep.subr.mxu0 0.0
      %375 = vmatpush1.msra.mxu0 0.0
      %376 = vmatprep.subr.mxu0 0.0
      %377 = vmatpush1.msra.mxu0 0.0
      %378 = vmatprep.subr.mxu0 0.0
      %379 = vmatpush1.msra.mxu0 0.0
      %380 = vmatprep.subr.mxu0 0.0
      %381 = vmatpush1.msra.mxu0 0.0
      %382 = vmatprep.subr.mxu0 0.0
      %383 = vmatpush1.msra.mxu0 0.0
      %384 = vmatprep.subr.mxu0 0.0
      %385 = vmatpush1.msra.mxu0 0.0
      %386 = vmatprep.subr.mxu0 0.0
      %387 = vmatpush1.msra.mxu0 0.0
      %388 = vmatprep.subr.mxu0 0.0
      %389 = vmatpush1.msra.mxu0 0.0
      %390 = vmatprep.subr.mxu0 0.0
      %391 = vmatpush1.msra.mxu0 0.0
      %392 = vmatprep.subr.mxu0 0.0
      %393 = vmatpush1.msra.mxu0 0.0
      %394 = vmatprep.subr.mxu0 0.0
      %395 = vmatpush1.msra.mxu0 0.0
      %396 = vmatprep.subr.mxu0 0.0
      %397 = vmatpush1.msra.mxu0 %v364
      %398 = vmatprep.subr.mxu0 0.0
      %399 = vmatpush2.msra.mxu0 0.0
      %400 = vmatprep.subr.mxu0 0.0
      %401 = vmatpush2.msra.mxu0 0.0
      %402 = vmatprep.subr.mxu0 0.0
      %403 = vmatpush2.msra.mxu0 0.0
      %404 = vmatprep.subr.mxu0 0.0
      %405 = vmatpush2.msra.mxu0 0.0
      %406 = vmatprep.subr.mxu0 0.0
      %407 = vmatpush2.msra.mxu0 0.0
      %408 = vmatprep.subr.mxu0 0.0
      %409 = vmatpush2.msra.mxu0 0.0
      %410 = vmatprep.subr.mxu0 0.0
      %411 = vmatpush2.msra.mxu0 0.0
      %412 = vmatprep.subr.mxu0 0.0
      %413 = vmatpush2.msra.mxu0 0.0
      %414 = vmatprep.subr.mxu0 0.0
      %415 = vmatpush2.msra.mxu0 0.0
      %416 = vmatprep.subr.mxu0 0.0
      %417 = vmatpush2.msra.mxu0 0.0
      %418 = vmatprep.subr.mxu0 0.0
      %419 = vmatpush2.msra.mxu0 0.0
      %420 = vmatprep.subr.mxu0 0.0
      %421 = vmatpush2.msra.mxu0 0.0
      %422 = vmatprep.subr.mxu0 0.0
      %423 = vmatpush2.msra.mxu0 0.0
      %424 = vmatprep.subr.mxu0 0.0
      %425 = vmatpush2.msra.mxu0 0.0
      %426 = vmatprep.subr.mxu0 0.0
      %427 = vmatpush2.msra.mxu0 0.0
      %428 = vmatprep.subr.mxu0 0.0
      %429 = vmatpush2.msra.mxu0 0.0
      %430 = vmatprep.mubr.f32.mxu0 0.0
      %431 = vmatmul.mubr.f32.gmra.mxu0 %v267
      %v432 = vpop.f32.mrf.mxu0
      %v433 = vadd.f32 0.0, %v432
      %v434 = vpop.f32.mrf.mxu0
      %435 = vmatprep.mubr.f32.mxu0 0.0
      %436 = vmatmul.mubr.f32.gmra.mxu0 %v270
      %v437 = vpop.f32.mrf.mxu0
      %v438 = vadd.f32 0.0, %v437
      %v439 = vpop.f32.mrf.mxu0
      %440 = vmatprep.mubr.f32.mxu0 0.0
      %441 = vmatmul.mubr.f32.gmra.mxu0 %v273
      %v442 = vpop.f32.mrf.mxu0
      %v443 = vadd.f32 0.0, %v442
      %v444 = vpop.f32.mrf.mxu0
      %445 = vmatprep.mubr.f32.mxu0 0.0
      %446 = vmatmul.mubr.f32.gmra.mxu0 %v276
      %v447 = vpop.f32.mrf.mxu0
      %v448 = vadd.f32 0.0, %v447
      %v449 = vpop.f32.mrf.mxu0
      %450 = vmatprep.mubr.f32.mxu0 0.0
      %451 = vmatmul.mubr.f32.gmra.mxu0 %v279
      %v452 = vpop.f32.mrf.mxu0
      %v453 = vadd.f32 0.0, %v452
      %v454 = vpop.f32.mrf.mxu0
      %455 = vmatprep.mubr.f32.mxu0 0.0
      %456 = vmatmul.mubr.f32.gmra.mxu0 %v282
      %v457 = vpop.f32.mrf.mxu0
      %v458 = vadd.f32 0.0, %v457
      %v459 = vpop.f32.mrf.mxu0
      %460 = vmatprep.mubr.f32.mxu0 0.0
      %461 = vmatmul.mubr.f32.gmra.mxu0 %v285
      %v462 = vpop.f32.mrf.mxu0
      %v463 = vadd.f32 0.0, %v462
      %v464 = vpop.f32.mrf.mxu0
      %465 = vmatprep.mubr.f32.mxu0 0.0
      %466 = vmatmul.mubr.f32.gmra.mxu0 %v288
      %v467 = vpop.f32.mrf.mxu0
      %v468 = vadd.f32 0.0, %v467
      %v469 = vpop.f32.mrf.mxu0
      %470 = vmatprep.mubr.f32.mxu0 0.0
      %471 = vmatmul.mubr.f32.gmra.mxu0 %v291
      %v472 = vpop.f32.mrf.mxu0
      %v473 = vadd.f32 0.0, %v472
      %v474 = vpop.f32.mrf.mxu0
      %475 = vmatprep.mubr.f32.mxu0 0.0
      %476 = vmatmul.mubr.f32.gmra.mxu0 %v294
      %v477 = vpop.f32.mrf.mxu0
      %v478 = vadd.f32 0.0, %v477
      %v479 = vpop.f32.mrf.mxu0
      %480 = vmatprep.mubr.f32.mxu0 0.0
      %481 = vmatmul.mubr.f32.gmra.mxu0 %v297
      %v482 = vpop.f32.mrf.mxu0
      %v483 = vadd.f32 0.0, %v482
      %v484 = vpop.f32.mrf.mxu0
      %485 = vmatprep.mubr.f32.mxu0 0.0
      %486 = vmatmul.mubr.f32.gmra.mxu0 %v300
      %v487 = vpop.f32.mrf.mxu0
      %v488 = vadd.f32 0.0, %v487
      %v489 = vpop.f32.mrf.mxu0
      %490 = vmatprep.mubr.f32.mxu0 0.0
      %491 = vmatmul.mubr.f32.gmra.mxu0 %v303
      %v492 = vpop.f32.mrf.mxu0
      %v493 = vadd.f32 0.0, %v492
      %v494 = vpop.f32.mrf.mxu0
      %495 = vmatprep.mubr.f32.mxu0 0.0
      %496 = vmatmul.mubr.f32.gmra.mxu0 %v306
      %v497 = vpop.f32.mrf.mxu0
      %v498 = vadd.f32 0.0, %v497
      %v499 = vpop.f32.mrf.mxu0
      %500 = vmatprep.mubr.f32.mxu0 0.0
      %501 = vmatmul.mubr.f32.gmra.mxu0 %v309
      %v502 = vpop.f32.mrf.mxu0
      %v503 = vadd.f32 0.0, %v502
      %v504 = vpop.f32.mrf.mxu0
      %505 = vmatprep.mubr.f32.mxu0 0.0
      %506 = vmatmul.mubr.f32.gmra.mxu0 %v312
      %v507 = vpop.f32.mrf.mxu0
      %v508 = vadd.f32 0.0, %v507
      %v509 = vpop.f32.mrf.mxu0
      %510 = vmatprep.mubr.f32.mxu0 0.0
      %511 = vmatmul.mubr.f32.gmra.mxu0 %v315
      %v512 = vpop.f32.mrf.mxu0
      %v513 = vadd.f32 0.0, %v512
      %v514 = vpop.f32.mrf.mxu0
      %515 = vmatprep.mubr.f32.mxu0 0.0
      %516 = vmatmul.mubr.f32.gmra.mxu0 %v318
      %v517 = vpop.f32.mrf.mxu0
      %v518 = vadd.f32 0.0, %v517
      %v519 = vpop.f32.mrf.mxu0
      %520 = vmatprep.mubr.f32.mxu0 0.0
      %521 = vmatmul.mubr.f32.gmra.mxu0 %v321
      %v522 = vpop.f32.mrf.mxu0
      %v523 = vadd.f32 0.0, %v522
      %v524 = vpop.f32.mrf.mxu0
      %525 = vmatprep.mubr.f32.mxu0 0.0
      %526 = vmatmul.mubr.f32.gmra.mxu0 %v324
      %v527 = vpop.f32.mrf.mxu0
      %v528 = vadd.f32 0.0, %v527
      %v529 = vpop.f32.mrf.mxu0
      %530 = vmatprep.mubr.f32.mxu0 0.0
      %531 = vmatmul.mubr.f32.gmra.mxu0 %v327
      %v532 = vpop.f32.mrf.mxu0
      %v533 = vadd.f32 0.0, %v532
      %v534 = vpop.f32.mrf.mxu0
      %535 = vmatprep.mubr.f32.mxu0 0.0
      %536 = vmatmul.mubr.f32.gmra.mxu0 %v330
      %v537 = vpop.f32.mrf.mxu0
      %v538 = vadd.f32 0.0, %v537
      %v539 = vpop.f32.mrf.mxu0
      %540 = vmatprep.mubr.f32.mxu0 0.0
      %541 = vmatmul.mubr.f32.gmra.mxu0 %v333
      %v542 = vpop.f32.mrf.mxu0
      %v543 = vadd.f32 0.0, %v542
      %v544 = vpop.f32.mrf.mxu0
      %545 = vmatprep.mubr.f32.mxu0 0.0
      %546 = vmatmul.mubr.f32.gmra.mxu0 %v336
      %v547 = vpop.f32.mrf.mxu0
      %v548 = vadd.f32 0.0, %v547
      %v549 = vpop.f32.mrf.mxu0
      %550 = vmatprep.mubr.f32.mxu0 0.0
      %551 = vmatmul.mubr.f32.gmra.mxu0 %v339
      %v552 = vpop.f32.mrf.mxu0
      %v553 = vadd.f32 0.0, %v552
      %v554 = vpop.f32.mrf.mxu0
      %555 = vmatprep.mubr.f32.mxu0 0.0
      %556 = vmatmul.mubr.f32.gmra.mxu0 %v342
      %v557 = vpop.f32.mrf.mxu0
      %v558 = vadd.f32 0.0, %v557
      %v559 = vpop.f32.mrf.mxu0
      %560 = vmatprep.mubr.f32.mxu0 0.0
      %561 = vmatmul.mubr.f32.gmra.mxu0 %v345
      %v562 = vpop.f32.mrf.mxu0
      %v563 = vadd.f32 0.0, %v562
      %v564 = vpop.f32.mrf.mxu0
      %565 = vmatprep.mubr.f32.mxu0 0.0
      %566 = vmatmul.mubr.f32.gmra.mxu0 %v348
      %v567 = vpop.f32.mrf.mxu0
      %v568 = vadd.f32 0.0, %v567
      %v569 = vpop.f32.mrf.mxu0
      %570 = vmatprep.mubr.f32.mxu0 0.0
      %571 = vmatmul.mubr.f32.gmra.mxu0 %v351
      %v572 = vpop.f32.mrf.mxu0
      %v573 = vadd.f32 0.0, %v572
      %v574 = vpop.f32.mrf.mxu0
      %575 = vmatprep.mubr.f32.mxu0 0.0
      %576 = vmatmul.mubr.f32.gmra.mxu0 %v354
      %v577 = vpop.f32.mrf.mxu0
      %v578 = vadd.f32 0.0, %v577
      %v579 = vpop.f32.mrf.mxu0
      %580 = vmatprep.mubr.f32.mxu0 0.0
      %581 = vmatmul.mubr.f32.gmra.mxu0 %v357
      %v582 = vpop.f32.mrf.mxu0
      %v583 = vadd.f32 0.0, %v582
      %v584 = vpop.f32.mrf.mxu0
      %585 = vmatprep.mubr.f32.mxu0 0.0
      %586 = vmatmul.mubr.f32.gmra.mxu0 %v360
      %v587 = vpop.f32.mrf.mxu0
      %v588 = vadd.f32 0.0, %v587
      %v589 = vpop.f32.mrf.mxu0
      %590 = vdwg.mxu0
      %v591 = vadd.f32 %v230, %v433
      %v592 = vadd.f32 %v230, %v438
      %v593 = vadd.f32 %v230, %v443
      %v594 = vadd.f32 %v230, %v448
      %v595 = vadd.f32 %v230, %v453
      %v596 = vadd.f32 %v230, %v458
      %v597 = vadd.f32 %v230, %v463
      %v598 = vadd.f32 %v230, %v468
      %v599 = vadd.f32 %v230, %v473
      %v600 = vadd.f32 %v230, %v478
      %v601 = vadd.f32 %v230, %v483
      %v602 = vadd.f32 %v230, %v488
      %v603 = vadd.f32 %v230, %v493
      %v604 = vadd.f32 %v230, %v498
      %v605 = vadd.f32 %v230, %v503
      %v606 = vadd.f32 %v230, %v508
      %v607 = vadd.f32 %v230, %v513
      %v608 = vadd.f32 %v230, %v518
      %v609 = vadd.f32 %v230, %v523
      %v610 = vadd.f32 %v230, %v528
      %v611 = vadd.f32 %v230, %v533
      %v612 = vadd.f32 %v230, %v538
      %v613 = vadd.f32 %v230, %v543
      %v614 = vadd.f32 %v230, %v548
      %v615 = vadd.f32 %v230, %v553
      %v616 = vadd.f32 %v230, %v558
      %v617 = vadd.f32 %v230, %v563
      %v618 = vadd.f32 %v230, %v568
      %v619 = vadd.f32 %v230, %v573
      %v620 = vadd.f32 %v230, %v578
      %v621 = vadd.f32 %v230, %v583
      %v622 = vadd.f32 %v230, %v588
      %v623 = vld [vmem:[%s219 + $0x1] sm:$0xff]
      %v624 = vld [vmem:[%s219 + $0x9] sm:$0xff]
      %v625 = vld [vmem:[%s219 + $0x19] sm:$0xff]
      %v626 = vld [vmem:[%s219 + $0x21] sm:$0xff]
      %v627 = vld [vmem:[%s219 + $0x31] sm:$0xff]
      %v628 = vld [vmem:[%s219 + $0x39] sm:$0xff]
      %v629 = vld [vmem:[%s219 + $0x49] sm:$0xff]
      %v630 = vld [vmem:[%s219 + $0x51] sm:$0xff]
      %v631 = vld [vmem:[%s219 + $0x61] sm:$0xff]
      %v632 = vld [vmem:[%s219 + $0x69] sm:$0xff]
      %v633 = vld [vmem:[%s219 + $0x79] sm:$0xff]
      %v634 = vld [vmem:[%s219 + $0x81] sm:$0xff]
      %v635 = vld [vmem:[%s219 + $0x91] sm:$0xff]
      %v636 = vld [vmem:[%s219 + $0x99] sm:$0xff]
      %v637 = vld [vmem:[%s219 + $0xa9] sm:$0xff]
      %v638 = vld [vmem:[%s219 + $0xb1] sm:$0xff]
      %v639 = vld [vmem:[%s219 + $0xc1] sm:$0xff]
      %v640 = vld [vmem:[%s219 + $0xc9] sm:$0xff]
      %v641 = vld [vmem:[%s219 + $0xd9] sm:$0xff]
      %v642 = vld [vmem:[%s219 + $0xe1] sm:$0xff]
      %v643 = vld [vmem:[%s219 + $0xf1] sm:$0xff]
      %v644 = vld [vmem:[%s219 + $0xf9] sm:$0xff]
      %v645 = vld [vmem:[%s219 + $0x109] sm:$0xff]
      %v646 = vld [vmem:[%s219 + $0x111] sm:$0xff]
      %v647 = vld [vmem:[%s219 + $0x121] sm:$0xff]
      %v648 = vld [vmem:[%s219 + $0x129] sm:$0xff]
      %v649 = vld [vmem:[%s219 + $0x139] sm:$0xff]
      %v650 = vld [vmem:[%s219 + $0x141] sm:$0xff]
      %v651 = vld [vmem:[%s219 + $0x151] sm:$0xff]
      %v652 = vld [vmem:[%s219 + $0x159] sm:$0xff]
      %v653 = vld [vmem:[%s219 + $0x169] sm:$0xff]
      %v654 = vld [vmem:[%s219 + $0x171] sm:$0xff]
      %s655 = scalar_lea.vmem %s1, 4
      %v656 = vld [vmem:[%s655] sm:$0xf]
      %v658 = vsel %vm265, %v623, 0
      %v661 = vsel %vm265, %v624, 0
      %v664 = vsel %vm265, %v625, 0
      %v667 = vsel %vm265, %v626, 0
      %v670 = vsel %vm265, %v627, 0
      %v673 = vsel %vm265, %v628, 0
      %v676 = vsel %vm265, %v629, 0
      %v679 = vsel %vm265, %v630, 0
      %v682 = vsel %vm265, %v631, 0
      %v685 = vsel %vm265, %v632, 0
      %v688 = vsel %vm265, %v633, 0
      %v691 = vsel %vm265, %v634, 0
      %v694 = vsel %vm265, %v635, 0
      %v697 = vsel %vm265, %v636, 0
      %v700 = vsel %vm265, %v637, 0
      %v703 = vsel %vm265, %v638, 0
      %v706 = vsel %vm265, %v639, 0
      %v709 = vsel %vm265, %v640, 0
      %v712 = vsel %vm265, %v641, 0
      %v715 = vsel %vm265, %v642, 0
      %v718 = vsel %vm265, %v643, 0
      %v721 = vsel %vm265, %v644, 0
      %v724 = vsel %vm265, %v645, 0
      %v727 = vsel %vm265, %v646, 0
      %v730 = vsel %vm265, %v647, 0
      %v733 = vsel %vm265, %v648, 0
      %v736 = vsel %vm265, %v649, 0
      %v739 = vsel %vm265, %v650, 0
      %v742 = vsel %vm265, %v651, 0
      %v745 = vsel %vm265, %v652, 0
      %v748 = vsel %vm265, %v653, 0
      %v751 = vsel %vm265, %v654, 0
      %v754 = vsel %vm362, %v656, 0
      %756 = vmatprep.subr.mxu0 0.0
      %757 = vmatpush1.msra.mxu0 0.0
      %758 = vmatprep.subr.mxu0 0.0
      %759 = vmatpush1.msra.mxu0 0.0
      %760 = vmatprep.subr.mxu0 0.0
      %761 = vmatpush1.msra.mxu0 0.0
      %762 = vmatprep.subr.mxu0 0.0
      %763 = vmatpush1.msra.mxu0 0.0
      %764 = vmatprep.subr.mxu0 0.0
      %765 = vmatpush1.msra.mxu0 0.0
      %766 = vmatprep.subr.mxu0 0.0
      %767 = vmatpush1.msra.mxu0 0.0
      %768 = vmatprep.subr.mxu0 0.0
      %769 = vmatpush1.msra.mxu0 0.0
      %770 = vmatprep.subr.mxu0 0.0
      %771 = vmatpush1.msra.mxu0 0.0
      %772 = vmatprep.subr.mxu0 0.0
      %773 = vmatpush1.msra.mxu0 0.0
      %774 = vmatprep.subr.mxu0 0.0
      %775 = vmatpush1.msra.mxu0 0.0
      %776 = vmatprep.subr.mxu0 0.0
      %777 = vmatpush1.msra.mxu0 0.0
      %778 = vmatprep.subr.mxu0 0.0
      %779 = vmatpush1.msra.mxu0 0.0
      %780 = vmatprep.subr.mxu0 0.0
      %781 = vmatpush1.msra.mxu0 0.0
      %782 = vmatprep.subr.mxu0 0.0
      %783 = vmatpush1.msra.mxu0 0.0
      %784 = vmatprep.subr.mxu0 0.0
      %785 = vmatpush1.msra.mxu0 0.0
      %786 = vmatprep.subr.mxu0 0.0
      %787 = vmatpush1.msra.mxu0 %v754
      %788 = vmatprep.subr.mxu0 0.0
      %789 = vmatpush2.msra.mxu0 0.0
      %790 = vmatprep.subr.mxu0 0.0
      %791 = vmatpush2.msra.mxu0 0.0
      %792 = vmatprep.subr.mxu0 0.0
      %793 = vmatpush2.msra.mxu0 0.0
      %794 = vmatprep.subr.mxu0 0.0
      %795 = vmatpush2.msra.mxu0 0.0
      %796 = vmatprep.subr.mxu0 0.0
      %797 = vmatpush2.msra.mxu0 0.0
      %798 = vmatprep.subr.mxu0 0.0
      %799 = vmatpush2.msra.mxu0 0.0
      %800 = vmatprep.subr.mxu0 0.0
      %801 = vmatpush2.msra.mxu0 0.0
      %802 = vmatprep.subr.mxu0 0.0
      %803 = vmatpush2.msra.mxu0 0.0
      %804 = vmatprep.subr.mxu0 0.0
      %805 = vmatpush2.msra.mxu0 0.0
      %806 = vmatprep.subr.mxu0 0.0
      %807 = vmatpush2.msra.mxu0 0.0
      %808 = vmatprep.subr.mxu0 0.0
      %809 = vmatpush2.msra.mxu0 0.0
      %810 = vmatprep.subr.mxu0 0.0
      %811 = vmatpush2.msra.mxu0 0.0
      %812 = vmatprep.subr.mxu0 0.0
      %813 = vmatpush2.msra.mxu0 0.0
      %814 = vmatprep.subr.mxu0 0.0
      %815 = vmatpush2.msra.mxu0 0.0
      %816 = vmatprep.subr.mxu0 0.0
      %817 = vmatpush2.msra.mxu0 0.0
      %818 = vmatprep.subr.mxu0 0.0
      %819 = vmatpush2.msra.mxu0 0.0
      %820 = vmatprep.mubr.f32.mxu0 0.0
      %821 = vmatmul.mubr.f32.gmra.mxu0 %v658
      %v822 = vpop.f32.mrf.mxu0
      %v823 = vadd.f32 0.0, %v822
      %v824 = vpop.f32.mrf.mxu0
      %825 = vmatprep.mubr.f32.mxu0 0.0
      %826 = vmatmul.mubr.f32.gmra.mxu0 %v661
      %v827 = vpop.f32.mrf.mxu0
      %v828 = vadd.f32 0.0, %v827
      %v829 = vpop.f32.mrf.mxu0
      %830 = vmatprep.mubr.f32.mxu0 0.0
      %831 = vmatmul.mubr.f32.gmra.mxu0 %v664
      %v832 = vpop.f32.mrf.mxu0
      %v833 = vadd.f32 0.0, %v832
      %v834 = vpop.f32.mrf.mxu0
      %835 = vmatprep.mubr.f32.mxu0 0.0
      %836 = vmatmul.mubr.f32.gmra.mxu0 %v667
      %v837 = vpop.f32.mrf.mxu0
      %v838 = vadd.f32 0.0, %v837
      %v839 = vpop.f32.mrf.mxu0
      %840 = vmatprep.mubr.f32.mxu0 0.0
      %841 = vmatmul.mubr.f32.gmra.mxu0 %v670
      %v842 = vpop.f32.mrf.mxu0
      %v843 = vadd.f32 0.0, %v842
      %v844 = vpop.f32.mrf.mxu0
      %845 = vmatprep.mubr.f32.mxu0 0.0
      %846 = vmatmul.mubr.f32.gmra.mxu0 %v673
      %v847 = vpop.f32.mrf.mxu0
      %v848 = vadd.f32 0.0, %v847
      %v849 = vpop.f32.mrf.mxu0
      %850 = vmatprep.mubr.f32.mxu0 0.0
      %851 = vmatmul.mubr.f32.gmra.mxu0 %v676
      %v852 = vpop.f32.mrf.mxu0
      %v853 = vadd.f32 0.0, %v852
      %v854 = vpop.f32.mrf.mxu0
      %855 = vmatprep.mubr.f32.mxu0 0.0
      %856 = vmatmul.mubr.f32.gmra.mxu0 %v679
      %v857 = vpop.f32.mrf.mxu0
      %v858 = vadd.f32 0.0, %v857
      %v859 = vpop.f32.mrf.mxu0
      %860 = vmatprep.mubr.f32.mxu0 0.0
      %861 = vmatmul.mubr.f32.gmra.mxu0 %v682
      %v862 = vpop.f32.mrf.mxu0
      %v863 = vadd.f32 0.0, %v862
      %v864 = vpop.f32.mrf.mxu0
      %865 = vmatprep.mubr.f32.mxu0 0.0
      %866 = vmatmul.mubr.f32.gmra.mxu0 %v685
      %v867 = vpop.f32.mrf.mxu0
      %v868 = vadd.f32 0.0, %v867
      %v869 = vpop.f32.mrf.mxu0
      %870 = vmatprep.mubr.f32.mxu0 0.0
      %871 = vmatmul.mubr.f32.gmra.mxu0 %v688
      %v872 = vpop.f32.mrf.mxu0
      %v873 = vadd.f32 0.0, %v872
      %v874 = vpop.f32.mrf.mxu0
      %875 = vmatprep.mubr.f32.mxu0 0.0
      %876 = vmatmul.mubr.f32.gmra.mxu0 %v691
      %v877 = vpop.f32.mrf.mxu0
      %v878 = vadd.f32 0.0, %v877
      %v879 = vpop.f32.mrf.mxu0
      %880 = vmatprep.mubr.f32.mxu0 0.0
      %881 = vmatmul.mubr.f32.gmra.mxu0 %v694
      %v882 = vpop.f32.mrf.mxu0
      %v883 = vadd.f32 0.0, %v882
      %v884 = vpop.f32.mrf.mxu0
      %885 = vmatprep.mubr.f32.mxu0 0.0
      %886 = vmatmul.mubr.f32.gmra.mxu0 %v697
      %v887 = vpop.f32.mrf.mxu0
      %v888 = vadd.f32 0.0, %v887
      %v889 = vpop.f32.mrf.mxu0
      %890 = vmatprep.mubr.f32.mxu0 0.0
      %891 = vmatmul.mubr.f32.gmra.mxu0 %v700
      %v892 = vpop.f32.mrf.mxu0
      %v893 = vadd.f32 0.0, %v892
      %v894 = vpop.f32.mrf.mxu0
      %895 = vmatprep.mubr.f32.mxu0 0.0
      %896 = vmatmul.mubr.f32.gmra.mxu0 %v703
      %v897 = vpop.f32.mrf.mxu0
      %v898 = vadd.f32 0.0, %v897
      %v899 = vpop.f32.mrf.mxu0
      %900 = vmatprep.mubr.f32.mxu0 0.0
      %901 = vmatmul.mubr.f32.gmra.mxu0 %v706
      %v902 = vpop.f32.mrf.mxu0
      %v903 = vadd.f32 0.0, %v902
      %v904 = vpop.f32.mrf.mxu0
      %905 = vmatprep.mubr.f32.mxu0 0.0
      %906 = vmatmul.mubr.f32.gmra.mxu0 %v709
      %v907 = vpop.f32.mrf.mxu0
      %v908 = vadd.f32 0.0, %v907
      %v909 = vpop.f32.mrf.mxu0
      %910 = vmatprep.mubr.f32.mxu0 0.0
      %911 = vmatmul.mubr.f32.gmra.mxu0 %v712
      %v912 = vpop.f32.mrf.mxu0
      %v913 = vadd.f32 0.0, %v912
      %v914 = vpop.f32.mrf.mxu0
      %915 = vmatprep.mubr.f32.mxu0 0.0
      %916 = vmatmul.mubr.f32.gmra.mxu0 %v715
      %v917 = vpop.f32.mrf.mxu0
      %v918 = vadd.f32 0.0, %v917
      %v919 = vpop.f32.mrf.mxu0
      %920 = vmatprep.mubr.f32.mxu0 0.0
      %921 = vmatmul.mubr.f32.gmra.mxu0 %v718
      %v922 = vpop.f32.mrf.mxu0
      %v923 = vadd.f32 0.0, %v922
      %v924 = vpop.f32.mrf.mxu0
      %925 = vmatprep.mubr.f32.mxu0 0.0
      %926 = vmatmul.mubr.f32.gmra.mxu0 %v721
      %v927 = vpop.f32.mrf.mxu0
      %v928 = vadd.f32 0.0, %v927
      %v929 = vpop.f32.mrf.mxu0
      %930 = vmatprep.mubr.f32.mxu0 0.0
      %931 = vmatmul.mubr.f32.gmra.mxu0 %v724
      %v932 = vpop.f32.mrf.mxu0
      %v933 = vadd.f32 0.0, %v932
      %v934 = vpop.f32.mrf.mxu0
      %935 = vmatprep.mubr.f32.mxu0 0.0
      %936 = vmatmul.mubr.f32.gmra.mxu0 %v727
      %v937 = vpop.f32.mrf.mxu0
      %v938 = vadd.f32 0.0, %v937
      %v939 = vpop.f32.mrf.mxu0
      %940 = vmatprep.mubr.f32.mxu0 0.0
      %941 = vmatmul.mubr.f32.gmra.mxu0 %v730
      %v942 = vpop.f32.mrf.mxu0
      %v943 = vadd.f32 0.0, %v942
      %v944 = vpop.f32.mrf.mxu0
      %945 = vmatprep.mubr.f32.mxu0 0.0
      %946 = vmatmul.mubr.f32.gmra.mxu0 %v733
      %v947 = vpop.f32.mrf.mxu0
      %v948 = vadd.f32 0.0, %v947
      %v949 = vpop.f32.mrf.mxu0
      %950 = vmatprep.mubr.f32.mxu0 0.0
      %951 = vmatmul.mubr.f32.gmra.mxu0 %v736
      %v952 = vpop.f32.mrf.mxu0
      %v953 = vadd.f32 0.0, %v952
      %v954 = vpop.f32.mrf.mxu0
      %955 = vmatprep.mubr.f32.mxu0 0.0
      %956 = vmatmul.mubr.f32.gmra.mxu0 %v739
      %v957 = vpop.f32.mrf.mxu0
      %v958 = vadd.f32 0.0, %v957
      %v959 = vpop.f32.mrf.mxu0
      %960 = vmatprep.mubr.f32.mxu0 0.0
      %961 = vmatmul.mubr.f32.gmra.mxu0 %v742
      %v962 = vpop.f32.mrf.mxu0
      %v963 = vadd.f32 0.0, %v962
      %v964 = vpop.f32.mrf.mxu0
      %965 = vmatprep.mubr.f32.mxu0 0.0
      %966 = vmatmul.mubr.f32.gmra.mxu0 %v745
      %v967 = vpop.f32.mrf.mxu0
      %v968 = vadd.f32 0.0, %v967
      %v969 = vpop.f32.mrf.mxu0
      %970 = vmatprep.mubr.f32.mxu0 0.0
      %971 = vmatmul.mubr.f32.gmra.mxu0 %v748
      %v972 = vpop.f32.mrf.mxu0
      %v973 = vadd.f32 0.0, %v972
      %v974 = vpop.f32.mrf.mxu0
      %975 = vmatprep.mubr.f32.mxu0 0.0
      %976 = vmatmul.mubr.f32.gmra.mxu0 %v751
      %v977 = vpop.f32.mrf.mxu0
      %v978 = vadd.f32 0.0, %v977
      %v979 = vpop.f32.mrf.mxu0
      %980 = vdwg.mxu0
      %v981 = vadd.f32 %v591, %v823
      %v982 = vadd.f32 %v592, %v828
      %v983 = vadd.f32 %v593, %v833
      %v984 = vadd.f32 %v594, %v838
      %v985 = vadd.f32 %v595, %v843
      %v986 = vadd.f32 %v596, %v848
      %v987 = vadd.f32 %v597, %v853
      %v988 = vadd.f32 %v598, %v858
      %v989 = vadd.f32 %v599, %v863
      %v990 = vadd.f32 %v600, %v868
      %v991 = vadd.f32 %v601, %v873
      %v992 = vadd.f32 %v602, %v878
      %v993 = vadd.f32 %v603, %v883
      %v994 = vadd.f32 %v604, %v888
      %v995 = vadd.f32 %v605, %v893
      %v996 = vadd.f32 %v606, %v898
      %v997 = vadd.f32 %v607, %v903
      %v998 = vadd.f32 %v608, %v908
      %v999 = vadd.f32 %v609, %v913
      %v1000 = vadd.f32 %v610, %v918
      %v1001 = vadd.f32 %v611, %v923
      %v1002 = vadd.f32 %v612, %v928
      %v1003 = vadd.f32 %v613, %v933
      %v1004 = vadd.f32 %v614, %v938
      %v1005 = vadd.f32 %v615, %v943
      %v1006 = vadd.f32 %v616, %v948
      %v1007 = vadd.f32 %v617, %v953
      %v1008 = vadd.f32 %v618, %v958
      %v1009 = vadd.f32 %v619, %v963
      %v1010 = vadd.f32 %v620, %v968
      %v1011 = vadd.f32 %v621, %v973
      %v1012 = vadd.f32 %v622, %v978
      %v1013 = vld [vmem:[%s219 + $0x2] sm:$0xff]
      %v1014 = vld [vmem:[%s219 + $0xa] sm:$0xff]
      %v1015 = vld [vmem:[%s219 + $0x1a] sm:$0xff]
      %v1016 = vld [vmem:[%s219 + $0x22] sm:$0xff]
      %v1017 = vld [vmem:[%s219 + $0x32] sm:$0xff]
      %v1018 = vld [vmem:[%s219 + $0x3a] sm:$0xff]
      %v1019 = vld [vmem:[%s219 + $0x4a] sm:$0xff]
      %v1020 = vld [vmem:[%s219 + $0x52] sm:$0xff]
      %v1021 = vld [vmem:[%s219 + $0x62] sm:$0xff]
      %v1022 = vld [vmem:[%s219 + $0x6a] sm:$0xff]
      %v1023 = vld [vmem:[%s219 + $0x7a] sm:$0xff]
      %v1024 = vld [vmem:[%s219 + $0x82] sm:$0xff]
      %v1025 = vld [vmem:[%s219 + $0x92] sm:$0xff]
      %v1026 = vld [vmem:[%s219 + $0x9a] sm:$0xff]
      %v1027 = vld [vmem:[%s219 + $0xaa] sm:$0xff]
      %v1028 = vld [vmem:[%s219 + $0xb2] sm:$0xff]
      %v1029 = vld [vmem:[%s219 + $0xc2] sm:$0xff]
      %v1030 = vld [vmem:[%s219 + $0xca] sm:$0xff]
      %v1031 = vld [vmem:[%s219 + $0xda] sm:$0xff]
      %v1032 = vld [vmem:[%s219 + $0xe2] sm:$0xff]
      %v1033 = vld [vmem:[%s219 + $0xf2] sm:$0xff]
      %v1034 = vld [vmem:[%s219 + $0xfa] sm:$0xff]
      %v1035 = vld [vmem:[%s219 + $0x10a] sm:$0xff]
      %v1036 = vld [vmem:[%s219 + $0x112] sm:$0xff]
      %v1037 = vld [vmem:[%s219 + $0x122] sm:$0xff]
      %v1038 = vld [vmem:[%s219 + $0x12a] sm:$0xff]
      %v1039 = vld [vmem:[%s219 + $0x13a] sm:$0xff]
      %v1040 = vld [vmem:[%s219 + $0x142] sm:$0xff]
      %v1041 = vld [vmem:[%s219 + $0x152] sm:$0xff]
      %v1042 = vld [vmem:[%s219 + $0x15a] sm:$0xff]
      %v1043 = vld [vmem:[%s219 + $0x16a] sm:$0xff]
      %v1044 = vld [vmem:[%s219 + $0x172] sm:$0xff]
      %s1045 = scalar_lea.vmem %s1, 8
      %v1046 = vld [vmem:[%s1045] sm:$0xf]
      %v1048 = vsel %vm265, %v1013, 0
      %v1051 = vsel %vm265, %v1014, 0
      %v1054 = vsel %vm265, %v1015, 0
      %v1057 = vsel %vm265, %v1016, 0
      %v1060 = vsel %vm265, %v1017, 0
      %v1063 = vsel %vm265, %v1018, 0
      %v1066 = vsel %vm265, %v1019, 0
      %v1069 = vsel %vm265, %v1020, 0
      %v1072 = vsel %vm265, %v1021, 0
      %v1075 = vsel %vm265, %v1022, 0
      %v1078 = vsel %vm265, %v1023, 0
      %v1081 = vsel %vm265, %v1024, 0
      %v1084 = vsel %vm265, %v1025, 0
      %v1087 = vsel %vm265, %v1026, 0
      %v1090 = vsel %vm265, %v1027, 0
      %v1093 = vsel %vm265, %v1028, 0
      %v1096 = vsel %vm265, %v1029, 0
      %v1099 = vsel %vm265, %v1030, 0
      %v1102 = vsel %vm265, %v1031, 0
      %v1105 = vsel %vm265, %v1032, 0
      %v1108 = vsel %vm265, %v1033, 0
      %v1111 = vsel %vm265, %v1034, 0
      %v1114 = vsel %vm265, %v1035, 0
      %v1117 = vsel %vm265, %v1036, 0
      %v1120 = vsel %vm265, %v1037, 0
      %v1123 = vsel %vm265, %v1038, 0
      %v1126 = vsel %vm265, %v1039, 0
      %v1129 = vsel %vm265, %v1040, 0
      %v1132 = vsel %vm265, %v1041, 0
      %v1135 = vsel %vm265, %v1042, 0
      %v1138 = vsel %vm265, %v1043, 0
      %v1141 = vsel %vm265, %v1044, 0
      %v1144 = vsel %vm362, %v1046, 0
      %1146 = vmatprep.subr.mxu0 0.0
      %1147 = vmatpush1.msra.mxu0 0.0
      %1148 = vmatprep.subr.mxu0 0.0
      %1149 = vmatpush1.msra.mxu0 0.0
      %1150 = vmatprep.subr.mxu0 0.0
      %1151 = vmatpush1.msra.mxu0 0.0
      %1152 = vmatprep.subr.mxu0 0.0
      %1153 = vmatpush1.msra.mxu0 0.0
      %1154 = vmatprep.subr.mxu0 0.0
      %1155 = vmatpush1.msra.mxu0 0.0
      %1156 = vmatprep.subr.mxu0 0.0
      %1157 = vmatpush1.msra.mxu0 0.0
      %1158 = vmatprep.subr.mxu0 0.0
      %1159 = vmatpush1.msra.mxu0 0.0
      %1160 = vmatprep.subr.mxu0 0.0
      %1161 = vmatpush1.msra.mxu0 0.0
      %1162 = vmatprep.subr.mxu0 0.0
      %1163 = vmatpush1.msra.mxu0 0.0
      %1164 = vmatprep.subr.mxu0 0.0
      %1165 = vmatpush1.msra.mxu0 0.0
      %1166 = vmatprep.subr.mxu0 0.0
      %1167 = vmatpush1.msra.mxu0 0.0
      %1168 = vmatprep.subr.mxu0 0.0
      %1169 = vmatpush1.msra.mxu0 0.0
      %1170 = vmatprep.subr.mxu0 0.0
      %1171 = vmatpush1.msra.mxu0 0.0
      %1172 = vmatprep.subr.mxu0 0.0
      %1173 = vmatpush1.msra.mxu0 0.0
      %1174 = vmatprep.subr.mxu0 0.0
      %1175 = vmatpush1.msra.mxu0 0.0
      %1176 = vmatprep.subr.mxu0 0.0
      %1177 = vmatpush1.msra.mxu0 %v1144
      %1178 = vmatprep.subr.mxu0 0.0
      %1179 = vmatpush2.msra.mxu0 0.0
      %1180 = vmatprep.subr.mxu0 0.0
      %1181 = vmatpush2.msra.mxu0 0.0
      %1182 = vmatprep.subr.mxu0 0.0
      %1183 = vmatpush2.msra.mxu0 0.0
      %1184 = vmatprep.subr.mxu0 0.0
      %1185 = vmatpush2.msra.mxu0 0.0
      %1186 = vmatprep.subr.mxu0 0.0
      %1187 = vmatpush2.msra.mxu0 0.0
      %1188 = vmatprep.subr.mxu0 0.0
      %1189 = vmatpush2.msra.mxu0 0.0
      %1190 = vmatprep.subr.mxu0 0.0
      %1191 = vmatpush2.msra.mxu0 0.0
      %1192 = vmatprep.subr.mxu0 0.0
      %1193 = vmatpush2.msra.mxu0 0.0
      %1194 = vmatprep.subr.mxu0 0.0
      %1195 = vmatpush2.msra.mxu0 0.0
      %1196 = vmatprep.subr.mxu0 0.0
      %1197 = vmatpush2.msra.mxu0 0.0
      %1198 = vmatprep.subr.mxu0 0.0
      %1199 = vmatpush2.msra.mxu0 0.0
      %1200 = vmatprep.subr.mxu0 0.0
      %1201 = vmatpush2.msra.mxu0 0.0
      %1202 = vmatprep.subr.mxu0 0.0
      %1203 = vmatpush2.msra.mxu0 0.0
      %1204 = vmatprep.subr.mxu0 0.0
      %1205 = vmatpush2.msra.mxu0 0.0
      %1206 = vmatprep.subr.mxu0 0.0
      %1207 = vmatpush2.msra.mxu0 0.0
      %1208 = vmatprep.subr.mxu0 0.0
      %1209 = vmatpush2.msra.mxu0 0.0
      %1210 = vmatprep.mubr.f32.mxu0 0.0
      %1211 = vmatmul.mubr.f32.gmra.mxu0 %v1048
      %v1212 = vpop.f32.mrf.mxu0
      %v1213 = vadd.f32 0.0, %v1212
      %v1214 = vpop.f32.mrf.mxu0
      %1215 = vmatprep.mubr.f32.mxu0 0.0
      %1216 = vmatmul.mubr.f32.gmra.mxu0 %v1051
      %v1217 = vpop.f32.mrf.mxu0
      %v1218 = vadd.f32 0.0, %v1217
      %v1219 = vpop.f32.mrf.mxu0
      %1220 = vmatprep.mubr.f32.mxu0 0.0
      %1221 = vmatmul.mubr.f32.gmra.mxu0 %v1054
      %v1222 = vpop.f32.mrf.mxu0
      %v1223 = vadd.f32 0.0, %v1222
      %v1224 = vpop.f32.mrf.mxu0
      %1225 = vmatprep.mubr.f32.mxu0 0.0
      %1226 = vmatmul.mubr.f32.gmra.mxu0 %v1057
      %v1227 = vpop.f32.mrf.mxu0
      %v1228 = vadd.f32 0.0, %v1227
      %v1229 = vpop.f32.mrf.mxu0
      %1230 = vmatprep.mubr.f32.mxu0 0.0
      %1231 = vmatmul.mubr.f32.gmra.mxu0 %v1060
      %v1232 = vpop.f32.mrf.mxu0
      %v1233 = vadd.f32 0.0, %v1232
      %v1234 = vpop.f32.mrf.mxu0
      %1235 = vmatprep.mubr.f32.mxu0 0.0
      %1236 = vmatmul.mubr.f32.gmra.mxu0 %v1063
      %v1237 = vpop.f32.mrf.mxu0
      %v1238 = vadd.f32 0.0, %v1237
      %v1239 = vpop.f32.mrf.mxu0
      %1240 = vmatprep.mubr.f32.mxu0 0.0
      %1241 = vmatmul.mubr.f32.gmra.mxu0 %v1066
      %v1242 = vpop.f32.mrf.mxu0
      %v1243 = vadd.f32 0.0, %v1242
      %v1244 = vpop.f32.mrf.mxu0
      %1245 = vmatprep.mubr.f32.mxu0 0.0
      %1246 = vmatmul.mubr.f32.gmra.mxu0 %v1069
      %v1247 = vpop.f32.mrf.mxu0
      %v1248 = vadd.f32 0.0, %v1247
      %v1249 = vpop.f32.mrf.mxu0
      %1250 = vmatprep.mubr.f32.mxu0 0.0
      %1251 = vmatmul.mubr.f32.gmra.mxu0 %v1072
      %v1252 = vpop.f32.mrf.mxu0
      %v1253 = vadd.f32 0.0, %v1252
      %v1254 = vpop.f32.mrf.mxu0
      %1255 = vmatprep.mubr.f32.mxu0 0.0
      %1256 = vmatmul.mubr.f32.gmra.mxu0 %v1075
      %v1257 = vpop.f32.mrf.mxu0
      %v1258 = vadd.f32 0.0, %v1257
      %v1259 = vpop.f32.mrf.mxu0
      %1260 = vmatprep.mubr.f32.mxu0 0.0
      %1261 = vmatmul.mubr.f32.gmra.mxu0 %v1078
      %v1262 = vpop.f32.mrf.mxu0
      %v1263 = vadd.f32 0.0, %v1262
      %v1264 = vpop.f32.mrf.mxu0
      %1265 = vmatprep.mubr.f32.mxu0 0.0
      %1266 = vmatmul.mubr.f32.gmra.mxu0 %v1081
      %v1267 = vpop.f32.mrf.mxu0
      %v1268 = vadd.f32 0.0, %v1267
      %v1269 = vpop.f32.mrf.mxu0
      %1270 = vmatprep.mubr.f32.mxu0 0.0
      %1271 = vmatmul.mubr.f32.gmra.mxu0 %v1084
      %v1272 = vpop.f32.mrf.mxu0
      %v1273 = vadd.f32 0.0, %v1272
      %v1274 = vpop.f32.mrf.mxu0
      %1275 = vmatprep.mubr.f32.mxu0 0.0
      %1276 = vmatmul.mubr.f32.gmra.mxu0 %v1087
      %v1277 = vpop.f32.mrf.mxu0
      %v1278 = vadd.f32 0.0, %v1277
      %v1279 = vpop.f32.mrf.mxu0
      %1280 = vmatprep.mubr.f32.mxu0 0.0
      %1281 = vmatmul.mubr.f32.gmra.mxu0 %v1090
      %v1282 = vpop.f32.mrf.mxu0
      %v1283 = vadd.f32 0.0, %v1282
      %v1284 = vpop.f32.mrf.mxu0
      %1285 = vmatprep.mubr.f32.mxu0 0.0
      %1286 = vmatmul.mubr.f32.gmra.mxu0 %v1093
      %v1287 = vpop.f32.mrf.mxu0
      %v1288 = vadd.f32 0.0, %v1287
      %v1289 = vpop.f32.mrf.mxu0
      %1290 = vmatprep.mubr.f32.mxu0 0.0
      %1291 = vmatmul.mubr.f32.gmra.mxu0 %v1096
      %v1292 = vpop.f32.mrf.mxu0
      %v1293 = vadd.f32 0.0, %v1292
      %v1294 = vpop.f32.mrf.mxu0
      %1295 = vmatprep.mubr.f32.mxu0 0.0
      %1296 = vmatmul.mubr.f32.gmra.mxu0 %v1099
      %v1297 = vpop.f32.mrf.mxu0
      %v1298 = vadd.f32 0.0, %v1297
      %v1299 = vpop.f32.mrf.mxu0
      %1300 = vmatprep.mubr.f32.mxu0 0.0
      %1301 = vmatmul.mubr.f32.gmra.mxu0 %v1102
      %v1302 = vpop.f32.mrf.mxu0
      %v1303 = vadd.f32 0.0, %v1302
      %v1304 = vpop.f32.mrf.mxu0
      %1305 = vmatprep.mubr.f32.mxu0 0.0
      %1306 = vmatmul.mubr.f32.gmra.mxu0 %v1105
      %v1307 = vpop.f32.mrf.mxu0
      %v1308 = vadd.f32 0.0, %v1307
      %v1309 = vpop.f32.mrf.mxu0
      %1310 = vmatprep.mubr.f32.mxu0 0.0
      %1311 = vmatmul.mubr.f32.gmra.mxu0 %v1108
      %v1312 = vpop.f32.mrf.mxu0
      %v1313 = vadd.f32 0.0, %v1312
      %v1314 = vpop.f32.mrf.mxu0
      %1315 = vmatprep.mubr.f32.mxu0 0.0
      %1316 = vmatmul.mubr.f32.gmra.mxu0 %v1111
      %v1317 = vpop.f32.mrf.mxu0
      %v1318 = vadd.f32 0.0, %v1317
      %v1319 = vpop.f32.mrf.mxu0
      %1320 = vmatprep.mubr.f32.mxu0 0.0
      %1321 = vmatmul.mubr.f32.gmra.mxu0 %v1114
      %v1322 = vpop.f32.mrf.mxu0
      %v1323 = vadd.f32 0.0, %v1322
      %v1324 = vpop.f32.mrf.mxu0
      %1325 = vmatprep.mubr.f32.mxu0 0.0
      %1326 = vmatmul.mubr.f32.gmra.mxu0 %v1117
      %v1327 = vpop.f32.mrf.mxu0
      %v1328 = vadd.f32 0.0, %v1327
      %v1329 = vpop.f32.mrf.mxu0
      %1330 = vmatprep.mubr.f32.mxu0 0.0
      %1331 = vmatmul.mubr.f32.gmra.mxu0 %v1120
      %v1332 = vpop.f32.mrf.mxu0
      %v1333 = vadd.f32 0.0, %v1332
      %v1334 = vpop.f32.mrf.mxu0
      %1335 = vmatprep.mubr.f32.mxu0 0.0
      %1336 = vmatmul.mubr.f32.gmra.mxu0 %v1123
      %v1337 = vpop.f32.mrf.mxu0
      %v1338 = vadd.f32 0.0, %v1337
      %v1339 = vpop.f32.mrf.mxu0
      %1340 = vmatprep.mubr.f32.mxu0 0.0
      %1341 = vmatmul.mubr.f32.gmra.mxu0 %v1126
      %v1342 = vpop.f32.mrf.mxu0
      %v1343 = vadd.f32 0.0, %v1342
      %v1344 = vpop.f32.mrf.mxu0
      %1345 = vmatprep.mubr.f32.mxu0 0.0
      %1346 = vmatmul.mubr.f32.gmra.mxu0 %v1129
      %v1347 = vpop.f32.mrf.mxu0
      %v1348 = vadd.f32 0.0, %v1347
      %v1349 = vpop.f32.mrf.mxu0
      %1350 = vmatprep.mubr.f32.mxu0 0.0
      %1351 = vmatmul.mubr.f32.gmra.mxu0 %v1132
      %v1352 = vpop.f32.mrf.mxu0
      %v1353 = vadd.f32 0.0, %v1352
      %v1354 = vpop.f32.mrf.mxu0
      %1355 = vmatprep.mubr.f32.mxu0 0.0
      %1356 = vmatmul.mubr.f32.gmra.mxu0 %v1135
      %v1357 = vpop.f32.mrf.mxu0
      %v1358 = vadd.f32 0.0, %v1357
      %v1359 = vpop.f32.mrf.mxu0
      %1360 = vmatprep.mubr.f32.mxu0 0.0
      %1361 = vmatmul.mubr.f32.gmra.mxu0 %v1138
      %v1362 = vpop.f32.mrf.mxu0
      %v1363 = vadd.f32 0.0, %v1362
      %v1364 = vpop.f32.mrf.mxu0
      %1365 = vmatprep.mubr.f32.mxu0 0.0
      %1366 = vmatmul.mubr.f32.gmra.mxu0 %v1141
      %v1367 = vpop.f32.mrf.mxu0
      %v1368 = vadd.f32 0.0, %v1367
      %v1369 = vpop.f32.mrf.mxu0
      %1370 = vdwg.mxu0
      %v1371 = vadd.f32 %v981, %v1213
      %v1372 = vadd.f32 %v982, %v1218
      %v1373 = vadd.f32 %v983, %v1223
      %v1374 = vadd.f32 %v984, %v1228
      %v1375 = vadd.f32 %v985, %v1233
      %v1376 = vadd.f32 %v986, %v1238
      %v1377 = vadd.f32 %v987, %v1243
      %v1378 = vadd.f32 %v988, %v1248
      %v1379 = vadd.f32 %v989, %v1253
      %v1380 = vadd.f32 %v990, %v1258
      %v1381 = vadd.f32 %v991, %v1263
      %v1382 = vadd.f32 %v992, %v1268
      %v1383 = vadd.f32 %v993, %v1273
      %v1384 = vadd.f32 %v994, %v1278
      %v1385 = vadd.f32 %v995, %v1283
      %v1386 = vadd.f32 %v996, %v1288
      %v1387 = vadd.f32 %v997, %v1293
      %v1388 = vadd.f32 %v998, %v1298
      %v1389 = vadd.f32 %v999, %v1303
      %v1390 = vadd.f32 %v1000, %v1308
      %v1391 = vadd.f32 %v1001, %v1313
      %v1392 = vadd.f32 %v1002, %v1318
      %v1393 = vadd.f32 %v1003, %v1323
      %v1394 = vadd.f32 %v1004, %v1328
      %v1395 = vadd.f32 %v1005, %v1333
      %v1396 = vadd.f32 %v1006, %v1338
      %v1397 = vadd.f32 %v1007, %v1343
      %v1398 = vadd.f32 %v1008, %v1348
      %v1399 = vadd.f32 %v1009, %v1353
      %v1400 = vadd.f32 %v1010, %v1358
      %v1401 = vadd.f32 %v1011, %v1363
      %v1402 = vadd.f32 %v1012, %v1368
      %s1403 = scalar_lea.vmem %s219, 24
      %v1404 = vld [vmem:[%s1403] sm:$0xff]
      %v1405 = vld [vmem:[%s1403 + $0x8] sm:$0xff]
      %v1406 = vld [vmem:[%s1403 + $0x18] sm:$0xff]
      %v1407 = vld [vmem:[%s1403 + $0x20] sm:$0xff]
      %v1408 = vld [vmem:[%s1403 + $0x30] sm:$0xff]
      %v1409 = vld [vmem:[%s1403 + $0x38] sm:$0xff]
      %v1410 = vld [vmem:[%s1403 + $0x48] sm:$0xff]
      %v1411 = vld [vmem:[%s1403 + $0x50] sm:$0xff]
      %v1412 = vld [vmem:[%s1403 + $0x60] sm:$0xff]
      %v1413 = vld [vmem:[%s1403 + $0x68] sm:$0xff]
      %v1414 = vld [vmem:[%s1403 + $0x78] sm:$0xff]
      %v1415 = vld [vmem:[%s1403 + $0x80] sm:$0xff]
      %v1416 = vld [vmem:[%s1403 + $0x90] sm:$0xff]
      %v1417 = vld [vmem:[%s1403 + $0x98] sm:$0xff]
      %v1418 = vld [vmem:[%s1403 + $0xa8] sm:$0xff]
      %v1419 = vld [vmem:[%s1403 + $0xb0] sm:$0xff]
      %v1420 = vld [vmem:[%s1403 + $0xc0] sm:$0xff]
      %v1421 = vld [vmem:[%s1403 + $0xc8] sm:$0xff]
      %v1422 = vld [vmem:[%s1403 + $0xd8] sm:$0xff]
      %v1423 = vld [vmem:[%s1403 + $0xe0] sm:$0xff]
      %v1424 = vld [vmem:[%s1403 + $0xf0] sm:$0xff]
      %v1425 = vld [vmem:[%s1403 + $0xf8] sm:$0xff]
      %v1426 = vld [vmem:[%s1403 + $0x108] sm:$0xff]
      %v1427 = vld [vmem:[%s1403 + $0x110] sm:$0xff]
      %v1428 = vld [vmem:[%s1403 + $0x120] sm:$0xff]
      %v1429 = vld [vmem:[%s1403 + $0x128] sm:$0xff]
      %v1430 = vld [vmem:[%s1403 + $0x138] sm:$0xff]
      %v1431 = vld [vmem:[%s1403 + $0x140] sm:$0xff]
      %v1432 = vld [vmem:[%s1403 + $0x150] sm:$0xff]
      %v1433 = vld [vmem:[%s1403 + $0x158] sm:$0xff]
      %v1434 = vld [vmem:[%s1403 + $0x168] sm:$0xff]
      %v1435 = vld [vmem:[%s1403 + $0x170] sm:$0xff]
      %s1436 = scalar_lea.vmem %s1, 12
      %v1437 = vld [vmem:[%s1436] sm:$0xf]
      %v1439 = vsel %vm265, %v1404, 0
      %v1442 = vsel %vm265, %v1405, 0
      %v1445 = vsel %vm265, %v1406, 0
      %v1448 = vsel %vm265, %v1407, 0
      %v1451 = vsel %vm265, %v1408, 0
      %v1454 = vsel %vm265, %v1409, 0
      %v1457 = vsel %vm265, %v1410, 0
      %v1460 = vsel %vm265, %v1411, 0
      %v1463 = vsel %vm265, %v1412, 0
      %v1466 = vsel %vm265, %v1413, 0
      %v1469 = vsel %vm265, %v1414, 0
      %v1472 = vsel %vm265, %v1415, 0
      %v1475 = vsel %vm265, %v1416, 0
      %v1478 = vsel %vm265, %v1417, 0
      %v1481 = vsel %vm265, %v1418, 0
      %v1484 = vsel %vm265, %v1419, 0
      %v1487 = vsel %vm265, %v1420, 0
      %v1490 = vsel %vm265, %v1421, 0
      %v1493 = vsel %vm265, %v1422, 0
      %v1496 = vsel %vm265, %v1423, 0
      %v1499 = vsel %vm265, %v1424, 0
      %v1502 = vsel %vm265, %v1425, 0
      %v1505 = vsel %vm265, %v1426, 0
      %v1508 = vsel %vm265, %v1427, 0
      %v1511 = vsel %vm265, %v1428, 0
      %v1514 = vsel %vm265, %v1429, 0
      %v1517 = vsel %vm265, %v1430, 0
      %v1520 = vsel %vm265, %v1431, 0
      %v1523 = vsel %vm265, %v1432, 0
      %v1526 = vsel %vm265, %v1433, 0
      %v1529 = vsel %vm265, %v1434, 0
      %v1532 = vsel %vm265, %v1435, 0
      %v1535 = vsel %vm362, %v1437, 0
      %1537 = vmatprep.subr.mxu0 0.0
      %1538 = vmatpush1.msra.mxu0 0.0
      %1539 = vmatprep.subr.mxu0 0.0
      %1540 = vmatpush1.msra.mxu0 0.0
      %1541 = vmatprep.subr.mxu0 0.0
      %1542 = vmatpush1.msra.mxu0 0.0
      %1543 = vmatprep.subr.mxu0 0.0
      %1544 = vmatpush1.msra.mxu0 0.0
      %1545 = vmatprep.subr.mxu0 0.0
      %1546 = vmatpush1.msra.mxu0 0.0
      %1547 = vmatprep.subr.mxu0 0.0
      %1548 = vmatpush1.msra.mxu0 0.0
      %1549 = vmatprep.subr.mxu0 0.0
      %1550 = vmatpush1.msra.mxu0 0.0
      %1551 = vmatprep.subr.mxu0 0.0
      %1552 = vmatpush1.msra.mxu0 0.0
      %1553 = vmatprep.subr.mxu0 0.0
      %1554 = vmatpush1.msra.mxu0 0.0
      %1555 = vmatprep.subr.mxu0 0.0
      %1556 = vmatpush1.msra.mxu0 0.0
      %1557 = vmatprep.subr.mxu0 0.0
      %1558 = vmatpush1.msra.mxu0 0.0
      %1559 = vmatprep.subr.mxu0 0.0
      %1560 = vmatpush1.msra.mxu0 0.0
      %1561 = vmatprep.subr.mxu0 0.0
      %1562 = vmatpush1.msra.mxu0 0.0
      %1563 = vmatprep.subr.mxu0 0.0
      %1564 = vmatpush1.msra.mxu0 0.0
      %1565 = vmatprep.subr.mxu0 0.0
      %1566 = vmatpush1.msra.mxu0 0.0
      %1567 = vmatprep.subr.mxu0 0.0
      %1568 = vmatpush1.msra.mxu0 %v1535
      %1569 = vmatprep.subr.mxu0 0.0
      %1570 = vmatpush2.msra.mxu0 0.0
      %1571 = vmatprep.subr.mxu0 0.0
      %1572 = vmatpush2.msra.mxu0 0.0
      %1573 = vmatprep.subr.mxu0 0.0
      %1574 = vmatpush2.msra.mxu0 0.0
      %1575 = vmatprep.subr.mxu0 0.0
      %1576 = vmatpush2.msra.mxu0 0.0
      %1577 = vmatprep.subr.mxu0 0.0
      %1578 = vmatpush2.msra.mxu0 0.0
      %1579 = vmatprep.subr.mxu0 0.0
      %1580 = vmatpush2.msra.mxu0 0.0
      %1581 = vmatprep.subr.mxu0 0.0
      %1582 = vmatpush2.msra.mxu0 0.0
      %1583 = vmatprep.subr.mxu0 0.0
      %1584 = vmatpush2.msra.mxu0 0.0
      %1585 = vmatprep.subr.mxu0 0.0
      %1586 = vmatpush2.msra.mxu0 0.0
      %1587 = vmatprep.subr.mxu0 0.0
      %1588 = vmatpush2.msra.mxu0 0.0
      %1589 = vmatprep.subr.mxu0 0.0
      %1590 = vmatpush2.msra.mxu0 0.0
      %1591 = vmatprep.subr.mxu0 0.0
      %1592 = vmatpush2.msra.mxu0 0.0
      %1593 = vmatprep.subr.mxu0 0.0
      %1594 = vmatpush2.msra.mxu0 0.0
      %1595 = vmatprep.subr.mxu0 0.0
      %1596 = vmatpush2.msra.mxu0 0.0
      %1597 = vmatprep.subr.mxu0 0.0
      %1598 = vmatpush2.msra.mxu0 0.0
      %1599 = vmatprep.subr.mxu0 0.0
      %1600 = vmatpush2.msra.mxu0 0.0
      %1601 = vmatprep.mubr.f32.mxu0 0.0
      %1602 = vmatmul.mubr.f32.gmra.mxu0 %v1439
      %v1603 = vpop.f32.mrf.mxu0
      %v1604 = vadd.f32 0.0, %v1603
      %v1605 = vpop.f32.mrf.mxu0
      %1606 = vmatprep.mubr.f32.mxu0 0.0
      %1607 = vmatmul.mubr.f32.gmra.mxu0 %v1442
      %v1608 = vpop.f32.mrf.mxu0
      %v1609 = vadd.f32 0.0, %v1608
      %v1610 = vpop.f32.mrf.mxu0
      %1611 = vmatprep.mubr.f32.mxu0 0.0
      %1612 = vmatmul.mubr.f32.gmra.mxu0 %v1445
      %v1613 = vpop.f32.mrf.mxu0
      %v1614 = vadd.f32 0.0, %v1613
      %v1615 = vpop.f32.mrf.mxu0
      %1616 = vmatprep.mubr.f32.mxu0 0.0
      %1617 = vmatmul.mubr.f32.gmra.mxu0 %v1448
      %v1618 = vpop.f32.mrf.mxu0
      %v1619 = vadd.f32 0.0, %v1618
      %v1620 = vpop.f32.mrf.mxu0
      %1621 = vmatprep.mubr.f32.mxu0 0.0
      %1622 = vmatmul.mubr.f32.gmra.mxu0 %v1451
      %v1623 = vpop.f32.mrf.mxu0
      %v1624 = vadd.f32 0.0, %v1623
      %v1625 = vpop.f32.mrf.mxu0
      %1626 = vmatprep.mubr.f32.mxu0 0.0
      %1627 = vmatmul.mubr.f32.gmra.mxu0 %v1454
      %v1628 = vpop.f32.mrf.mxu0
      %v1629 = vadd.f32 0.0, %v1628
      %v1630 = vpop.f32.mrf.mxu0
      %1631 = vmatprep.mubr.f32.mxu0 0.0
      %1632 = vmatmul.mubr.f32.gmra.mxu0 %v1457
      %v1633 = vpop.f32.mrf.mxu0
      %v1634 = vadd.f32 0.0, %v1633
      %v1635 = vpop.f32.mrf.mxu0
      %1636 = vmatprep.mubr.f32.mxu0 0.0
      %1637 = vmatmul.mubr.f32.gmra.mxu0 %v1460
      %v1638 = vpop.f32.mrf.mxu0
      %v1639 = vadd.f32 0.0, %v1638
      %v1640 = vpop.f32.mrf.mxu0
      %1641 = vmatprep.mubr.f32.mxu0 0.0
      %1642 = vmatmul.mubr.f32.gmra.mxu0 %v1463
      %v1643 = vpop.f32.mrf.mxu0
      %v1644 = vadd.f32 0.0, %v1643
      %v1645 = vpop.f32.mrf.mxu0
      %1646 = vmatprep.mubr.f32.mxu0 0.0
      %1647 = vmatmul.mubr.f32.gmra.mxu0 %v1466
      %v1648 = vpop.f32.mrf.mxu0
      %v1649 = vadd.f32 0.0, %v1648
      %v1650 = vpop.f32.mrf.mxu0
      %1651 = vmatprep.mubr.f32.mxu0 0.0
      %1652 = vmatmul.mubr.f32.gmra.mxu0 %v1469
      %v1653 = vpop.f32.mrf.mxu0
      %v1654 = vadd.f32 0.0, %v1653
      %v1655 = vpop.f32.mrf.mxu0
      %1656 = vmatprep.mubr.f32.mxu0 0.0
      %1657 = vmatmul.mubr.f32.gmra.mxu0 %v1472
      %v1658 = vpop.f32.mrf.mxu0
      %v1659 = vadd.f32 0.0, %v1658
      %v1660 = vpop.f32.mrf.mxu0
      %1661 = vmatprep.mubr.f32.mxu0 0.0
      %1662 = vmatmul.mubr.f32.gmra.mxu0 %v1475
      %v1663 = vpop.f32.mrf.mxu0
      %v1664 = vadd.f32 0.0, %v1663
      %v1665 = vpop.f32.mrf.mxu0
      %1666 = vmatprep.mubr.f32.mxu0 0.0
      %1667 = vmatmul.mubr.f32.gmra.mxu0 %v1478
      %v1668 = vpop.f32.mrf.mxu0
      %v1669 = vadd.f32 0.0, %v1668
      %v1670 = vpop.f32.mrf.mxu0
      %1671 = vmatprep.mubr.f32.mxu0 0.0
      %1672 = vmatmul.mubr.f32.gmra.mxu0 %v1481
      %v1673 = vpop.f32.mrf.mxu0
      %v1674 = vadd.f32 0.0, %v1673
      %v1675 = vpop.f32.mrf.mxu0
      %1676 = vmatprep.mubr.f32.mxu0 0.0
      %1677 = vmatmul.mubr.f32.gmra.mxu0 %v1484
      %v1678 = vpop.f32.mrf.mxu0
      %v1679 = vadd.f32 0.0, %v1678
      %v1680 = vpop.f32.mrf.mxu0
      %1681 = vmatprep.mubr.f32.mxu0 0.0
      %1682 = vmatmul.mubr.f32.gmra.mxu0 %v1487
      %v1683 = vpop.f32.mrf.mxu0
      %v1684 = vadd.f32 0.0, %v1683
      %v1685 = vpop.f32.mrf.mxu0
      %1686 = vmatprep.mubr.f32.mxu0 0.0
      %1687 = vmatmul.mubr.f32.gmra.mxu0 %v1490
      %v1688 = vpop.f32.mrf.mxu0
      %v1689 = vadd.f32 0.0, %v1688
      %v1690 = vpop.f32.mrf.mxu0
      %1691 = vmatprep.mubr.f32.mxu0 0.0
      %1692 = vmatmul.mubr.f32.gmra.mxu0 %v1493
      %v1693 = vpop.f32.mrf.mxu0
      %v1694 = vadd.f32 0.0, %v1693
      %v1695 = vpop.f32.mrf.mxu0
      %1696 = vmatprep.mubr.f32.mxu0 0.0
      %1697 = vmatmul.mubr.f32.gmra.mxu0 %v1496
      %v1698 = vpop.f32.mrf.mxu0
      %v1699 = vadd.f32 0.0, %v1698
      %v1700 = vpop.f32.mrf.mxu0
      %1701 = vmatprep.mubr.f32.mxu0 0.0
      %1702 = vmatmul.mubr.f32.gmra.mxu0 %v1499
      %v1703 = vpop.f32.mrf.mxu0
      %v1704 = vadd.f32 0.0, %v1703
      %v1705 = vpop.f32.mrf.mxu0
      %1706 = vmatprep.mubr.f32.mxu0 0.0
      %1707 = vmatmul.mubr.f32.gmra.mxu0 %v1502
      %v1708 = vpop.f32.mrf.mxu0
      %v1709 = vadd.f32 0.0, %v1708
      %v1710 = vpop.f32.mrf.mxu0
      %1711 = vmatprep.mubr.f32.mxu0 0.0
      %1712 = vmatmul.mubr.f32.gmra.mxu0 %v1505
      %v1713 = vpop.f32.mrf.mxu0
      %v1714 = vadd.f32 0.0, %v1713
      %v1715 = vpop.f32.mrf.mxu0
      %1716 = vmatprep.mubr.f32.mxu0 0.0
      %1717 = vmatmul.mubr.f32.gmra.mxu0 %v1508
      %v1718 = vpop.f32.mrf.mxu0
      %v1719 = vadd.f32 0.0, %v1718
      %v1720 = vpop.f32.mrf.mxu0
      %1721 = vmatprep.mubr.f32.mxu0 0.0
      %1722 = vmatmul.mubr.f32.gmra.mxu0 %v1511
      %v1723 = vpop.f32.mrf.mxu0
      %v1724 = vadd.f32 0.0, %v1723
      %v1725 = vpop.f32.mrf.mxu0
      %1726 = vmatprep.mubr.f32.mxu0 0.0
      %1727 = vmatmul.mubr.f32.gmra.mxu0 %v1514
      %v1728 = vpop.f32.mrf.mxu0
      %v1729 = vadd.f32 0.0, %v1728
      %v1730 = vpop.f32.mrf.mxu0
      %1731 = vmatprep.mubr.f32.mxu0 0.0
      %1732 = vmatmul.mubr.f32.gmra.mxu0 %v1517
      %v1733 = vpop.f32.mrf.mxu0
      %v1734 = vadd.f32 0.0, %v1733
      %v1735 = vpop.f32.mrf.mxu0
      %1736 = vmatprep.mubr.f32.mxu0 0.0
      %1737 = vmatmul.mubr.f32.gmra.mxu0 %v1520
      %v1738 = vpop.f32.mrf.mxu0
      %v1739 = vadd.f32 0.0, %v1738
      %v1740 = vpop.f32.mrf.mxu0
      %1741 = vmatprep.mubr.f32.mxu0 0.0
      %1742 = vmatmul.mubr.f32.gmra.mxu0 %v1523
      %v1743 = vpop.f32.mrf.mxu0
      %v1744 = vadd.f32 0.0, %v1743
      %v1745 = vpop.f32.mrf.mxu0
      %1746 = vmatprep.mubr.f32.mxu0 0.0
      %1747 = vmatmul.mubr.f32.gmra.mxu0 %v1526
      %v1748 = vpop.f32.mrf.mxu0
      %v1749 = vadd.f32 0.0, %v1748
      %v1750 = vpop.f32.mrf.mxu0
      %1751 = vmatprep.mubr.f32.mxu0 0.0
      %1752 = vmatmul.mubr.f32.gmra.mxu0 %v1529
      %v1753 = vpop.f32.mrf.mxu0
      %v1754 = vadd.f32 0.0, %v1753
      %v1755 = vpop.f32.mrf.mxu0
      %1756 = vmatprep.mubr.f32.mxu0 0.0
      %1757 = vmatmul.mubr.f32.gmra.mxu0 %v1532
      %v1758 = vpop.f32.mrf.mxu0
      %v1759 = vadd.f32 0.0, %v1758
      %v1760 = vpop.f32.mrf.mxu0
      %1761 = vdwg.mxu0
      %v1762 = vadd.f32 %v1371, %v1604
      %v1763 = vadd.f32 %v1372, %v1609
      %v1764 = vadd.f32 %v1373, %v1614
      %v1765 = vadd.f32 %v1374, %v1619
      %v1766 = vadd.f32 %v1375, %v1624
      %v1767 = vadd.f32 %v1376, %v1629
      %v1768 = vadd.f32 %v1377, %v1634
      %v1769 = vadd.f32 %v1378, %v1639
      %v1770 = vadd.f32 %v1379, %v1644
      %v1771 = vadd.f32 %v1380, %v1649
      %v1772 = vadd.f32 %v1381, %v1654
      %v1773 = vadd.f32 %v1382, %v1659
      %v1774 = vadd.f32 %v1383, %v1664
      %v1775 = vadd.f32 %v1384, %v1669
      %v1776 = vadd.f32 %v1385, %v1674
      %v1777 = vadd.f32 %v1386, %v1679
      %v1778 = vadd.f32 %v1387, %v1684
      %v1779 = vadd.f32 %v1388, %v1689
      %v1780 = vadd.f32 %v1389, %v1694
      %v1781 = vadd.f32 %v1390, %v1699
      %v1782 = vadd.f32 %v1391, %v1704
      %v1783 = vadd.f32 %v1392, %v1709
      %v1784 = vadd.f32 %v1393, %v1714
      %v1785 = vadd.f32 %v1394, %v1719
      %v1786 = vadd.f32 %v1395, %v1724
      %v1787 = vadd.f32 %v1396, %v1729
      %v1788 = vadd.f32 %v1397, %v1734
      %v1789 = vadd.f32 %v1398, %v1739
      %v1790 = vadd.f32 %v1399, %v1744
      %v1791 = vadd.f32 %v1400, %v1749
      %v1792 = vadd.f32 %v1401, %v1754
      %v1793 = vadd.f32 %v1402, %v1759
      %v1794 = vld [vmem:[%s1403 + $0x1] sm:$0xff]
      %v1795 = vld [vmem:[%s1403 + $0x9] sm:$0xff]
      %v1796 = vld [vmem:[%s1403 + $0x19] sm:$0xff]
      %v1797 = vld [vmem:[%s1403 + $0x21] sm:$0xff]
      %v1798 = vld [vmem:[%s1403 + $0x31] sm:$0xff]
      %v1799 = vld [vmem:[%s1403 + $0x39] sm:$0xff]
      %v1800 = vld [vmem:[%s1403 + $0x49] sm:$0xff]
      %v1801 = vld [vmem:[%s1403 + $0x51] sm:$0xff]
      %v1802 = vld [vmem:[%s1403 + $0x61] sm:$0xff]
      %v1803 = vld [vmem:[%s1403 + $0x69] sm:$0xff]
      %v1804 = vld [vmem:[%s1403 + $0x79] sm:$0xff]
      %v1805 = vld [vmem:[%s1403 + $0x81] sm:$0xff]
      %v1806 = vld [vmem:[%s1403 + $0x91] sm:$0xff]
      %v1807 = vld [vmem:[%s1403 + $0x99] sm:$0xff]
      %v1808 = vld [vmem:[%s1403 + $0xa9] sm:$0xff]
      %v1809 = vld [vmem:[%s1403 + $0xb1] sm:$0xff]
      %v1810 = vld [vmem:[%s1403 + $0xc1] sm:$0xff]
      %v1811 = vld [vmem:[%s1403 + $0xc9] sm:$0xff]
      %v1812 = vld [vmem:[%s1403 + $0xd9] sm:$0xff]
      %v1813 = vld [vmem:[%s1403 + $0xe1] sm:$0xff]
      %v1814 = vld [vmem:[%s1403 + $0xf1] sm:$0xff]
      %v1815 = vld [vmem:[%s1403 + $0xf9] sm:$0xff]
      %v1816 = vld [vmem:[%s1403 + $0x109] sm:$0xff]
      %v1817 = vld [vmem:[%s1403 + $0x111] sm:$0xff]
      %v1818 = vld [vmem:[%s1403 + $0x121] sm:$0xff]
      %v1819 = vld [vmem:[%s1403 + $0x129] sm:$0xff]
      %v1820 = vld [vmem:[%s1403 + $0x139] sm:$0xff]
      %v1821 = vld [vmem:[%s1403 + $0x141] sm:$0xff]
      %v1822 = vld [vmem:[%s1403 + $0x151] sm:$0xff]
      %v1823 = vld [vmem:[%s1403 + $0x159] sm:$0xff]
      %v1824 = vld [vmem:[%s1403 + $0x169] sm:$0xff]
      %v1825 = vld [vmem:[%s1403 + $0x171] sm:$0xff]
      %s1826 = scalar_lea.vmem %s1, 16
      %v1827 = vld [vmem:[%s1826] sm:$0xf]
      %v1829 = vsel %vm265, %v1794, 0
      %v1832 = vsel %vm265, %v1795, 0
      %v1835 = vsel %vm265, %v1796, 0
      %v1838 = vsel %vm265, %v1797, 0
      %v1841 = vsel %vm265, %v1798, 0
      %v1844 = vsel %vm265, %v1799, 0
      %v1847 = vsel %vm265, %v1800, 0
      %v1850 = vsel %vm265, %v1801, 0
      %v1853 = vsel %vm265, %v1802, 0
      %v1856 = vsel %vm265, %v1803, 0
      %v1859 = vsel %vm265, %v1804, 0
      %v1862 = vsel %vm265, %v1805, 0
      %v1865 = vsel %vm265, %v1806, 0
      %v1868 = vsel %vm265, %v1807, 0
      %v1871 = vsel %vm265, %v1808, 0
      %v1874 = vsel %vm265, %v1809, 0
      %v1877 = vsel %vm265, %v1810, 0
      %v1880 = vsel %vm265, %v1811, 0
      %v1883 = vsel %vm265, %v1812, 0
      %v1886 = vsel %vm265, %v1813, 0
      %v1889 = vsel %vm265, %v1814, 0
      %v1892 = vsel %vm265, %v1815, 0
      %v1895 = vsel %vm265, %v1816, 0
      %v1898 = vsel %vm265, %v1817, 0
      %v1901 = vsel %vm265, %v1818, 0
      %v1904 = vsel %vm265, %v1819, 0
      %v1907 = vsel %vm265, %v1820, 0
      %v1910 = vsel %vm265, %v1821, 0
      %v1913 = vsel %vm265, %v1822, 0
      %v1916 = vsel %vm265, %v1823, 0
      %v1919 = vsel %vm265, %v1824, 0
      %v1922 = vsel %vm265, %v1825, 0
      %v1925 = vsel %vm362, %v1827, 0
      %1927 = vmatprep.subr.mxu0 0.0
      %1928 = vmatpush1.msra.mxu0 0.0
      %1929 = vmatprep.subr.mxu0 0.0
      %1930 = vmatpush1.msra.mxu0 0.0
      %1931 = vmatprep.subr.mxu0 0.0
      %1932 = vmatpush1.msra.mxu0 0.0
      %1933 = vmatprep.subr.mxu0 0.0
      %1934 = vmatpush1.msra.mxu0 0.0
      %1935 = vmatprep.subr.mxu0 0.0
      %1936 = vmatpush1.msra.mxu0 0.0
      %1937 = vmatprep.subr.mxu0 0.0
      %1938 = vmatpush1.msra.mxu0 0.0
      %1939 = vmatprep.subr.mxu0 0.0
      %1940 = vmatpush1.msra.mxu0 0.0
      %1941 = vmatprep.subr.mxu0 0.0
      %1942 = vmatpush1.msra.mxu0 0.0
      %1943 = vmatprep.subr.mxu0 0.0
      %1944 = vmatpush1.msra.mxu0 0.0
      %1945 = vmatprep.subr.mxu0 0.0
      %1946 = vmatpush1.msra.mxu0 0.0
      %1947 = vmatprep.subr.mxu0 0.0
      %1948 = vmatpush1.msra.mxu0 0.0
      %1949 = vmatprep.subr.mxu0 0.0
      %1950 = vmatpush1.msra.mxu0 0.0
      %1951 = vmatprep.subr.mxu0 0.0
      %1952 = vmatpush1.msra.mxu0 0.0
      %1953 = vmatprep.subr.mxu0 0.0
      %1954 = vmatpush1.msra.mxu0 0.0
      %1955 = vmatprep.subr.mxu0 0.0
      %1956 = vmatpush1.msra.mxu0 0.0
      %1957 = vmatprep.subr.mxu0 0.0
      %1958 = vmatpush1.msra.mxu0 %v1925
      %1959 = vmatprep.subr.mxu0 0.0
      %1960 = vmatpush2.msra.mxu0 0.0
      %1961 = vmatprep.subr.mxu0 0.0
      %1962 = vmatpush2.msra.mxu0 0.0
      %1963 = vmatprep.subr.mxu0 0.0
      %1964 = vmatpush2.msra.mxu0 0.0
      %1965 = vmatprep.subr.mxu0 0.0
      %1966 = vmatpush2.msra.mxu0 0.0
      %1967 = vmatprep.subr.mxu0 0.0
      %1968 = vmatpush2.msra.mxu0 0.0
      %1969 = vmatprep.subr.mxu0 0.0
      %1970 = vmatpush2.msra.mxu0 0.0
      %1971 = vmatprep.subr.mxu0 0.0
      %1972 = vmatpush2.msra.mxu0 0.0
      %1973 = vmatprep.subr.mxu0 0.0
      %1974 = vmatpush2.msra.mxu0 0.0
      %1975 = vmatprep.subr.mxu0 0.0
      %1976 = vmatpush2.msra.mxu0 0.0
      %1977 = vmatprep.subr.mxu0 0.0
      %1978 = vmatpush2.msra.mxu0 0.0
      %1979 = vmatprep.subr.mxu0 0.0
      %1980 = vmatpush2.msra.mxu0 0.0
      %1981 = vmatprep.subr.mxu0 0.0
      %1982 = vmatpush2.msra.mxu0 0.0
      %1983 = vmatprep.subr.mxu0 0.0
      %1984 = vmatpush2.msra.mxu0 0.0
      %1985 = vmatprep.subr.mxu0 0.0
      %1986 = vmatpush2.msra.mxu0 0.0
      %1987 = vmatprep.subr.mxu0 0.0
      %1988 = vmatpush2.msra.mxu0 0.0
      %1989 = vmatprep.subr.mxu0 0.0
      %1990 = vmatpush2.msra.mxu0 0.0
      %1991 = vmatprep.mubr.f32.mxu0 0.0
      %1992 = vmatmul.mubr.f32.gmra.mxu0 %v1829
      %v1993 = vpop.f32.mrf.mxu0
      %v1994 = vadd.f32 0.0, %v1993
      %v1995 = vpop.f32.mrf.mxu0
      %1996 = vmatprep.mubr.f32.mxu0 0.0
      %1997 = vmatmul.mubr.f32.gmra.mxu0 %v1832
      %v1998 = vpop.f32.mrf.mxu0
      %v1999 = vadd.f32 0.0, %v1998
      %v2000 = vpop.f32.mrf.mxu0
      %2001 = vmatprep.mubr.f32.mxu0 0.0
      %2002 = vmatmul.mubr.f32.gmra.mxu0 %v1835
      %v2003 = vpop.f32.mrf.mxu0
      %v2004 = vadd.f32 0.0, %v2003
      %v2005 = vpop.f32.mrf.mxu0
      %2006 = vmatprep.mubr.f32.mxu0 0.0
      %2007 = vmatmul.mubr.f32.gmra.mxu0 %v1838
      %v2008 = vpop.f32.mrf.mxu0
      %v2009 = vadd.f32 0.0, %v2008
      %v2010 = vpop.f32.mrf.mxu0
      %2011 = vmatprep.mubr.f32.mxu0 0.0
      %2012 = vmatmul.mubr.f32.gmra.mxu0 %v1841
      %v2013 = vpop.f32.mrf.mxu0
      %v2014 = vadd.f32 0.0, %v2013
      %v2015 = vpop.f32.mrf.mxu0
      %2016 = vmatprep.mubr.f32.mxu0 0.0
      %2017 = vmatmul.mubr.f32.gmra.mxu0 %v1844
      %v2018 = vpop.f32.mrf.mxu0
      %v2019 = vadd.f32 0.0, %v2018
      %v2020 = vpop.f32.mrf.mxu0
      %2021 = vmatprep.mubr.f32.mxu0 0.0
      %2022 = vmatmul.mubr.f32.gmra.mxu0 %v1847
      %v2023 = vpop.f32.mrf.mxu0
      %v2024 = vadd.f32 0.0, %v2023
      %v2025 = vpop.f32.mrf.mxu0
      %2026 = vmatprep.mubr.f32.mxu0 0.0
      %2027 = vmatmul.mubr.f32.gmra.mxu0 %v1850
      %v2028 = vpop.f32.mrf.mxu0
      %v2029 = vadd.f32 0.0, %v2028
      %v2030 = vpop.f32.mrf.mxu0
      %2031 = vmatprep.mubr.f32.mxu0 0.0
      %2032 = vmatmul.mubr.f32.gmra.mxu0 %v1853
      %v2033 = vpop.f32.mrf.mxu0
      %v2034 = vadd.f32 0.0, %v2033
      %v2035 = vpop.f32.mrf.mxu0
      %2036 = vmatprep.mubr.f32.mxu0 0.0
      %2037 = vmatmul.mubr.f32.gmra.mxu0 %v1856
      %v2038 = vpop.f32.mrf.mxu0
      %v2039 = vadd.f32 0.0, %v2038
      %v2040 = vpop.f32.mrf.mxu0
      %2041 = vmatprep.mubr.f32.mxu0 0.0
      %2042 = vmatmul.mubr.f32.gmra.mxu0 %v1859
      %v2043 = vpop.f32.mrf.mxu0
      %v2044 = vadd.f32 0.0, %v2043
      %v2045 = vpop.f32.mrf.mxu0
      %2046 = vmatprep.mubr.f32.mxu0 0.0
      %2047 = vmatmul.mubr.f32.gmra.mxu0 %v1862
      %v2048 = vpop.f32.mrf.mxu0
      %v2049 = vadd.f32 0.0, %v2048
      %v2050 = vpop.f32.mrf.mxu0
      %2051 = vmatprep.mubr.f32.mxu0 0.0
      %2052 = vmatmul.mubr.f32.gmra.mxu0 %v1865
      %v2053 = vpop.f32.mrf.mxu0
      %v2054 = vadd.f32 0.0, %v2053
      %v2055 = vpop.f32.mrf.mxu0
      %2056 = vmatprep.mubr.f32.mxu0 0.0
      %2057 = vmatmul.mubr.f32.gmra.mxu0 %v1868
      %v2058 = vpop.f32.mrf.mxu0
      %v2059 = vadd.f32 0.0, %v2058
      %v2060 = vpop.f32.mrf.mxu0
      %2061 = vmatprep.mubr.f32.mxu0 0.0
      %2062 = vmatmul.mubr.f32.gmra.mxu0 %v1871
      %v2063 = vpop.f32.mrf.mxu0
      %v2064 = vadd.f32 0.0, %v2063
      %v2065 = vpop.f32.mrf.mxu0
      %2066 = vmatprep.mubr.f32.mxu0 0.0
      %2067 = vmatmul.mubr.f32.gmra.mxu0 %v1874
      %v2068 = vpop.f32.mrf.mxu0
      %v2069 = vadd.f32 0.0, %v2068
      %v2070 = vpop.f32.mrf.mxu0
      %2071 = vmatprep.mubr.f32.mxu0 0.0
      %2072 = vmatmul.mubr.f32.gmra.mxu0 %v1877
      %v2073 = vpop.f32.mrf.mxu0
      %v2074 = vadd.f32 0.0, %v2073
      %v2075 = vpop.f32.mrf.mxu0
      %2076 = vmatprep.mubr.f32.mxu0 0.0
      %2077 = vmatmul.mubr.f32.gmra.mxu0 %v1880
      %v2078 = vpop.f32.mrf.mxu0
      %v2079 = vadd.f32 0.0, %v2078
      %v2080 = vpop.f32.mrf.mxu0
      %2081 = vmatprep.mubr.f32.mxu0 0.0
      %2082 = vmatmul.mubr.f32.gmra.mxu0 %v1883
      %v2083 = vpop.f32.mrf.mxu0
      %v2084 = vadd.f32 0.0, %v2083
      %v2085 = vpop.f32.mrf.mxu0
      %2086 = vmatprep.mubr.f32.mxu0 0.0
      %2087 = vmatmul.mubr.f32.gmra.mxu0 %v1886
      %v2088 = vpop.f32.mrf.mxu0
      %v2089 = vadd.f32 0.0, %v2088
      %v2090 = vpop.f32.mrf.mxu0
      %2091 = vmatprep.mubr.f32.mxu0 0.0
      %2092 = vmatmul.mubr.f32.gmra.mxu0 %v1889
      %v2093 = vpop.f32.mrf.mxu0
      %v2094 = vadd.f32 0.0, %v2093
      %v2095 = vpop.f32.mrf.mxu0
      %2096 = vmatprep.mubr.f32.mxu0 0.0
      %2097 = vmatmul.mubr.f32.gmra.mxu0 %v1892
      %v2098 = vpop.f32.mrf.mxu0
      %v2099 = vadd.f32 0.0, %v2098
      %v2100 = vpop.f32.mrf.mxu0
      %2101 = vmatprep.mubr.f32.mxu0 0.0
      %2102 = vmatmul.mubr.f32.gmra.mxu0 %v1895
      %v2103 = vpop.f32.mrf.mxu0
      %v2104 = vadd.f32 0.0, %v2103
      %v2105 = vpop.f32.mrf.mxu0
      %2106 = vmatprep.mubr.f32.mxu0 0.0
      %2107 = vmatmul.mubr.f32.gmra.mxu0 %v1898
      %v2108 = vpop.f32.mrf.mxu0
      %v2109 = vadd.f32 0.0, %v2108
      %v2110 = vpop.f32.mrf.mxu0
      %2111 = vmatprep.mubr.f32.mxu0 0.0
      %2112 = vmatmul.mubr.f32.gmra.mxu0 %v1901
      %v2113 = vpop.f32.mrf.mxu0
      %v2114 = vadd.f32 0.0, %v2113
      %v2115 = vpop.f32.mrf.mxu0
      %2116 = vmatprep.mubr.f32.mxu0 0.0
      %2117 = vmatmul.mubr.f32.gmra.mxu0 %v1904
      %v2118 = vpop.f32.mrf.mxu0
      %v2119 = vadd.f32 0.0, %v2118
      %v2120 = vpop.f32.mrf.mxu0
      %2121 = vmatprep.mubr.f32.mxu0 0.0
      %2122 = vmatmul.mubr.f32.gmra.mxu0 %v1907
      %v2123 = vpop.f32.mrf.mxu0
      %v2124 = vadd.f32 0.0, %v2123
      %v2125 = vpop.f32.mrf.mxu0
      %2126 = vmatprep.mubr.f32.mxu0 0.0
      %2127 = vmatmul.mubr.f32.gmra.mxu0 %v1910
      %v2128 = vpop.f32.mrf.mxu0
      %v2129 = vadd.f32 0.0, %v2128
      %v2130 = vpop.f32.mrf.mxu0
      %2131 = vmatprep.mubr.f32.mxu0 0.0
      %2132 = vmatmul.mubr.f32.gmra.mxu0 %v1913
      %v2133 = vpop.f32.mrf.mxu0
      %v2134 = vadd.f32 0.0, %v2133
      %v2135 = vpop.f32.mrf.mxu0
      %2136 = vmatprep.mubr.f32.mxu0 0.0
      %2137 = vmatmul.mubr.f32.gmra.mxu0 %v1916
      %v2138 = vpop.f32.mrf.mxu0
      %v2139 = vadd.f32 0.0, %v2138
      %v2140 = vpop.f32.mrf.mxu0
      %2141 = vmatprep.mubr.f32.mxu0 0.0
      %2142 = vmatmul.mubr.f32.gmra.mxu0 %v1919
      %v2143 = vpop.f32.mrf.mxu0
      %v2144 = vadd.f32 0.0, %v2143
      %v2145 = vpop.f32.mrf.mxu0
      %2146 = vmatprep.mubr.f32.mxu0 0.0
      %2147 = vmatmul.mubr.f32.gmra.mxu0 %v1922
      %v2148 = vpop.f32.mrf.mxu0
      %v2149 = vadd.f32 0.0, %v2148
      %v2150 = vpop.f32.mrf.mxu0
      %2151 = vdwg.mxu0
      %v2152 = vadd.f32 %v1762, %v1994
      %v2153 = vadd.f32 %v1763, %v1999
      %v2154 = vadd.f32 %v1764, %v2004
      %v2155 = vadd.f32 %v1765, %v2009
      %v2156 = vadd.f32 %v1766, %v2014
      %v2157 = vadd.f32 %v1767, %v2019
      %v2158 = vadd.f32 %v1768, %v2024
      %v2159 = vadd.f32 %v1769, %v2029
      %v2160 = vadd.f32 %v1770, %v2034
      %v2161 = vadd.f32 %v1771, %v2039
      %v2162 = vadd.f32 %v1772, %v2044
      %v2163 = vadd.f32 %v1773, %v2049
      %v2164 = vadd.f32 %v1774, %v2054
      %v2165 = vadd.f32 %v1775, %v2059
      %v2166 = vadd.f32 %v1776, %v2064
      %v2167 = vadd.f32 %v1777, %v2069
      %v2168 = vadd.f32 %v1778, %v2074
      %v2169 = vadd.f32 %v1779, %v2079
      %v2170 = vadd.f32 %v1780, %v2084
      %v2171 = vadd.f32 %v1781, %v2089
      %v2172 = vadd.f32 %v1782, %v2094
      %v2173 = vadd.f32 %v1783, %v2099
      %v2174 = vadd.f32 %v1784, %v2104
      %v2175 = vadd.f32 %v1785, %v2109
      %v2176 = vadd.f32 %v1786, %v2114
      %v2177 = vadd.f32 %v1787, %v2119
      %v2178 = vadd.f32 %v1788, %v2124
      %v2179 = vadd.f32 %v1789, %v2129
      %v2180 = vadd.f32 %v1790, %v2134
      %v2181 = vadd.f32 %v1791, %v2139
      %v2182 = vadd.f32 %v1792, %v2144
      %v2183 = vadd.f32 %v1793, %v2149
      %v2184 = vld [vmem:[%s1403 + $0x2] sm:$0xff]
      %v2185 = vld [vmem:[%s1403 + $0xa] sm:$0xff]
      %v2186 = vld [vmem:[%s1403 + $0x1a] sm:$0xff]
      %v2187 = vld [vmem:[%s1403 + $0x22] sm:$0xff]
      %v2188 = vld [vmem:[%s1403 + $0x32] sm:$0xff]
      %v2189 = vld [vmem:[%s1403 + $0x3a] sm:$0xff]
      %v2190 = vld [vmem:[%s1403 + $0x4a] sm:$0xff]
      %v2191 = vld [vmem:[%s1403 + $0x52] sm:$0xff]
      %v2192 = vld [vmem:[%s1403 + $0x62] sm:$0xff]
      %v2193 = vld [vmem:[%s1403 + $0x6a] sm:$0xff]
      %v2194 = vld [vmem:[%s1403 + $0x7a] sm:$0xff]
      %v2195 = vld [vmem:[%s1403 + $0x82] sm:$0xff]
      %v2196 = vld [vmem:[%s1403 + $0x92] sm:$0xff]
      %v2197 = vld [vmem:[%s1403 + $0x9a] sm:$0xff]
      %v2198 = vld [vmem:[%s1403 + $0xaa] sm:$0xff]
      %v2199 = vld [vmem:[%s1403 + $0xb2] sm:$0xff]
      %v2200 = vld [vmem:[%s1403 + $0xc2] sm:$0xff]
      %v2201 = vld [vmem:[%s1403 + $0xca] sm:$0xff]
      %v2202 = vld [vmem:[%s1403 + $0xda] sm:$0xff]
      %v2203 = vld [vmem:[%s1403 + $0xe2] sm:$0xff]
      %v2204 = vld [vmem:[%s1403 + $0xf2] sm:$0xff]
      %v2205 = vld [vmem:[%s1403 + $0xfa] sm:$0xff]
      %v2206 = vld [vmem:[%s1403 + $0x10a] sm:$0xff]
      %v2207 = vld [vmem:[%s1403 + $0x112] sm:$0xff]
      %v2208 = vld [vmem:[%s1403 + $0x122] sm:$0xff]
      %v2209 = vld [vmem:[%s1403 + $0x12a] sm:$0xff]
      %v2210 = vld [vmem:[%s1403 + $0x13a] sm:$0xff]
      %v2211 = vld [vmem:[%s1403 + $0x142] sm:$0xff]
      %v2212 = vld [vmem:[%s1403 + $0x152] sm:$0xff]
      %v2213 = vld [vmem:[%s1403 + $0x15a] sm:$0xff]
      %v2214 = vld [vmem:[%s1403 + $0x16a] sm:$0xff]
      %v2215 = vld [vmem:[%s1403 + $0x172] sm:$0xff]
      %s2216 = scalar_lea.vmem %s1, 20
      %v2217 = vld [vmem:[%s2216] sm:$0xf]
      %v2219 = vsel %vm265, %v2184, 0
      %v2222 = vsel %vm265, %v2185, 0
      %v2225 = vsel %vm265, %v2186, 0
      %v2228 = vsel %vm265, %v2187, 0
      %v2231 = vsel %vm265, %v2188, 0
      %v2234 = vsel %vm265, %v2189, 0
      %v2237 = vsel %vm265, %v2190, 0
      %v2240 = vsel %vm265, %v2191, 0
      %v2243 = vsel %vm265, %v2192, 0
      %v2246 = vsel %vm265, %v2193, 0
      %v2249 = vsel %vm265, %v2194, 0
      %v2252 = vsel %vm265, %v2195, 0
      %v2255 = vsel %vm265, %v2196, 0
      %v2258 = vsel %vm265, %v2197, 0
      %v2261 = vsel %vm265, %v2198, 0
      %v2264 = vsel %vm265, %v2199, 0
      %v2267 = vsel %vm265, %v2200, 0
      %v2270 = vsel %vm265, %v2201, 0
      %v2273 = vsel %vm265, %v2202, 0
      %v2276 = vsel %vm265, %v2203, 0
      %v2279 = vsel %vm265, %v2204, 0
      %v2282 = vsel %vm265, %v2205, 0
      %v2285 = vsel %vm265, %v2206, 0
      %v2288 = vsel %vm265, %v2207, 0
      %v2291 = vsel %vm265, %v2208, 0
      %v2294 = vsel %vm265, %v2209, 0
      %v2297 = vsel %vm265, %v2210, 0
      %v2300 = vsel %vm265, %v2211, 0
      %v2303 = vsel %vm265, %v2212, 0
      %v2306 = vsel %vm265, %v2213, 0
      %v2309 = vsel %vm265, %v2214, 0
      %v2312 = vsel %vm265, %v2215, 0
      %v2315 = vsel %vm362, %v2217, 0
      %2317 = vmatprep.subr.mxu0 0.0
      %2318 = vmatpush1.msra.mxu0 0.0
      %2319 = vmatprep.subr.mxu0 0.0
      %2320 = vmatpush1.msra.mxu0 0.0
      %2321 = vmatprep.subr.mxu0 0.0
      %2322 = vmatpush1.msra.mxu0 0.0
      %2323 = vmatprep.subr.mxu0 0.0
      %2324 = vmatpush1.msra.mxu0 0.0
      %2325 = vmatprep.subr.mxu0 0.0
      %2326 = vmatpush1.msra.mxu0 0.0
      %2327 = vmatprep.subr.mxu0 0.0
      %2328 = vmatpush1.msra.mxu0 0.0
      %2329 = vmatprep.subr.mxu0 0.0
      %2330 = vmatpush1.msra.mxu0 0.0
      %2331 = vmatprep.subr.mxu0 0.0
      %2332 = vmatpush1.msra.mxu0 0.0
      %2333 = vmatprep.subr.mxu0 0.0
      %2334 = vmatpush1.msra.mxu0 0.0
      %2335 = vmatprep.subr.mxu0 0.0
      %2336 = vmatpush1.msra.mxu0 0.0
      %2337 = vmatprep.subr.mxu0 0.0
      %2338 = vmatpush1.msra.mxu0 0.0
      %2339 = vmatprep.subr.mxu0 0.0
      %2340 = vmatpush1.msra.mxu0 0.0
      %2341 = vmatprep.subr.mxu0 0.0
      %2342 = vmatpush1.msra.mxu0 0.0
      %2343 = vmatprep.subr.mxu0 0.0
      %2344 = vmatpush1.msra.mxu0 0.0
      %2345 = vmatprep.subr.mxu0 0.0
      %2346 = vmatpush1.msra.mxu0 0.0
      %2347 = vmatprep.subr.mxu0 0.0
      %2348 = vmatpush1.msra.mxu0 %v2315
      %2349 = vmatprep.subr.mxu0 0.0
      %2350 = vmatpush2.msra.mxu0 0.0
      %2351 = vmatprep.subr.mxu0 0.0
      %2352 = vmatpush2.msra.mxu0 0.0
      %2353 = vmatprep.subr.mxu0 0.0
      %2354 = vmatpush2.msra.mxu0 0.0
      %2355 = vmatprep.subr.mxu0 0.0
      %2356 = vmatpush2.msra.mxu0 0.0
      %2357 = vmatprep.subr.mxu0 0.0
      %2358 = vmatpush2.msra.mxu0 0.0
      %2359 = vmatprep.subr.mxu0 0.0
      %2360 = vmatpush2.msra.mxu0 0.0
      %2361 = vmatprep.subr.mxu0 0.0
      %2362 = vmatpush2.msra.mxu0 0.0
      %2363 = vmatprep.subr.mxu0 0.0
      %2364 = vmatpush2.msra.mxu0 0.0
      %2365 = vmatprep.subr.mxu0 0.0
      %2366 = vmatpush2.msra.mxu0 0.0
      %2367 = vmatprep.subr.mxu0 0.0
      %2368 = vmatpush2.msra.mxu0 0.0
      %2369 = vmatprep.subr.mxu0 0.0
      %2370 = vmatpush2.msra.mxu0 0.0
      %2371 = vmatprep.subr.mxu0 0.0
      %2372 = vmatpush2.msra.mxu0 0.0
      %2373 = vmatprep.subr.mxu0 0.0
      %2374 = vmatpush2.msra.mxu0 0.0
      %2375 = vmatprep.subr.mxu0 0.0
      %2376 = vmatpush2.msra.mxu0 0.0
      %2377 = vmatprep.subr.mxu0 0.0
      %2378 = vmatpush2.msra.mxu0 0.0
      %2379 = vmatprep.subr.mxu0 0.0
      %2380 = vmatpush2.msra.mxu0 0.0
      %2381 = vmatprep.mubr.f32.mxu0 0.0
      %2382 = vmatmul.mubr.f32.gmra.mxu0 %v2219
      %v2383 = vpop.f32.mrf.mxu0
      %v2384 = vadd.f32 0.0, %v2383
      %v2385 = vpop.f32.mrf.mxu0
      %2386 = vmatprep.mubr.f32.mxu0 0.0
      %2387 = vmatmul.mubr.f32.gmra.mxu0 %v2222
      %v2388 = vpop.f32.mrf.mxu0
      %v2389 = vadd.f32 0.0, %v2388
      %v2390 = vpop.f32.mrf.mxu0
      %2391 = vmatprep.mubr.f32.mxu0 0.0
      %2392 = vmatmul.mubr.f32.gmra.mxu0 %v2225
      %v2393 = vpop.f32.mrf.mxu0
      %v2394 = vadd.f32 0.0, %v2393
      %v2395 = vpop.f32.mrf.mxu0
      %2396 = vmatprep.mubr.f32.mxu0 0.0
      %2397 = vmatmul.mubr.f32.gmra.mxu0 %v2228
      %v2398 = vpop.f32.mrf.mxu0
      %v2399 = vadd.f32 0.0, %v2398
      %v2400 = vpop.f32.mrf.mxu0
      %2401 = vmatprep.mubr.f32.mxu0 0.0
      %2402 = vmatmul.mubr.f32.gmra.mxu0 %v2231
      %v2403 = vpop.f32.mrf.mxu0
      %v2404 = vadd.f32 0.0, %v2403
      %v2405 = vpop.f32.mrf.mxu0
      %2406 = vmatprep.mubr.f32.mxu0 0.0
      %2407 = vmatmul.mubr.f32.gmra.mxu0 %v2234
      %v2408 = vpop.f32.mrf.mxu0
      %v2409 = vadd.f32 0.0, %v2408
      %v2410 = vpop.f32.mrf.mxu0
      %2411 = vmatprep.mubr.f32.mxu0 0.0
      %2412 = vmatmul.mubr.f32.gmra.mxu0 %v2237
      %v2413 = vpop.f32.mrf.mxu0
      %v2414 = vadd.f32 0.0, %v2413
      %v2415 = vpop.f32.mrf.mxu0
      %2416 = vmatprep.mubr.f32.mxu0 0.0
      %2417 = vmatmul.mubr.f32.gmra.mxu0 %v2240
      %v2418 = vpop.f32.mrf.mxu0
      %v2419 = vadd.f32 0.0, %v2418
      %v2420 = vpop.f32.mrf.mxu0
      %2421 = vmatprep.mubr.f32.mxu0 0.0
      %2422 = vmatmul.mubr.f32.gmra.mxu0 %v2243
      %v2423 = vpop.f32.mrf.mxu0
      %v2424 = vadd.f32 0.0, %v2423
      %v2425 = vpop.f32.mrf.mxu0
      %2426 = vmatprep.mubr.f32.mxu0 0.0
      %2427 = vmatmul.mubr.f32.gmra.mxu0 %v2246
      %v2428 = vpop.f32.mrf.mxu0
      %v2429 = vadd.f32 0.0, %v2428
      %v2430 = vpop.f32.mrf.mxu0
      %2431 = vmatprep.mubr.f32.mxu0 0.0
      %2432 = vmatmul.mubr.f32.gmra.mxu0 %v2249
      %v2433 = vpop.f32.mrf.mxu0
      %v2434 = vadd.f32 0.0, %v2433
      %v2435 = vpop.f32.mrf.mxu0
      %2436 = vmatprep.mubr.f32.mxu0 0.0
      %2437 = vmatmul.mubr.f32.gmra.mxu0 %v2252
      %v2438 = vpop.f32.mrf.mxu0
      %v2439 = vadd.f32 0.0, %v2438
      %v2440 = vpop.f32.mrf.mxu0
      %2441 = vmatprep.mubr.f32.mxu0 0.0
      %2442 = vmatmul.mubr.f32.gmra.mxu0 %v2255
      %v2443 = vpop.f32.mrf.mxu0
      %v2444 = vadd.f32 0.0, %v2443
      %v2445 = vpop.f32.mrf.mxu0
      %2446 = vmatprep.mubr.f32.mxu0 0.0
      %2447 = vmatmul.mubr.f32.gmra.mxu0 %v2258
      %v2448 = vpop.f32.mrf.mxu0
      %v2449 = vadd.f32 0.0, %v2448
      %v2450 = vpop.f32.mrf.mxu0
      %2451 = vmatprep.mubr.f32.mxu0 0.0
      %2452 = vmatmul.mubr.f32.gmra.mxu0 %v2261
      %v2453 = vpop.f32.mrf.mxu0
      %v2454 = vadd.f32 0.0, %v2453
      %v2455 = vpop.f32.mrf.mxu0
      %2456 = vmatprep.mubr.f32.mxu0 0.0
      %2457 = vmatmul.mubr.f32.gmra.mxu0 %v2264
      %v2458 = vpop.f32.mrf.mxu0
      %v2459 = vadd.f32 0.0, %v2458
      %v2460 = vpop.f32.mrf.mxu0
      %2461 = vmatprep.mubr.f32.mxu0 0.0
      %2462 = vmatmul.mubr.f32.gmra.mxu0 %v2267
      %v2463 = vpop.f32.mrf.mxu0
      %v2464 = vadd.f32 0.0, %v2463
      %v2465 = vpop.f32.mrf.mxu0
      %2466 = vmatprep.mubr.f32.mxu0 0.0
      %2467 = vmatmul.mubr.f32.gmra.mxu0 %v2270
      %v2468 = vpop.f32.mrf.mxu0
      %v2469 = vadd.f32 0.0, %v2468
      %v2470 = vpop.f32.mrf.mxu0
      %2471 = vmatprep.mubr.f32.mxu0 0.0
      %2472 = vmatmul.mubr.f32.gmra.mxu0 %v2273
      %v2473 = vpop.f32.mrf.mxu0
      %v2474 = vadd.f32 0.0, %v2473
      %v2475 = vpop.f32.mrf.mxu0
      %2476 = vmatprep.mubr.f32.mxu0 0.0
      %2477 = vmatmul.mubr.f32.gmra.mxu0 %v2276
      %v2478 = vpop.f32.mrf.mxu0
      %v2479 = vadd.f32 0.0, %v2478
      %v2480 = vpop.f32.mrf.mxu0
      %2481 = vmatprep.mubr.f32.mxu0 0.0
      %2482 = vmatmul.mubr.f32.gmra.mxu0 %v2279
      %v2483 = vpop.f32.mrf.mxu0
      %v2484 = vadd.f32 0.0, %v2483
      %v2485 = vpop.f32.mrf.mxu0
      %2486 = vmatprep.mubr.f32.mxu0 0.0
      %2487 = vmatmul.mubr.f32.gmra.mxu0 %v2282
      %v2488 = vpop.f32.mrf.mxu0
      %v2489 = vadd.f32 0.0, %v2488
      %v2490 = vpop.f32.mrf.mxu0
      %2491 = vmatprep.mubr.f32.mxu0 0.0
      %2492 = vmatmul.mubr.f32.gmra.mxu0 %v2285
      %v2493 = vpop.f32.mrf.mxu0
      %v2494 = vadd.f32 0.0, %v2493
      %v2495 = vpop.f32.mrf.mxu0
      %2496 = vmatprep.mubr.f32.mxu0 0.0
      %2497 = vmatmul.mubr.f32.gmra.mxu0 %v2288
      %v2498 = vpop.f32.mrf.mxu0
      %v2499 = vadd.f32 0.0, %v2498
      %v2500 = vpop.f32.mrf.mxu0
      %2501 = vmatprep.mubr.f32.mxu0 0.0
      %2502 = vmatmul.mubr.f32.gmra.mxu0 %v2291
      %v2503 = vpop.f32.mrf.mxu0
      %v2504 = vadd.f32 0.0, %v2503
      %v2505 = vpop.f32.mrf.mxu0
      %2506 = vmatprep.mubr.f32.mxu0 0.0
      %2507 = vmatmul.mubr.f32.gmra.mxu0 %v2294
      %v2508 = vpop.f32.mrf.mxu0
      %v2509 = vadd.f32 0.0, %v2508
      %v2510 = vpop.f32.mrf.mxu0
      %2511 = vmatprep.mubr.f32.mxu0 0.0
      %2512 = vmatmul.mubr.f32.gmra.mxu0 %v2297
      %v2513 = vpop.f32.mrf.mxu0
      %v2514 = vadd.f32 0.0, %v2513
      %v2515 = vpop.f32.mrf.mxu0
      %2516 = vmatprep.mubr.f32.mxu0 0.0
      %2517 = vmatmul.mubr.f32.gmra.mxu0 %v2300
      %v2518 = vpop.f32.mrf.mxu0
      %v2519 = vadd.f32 0.0, %v2518
      %v2520 = vpop.f32.mrf.mxu0
      %2521 = vmatprep.mubr.f32.mxu0 0.0
      %2522 = vmatmul.mubr.f32.gmra.mxu0 %v2303
      %v2523 = vpop.f32.mrf.mxu0
      %v2524 = vadd.f32 0.0, %v2523
      %v2525 = vpop.f32.mrf.mxu0
      %2526 = vmatprep.mubr.f32.mxu0 0.0
      %2527 = vmatmul.mubr.f32.gmra.mxu0 %v2306
      %v2528 = vpop.f32.mrf.mxu0
      %v2529 = vadd.f32 0.0, %v2528
      %v2530 = vpop.f32.mrf.mxu0
      %2531 = vmatprep.mubr.f32.mxu0 0.0
      %2532 = vmatmul.mubr.f32.gmra.mxu0 %v2309
      %v2533 = vpop.f32.mrf.mxu0
      %v2534 = vadd.f32 0.0, %v2533
      %v2535 = vpop.f32.mrf.mxu0
      %2536 = vmatprep.mubr.f32.mxu0 0.0
      %2537 = vmatmul.mubr.f32.gmra.mxu0 %v2312
      %v2538 = vpop.f32.mrf.mxu0
      %v2539 = vadd.f32 0.0, %v2538
      %v2540 = vpop.f32.mrf.mxu0
      %2541 = vdwg.mxu0
      %v2542 = vadd.f32 %v2152, %v2384
      %v2543 = vadd.f32 %v2153, %v2389
      %v2544 = vadd.f32 %v2154, %v2394
      %v2545 = vadd.f32 %v2155, %v2399
      %v2546 = vadd.f32 %v2156, %v2404
      %v2547 = vadd.f32 %v2157, %v2409
      %v2548 = vadd.f32 %v2158, %v2414
      %v2549 = vadd.f32 %v2159, %v2419
      %v2550 = vadd.f32 %v2160, %v2424
      %v2551 = vadd.f32 %v2161, %v2429
      %v2552 = vadd.f32 %v2162, %v2434
      %v2553 = vadd.f32 %v2163, %v2439
      %v2554 = vadd.f32 %v2164, %v2444
      %v2555 = vadd.f32 %v2165, %v2449
      %v2556 = vadd.f32 %v2166, %v2454
      %v2557 = vadd.f32 %v2167, %v2459
      %v2558 = vadd.f32 %v2168, %v2464
      %v2559 = vadd.f32 %v2169, %v2469
      %v2560 = vadd.f32 %v2170, %v2474
      %v2561 = vadd.f32 %v2171, %v2479
      %v2562 = vadd.f32 %v2172, %v2484
      %v2563 = vadd.f32 %v2173, %v2489
      %v2564 = vadd.f32 %v2174, %v2494
      %v2565 = vadd.f32 %v2175, %v2499
      %v2566 = vadd.f32 %v2176, %v2504
      %v2567 = vadd.f32 %v2177, %v2509
      %v2568 = vadd.f32 %v2178, %v2514
      %v2569 = vadd.f32 %v2179, %v2519
      %v2570 = vadd.f32 %v2180, %v2524
      %v2571 = vadd.f32 %v2181, %v2529
      %v2572 = vadd.f32 %v2182, %v2534
      %v2573 = vadd.f32 %v2183, %v2539
      %v2574 = vxor.u32 %v2542, 2147483648
      %v2575 = vxor.u32 %v2543, 2147483648
      %v2576 = vxor.u32 %v2544, 2147483648
      %v2577 = vxor.u32 %v2545, 2147483648
      %v2578 = vxor.u32 %v2546, 2147483648
      %v2579 = vxor.u32 %v2547, 2147483648
      %v2580 = vxor.u32 %v2548, 2147483648
      %v2581 = vxor.u32 %v2549, 2147483648
      %v2582 = vxor.u32 %v2550, 2147483648
      %v2583 = vxor.u32 %v2551, 2147483648
      %v2584 = vxor.u32 %v2552, 2147483648
      %v2585 = vxor.u32 %v2553, 2147483648
      %v2586 = vxor.u32 %v2554, 2147483648
      %v2587 = vxor.u32 %v2555, 2147483648
      %v2588 = vxor.u32 %v2556, 2147483648
      %v2589 = vxor.u32 %v2557, 2147483648
      %v2590 = vxor.u32 %v2558, 2147483648
      %v2591 = vxor.u32 %v2559, 2147483648
      %v2592 = vxor.u32 %v2560, 2147483648
      %v2593 = vxor.u32 %v2561, 2147483648
      %v2594 = vxor.u32 %v2562, 2147483648
      %v2595 = vxor.u32 %v2563, 2147483648
      %v2596 = vxor.u32 %v2564, 2147483648
      %v2597 = vxor.u32 %v2565, 2147483648
      %v2598 = vxor.u32 %v2566, 2147483648
      %v2599 = vxor.u32 %v2567, 2147483648
      %v2600 = vxor.u32 %v2568, 2147483648
      %v2601 = vxor.u32 %v2569, 2147483648
      %v2602 = vxor.u32 %v2570, 2147483648
      %v2603 = vxor.u32 %v2571, 2147483648
      %v2604 = vxor.u32 %v2572, 2147483648
      %v2605 = vxor.u32 %v2573, 2147483648
      %v2606 = vmul.f32 %v2574, 1.442695
      %v2607 = vpow.pop %v2606
      %v2608 = vmul.f32 %v2575, 1.442695
      %v2609 = vpow.pop %v2608
      %v2610 = vmul.f32 %v2576, 1.442695
      %v2611 = vpow.pop %v2610
      %v2612 = vmul.f32 %v2577, 1.442695
      %v2613 = vpow.pop %v2612
      %v2614 = vmul.f32 %v2578, 1.442695
      %v2615 = vpow.pop %v2614
      %v2616 = vmul.f32 %v2579, 1.442695
      %v2617 = vpow.pop %v2616
      %v2618 = vmul.f32 %v2580, 1.442695
      %v2619 = vpow.pop %v2618
      %v2620 = vmul.f32 %v2581, 1.442695
      %v2621 = vpow.pop %v2620
      %v2622 = vmul.f32 %v2582, 1.442695
      %v2623 = vpow.pop %v2622
      %v2624 = vmul.f32 %v2583, 1.442695
      %v2625 = vpow.pop %v2624
      %v2626 = vmul.f32 %v2584, 1.442695
      %v2627 = vpow.pop %v2626
      %v2628 = vmul.f32 %v2585, 1.442695
      %v2629 = vpow.pop %v2628
      %v2630 = vmul.f32 %v2586, 1.442695
      %v2631 = vpow.pop %v2630
      %v2632 = vmul.f32 %v2587, 1.442695
      %v2633 = vpow.pop %v2632
      %v2634 = vmul.f32 %v2588, 1.442695
      %v2635 = vpow.pop %v2634
      %v2636 = vmul.f32 %v2589, 1.442695
      %v2637 = vpow.pop %v2636
      %v2638 = vmul.f32 %v2590, 1.442695
      %v2639 = vpow.pop %v2638
      %v2640 = vmul.f32 %v2591, 1.442695
      %v2641 = vpow.pop %v2640
      %v2642 = vmul.f32 %v2592, 1.442695
      %v2643 = vpow.pop %v2642
      %v2644 = vmul.f32 %v2593, 1.442695
      %v2645 = vpow.pop %v2644
      %v2646 = vmul.f32 %v2594, 1.442695
      %v2647 = vpow.pop %v2646
      %v2648 = vmul.f32 %v2595, 1.442695
      %v2649 = vpow.pop %v2648
      %v2650 = vmul.f32 %v2596, 1.442695
      %v2651 = vpow.pop %v2650
      %v2652 = vmul.f32 %v2597, 1.442695
      %v2653 = vpow.pop %v2652
      %v2654 = vmul.f32 %v2598, 1.442695
      %v2655 = vpow.pop %v2654
      %v2656 = vmul.f32 %v2599, 1.442695
      %v2657 = vpow.pop %v2656
      %v2658 = vmul.f32 %v2600, 1.442695
      %v2659 = vpow.pop %v2658
      %v2660 = vmul.f32 %v2601, 1.442695
      %v2661 = vpow.pop %v2660
      %v2662 = vmul.f32 %v2602, 1.442695
      %v2663 = vpow.pop %v2662
      %v2664 = vmul.f32 %v2603, 1.442695
      %v2665 = vpow.pop %v2664
      %v2666 = vmul.f32 %v2604, 1.442695
      %v2667 = vpow.pop %v2666
      %v2668 = vmul.f32 %v2605, 1.442695
      %v2669 = vpow.pop %v2668
      %v2670 = vadd.f32 %v2607, 1.0
      %v2671 = vadd.f32 %v2609, 1.0
      %v2672 = vadd.f32 %v2611, 1.0
      %v2673 = vadd.f32 %v2613, 1.0
      %v2674 = vadd.f32 %v2615, 1.0
      %v2675 = vadd.f32 %v2617, 1.0
      %v2676 = vadd.f32 %v2619, 1.0
      %v2677 = vadd.f32 %v2621, 1.0
      %v2678 = vadd.f32 %v2623, 1.0
      %v2679 = vadd.f32 %v2625, 1.0
      %v2680 = vadd.f32 %v2627, 1.0
      %v2681 = vadd.f32 %v2629, 1.0
      %v2682 = vadd.f32 %v2631, 1.0
      %v2683 = vadd.f32 %v2633, 1.0
      %v2684 = vadd.f32 %v2635, 1.0
      %v2685 = vadd.f32 %v2637, 1.0
      %v2686 = vadd.f32 %v2639, 1.0
      %v2687 = vadd.f32 %v2641, 1.0
      %v2688 = vadd.f32 %v2643, 1.0
      %v2689 = vadd.f32 %v2645, 1.0
      %v2690 = vadd.f32 %v2647, 1.0
      %v2691 = vadd.f32 %v2649, 1.0
      %v2692 = vadd.f32 %v2651, 1.0
      %v2693 = vadd.f32 %v2653, 1.0
      %v2694 = vadd.f32 %v2655, 1.0
      %v2695 = vadd.f32 %v2657, 1.0
      %v2696 = vadd.f32 %v2659, 1.0
      %v2697 = vadd.f32 %v2661, 1.0
      %v2698 = vadd.f32 %v2663, 1.0
      %v2699 = vadd.f32 %v2665, 1.0
      %v2700 = vadd.f32 %v2667, 1.0
      %v2701 = vadd.f32 %v2669, 1.0
      %v2702 = vrcp.pop %v2670
      %v2703 = vmul.f32 1.0, %v2702
      %v2704 = vrcp.pop %v2671
      %v2705 = vmul.f32 1.0, %v2704
      %v2706 = vrcp.pop %v2672
      %v2707 = vmul.f32 1.0, %v2706
      %v2708 = vrcp.pop %v2673
      %v2709 = vmul.f32 1.0, %v2708
      %v2710 = vrcp.pop %v2674
      %v2711 = vmul.f32 1.0, %v2710
      %v2712 = vrcp.pop %v2675
      %v2713 = vmul.f32 1.0, %v2712
      %v2714 = vrcp.pop %v2676
      %v2715 = vmul.f32 1.0, %v2714
      %v2716 = vrcp.pop %v2677
      %v2717 = vmul.f32 1.0, %v2716
      %v2718 = vrcp.pop %v2678
      %v2719 = vmul.f32 1.0, %v2718
      %v2720 = vrcp.pop %v2679
      %v2721 = vmul.f32 1.0, %v2720
      %v2722 = vrcp.pop %v2680
      %v2723 = vmul.f32 1.0, %v2722
      %v2724 = vrcp.pop %v2681
      %v2725 = vmul.f32 1.0, %v2724
      %v2726 = vrcp.pop %v2682
      %v2727 = vmul.f32 1.0, %v2726
      %v2728 = vrcp.pop %v2683
      %v2729 = vmul.f32 1.0, %v2728
      %v2730 = vrcp.pop %v2684
      %v2731 = vmul.f32 1.0, %v2730
      %v2732 = vrcp.pop %v2685
      %v2733 = vmul.f32 1.0, %v2732
      %v2734 = vrcp.pop %v2686
      %v2735 = vmul.f32 1.0, %v2734
      %v2736 = vrcp.pop %v2687
      %v2737 = vmul.f32 1.0, %v2736
      %v2738 = vrcp.pop %v2688
      %v2739 = vmul.f32 1.0, %v2738
      %v2740 = vrcp.pop %v2689
      %v2741 = vmul.f32 1.0, %v2740
      %v2742 = vrcp.pop %v2690
      %v2743 = vmul.f32 1.0, %v2742
      %v2744 = vrcp.pop %v2691
      %v2745 = vmul.f32 1.0, %v2744
      %v2746 = vrcp.pop %v2692
      %v2747 = vmul.f32 1.0, %v2746
      %v2748 = vrcp.pop %v2693
      %v2749 = vmul.f32 1.0, %v2748
      %v2750 = vrcp.pop %v2694
      %v2751 = vmul.f32 1.0, %v2750
      %v2752 = vrcp.pop %v2695
      %v2753 = vmul.f32 1.0, %v2752
      %v2754 = vrcp.pop %v2696
      %v2755 = vmul.f32 1.0, %v2754
      %v2756 = vrcp.pop %v2697
      %v2757 = vmul.f32 1.0, %v2756
      %v2758 = vrcp.pop %v2698
      %v2759 = vmul.f32 1.0, %v2758
      %v2760 = vrcp.pop %v2699
      %v2761 = vmul.f32 1.0, %v2760
      %v2762 = vrcp.pop %v2700
      %v2763 = vmul.f32 1.0, %v2762
      %v2764 = vrcp.pop %v2701
      %v2765 = vmul.f32 1.0, %v2764
      %2798 = vrot.lane.b32.xlu0 %v2703, 4
      %v2799 = vpop.permute.xlu0 %2798
      %2800 = vrot.lane.b32.xlu0 %v2705, 4
      %v2801 = vpop.permute.xlu0 %2800
      %2802 = vrot.lane.b32.xlu0 %v2707, 4
      %v2803 = vpop.permute.xlu0 %2802
      %2804 = vrot.lane.b32.xlu0 %v2709, 4
      %v2805 = vpop.permute.xlu0 %2804
      %2806 = vrot.lane.b32.xlu0 %v2711, 4
      %v2807 = vpop.permute.xlu0 %2806
      %2808 = vrot.lane.b32.xlu0 %v2713, 4
      %v2809 = vpop.permute.xlu0 %2808
      %2810 = vrot.lane.b32.xlu0 %v2715, 4
      %v2811 = vpop.permute.xlu0 %2810
      %2812 = vrot.lane.b32.xlu0 %v2717, 4
      %v2813 = vpop.permute.xlu0 %2812
      %2814 = vrot.lane.b32.xlu0 %v2719, 4
      %v2815 = vpop.permute.xlu0 %2814
      %2816 = vrot.lane.b32.xlu0 %v2721, 4
      %v2817 = vpop.permute.xlu0 %2816
      %2818 = vrot.lane.b32.xlu0 %v2723, 4
      %v2819 = vpop.permute.xlu0 %2818
      %2820 = vrot.lane.b32.xlu0 %v2725, 4
      %v2821 = vpop.permute.xlu0 %2820
      %2822 = vrot.lane.b32.xlu0 %v2727, 4
      %v2823 = vpop.permute.xlu0 %2822
      %2824 = vrot.lane.b32.xlu0 %v2729, 4
      %v2825 = vpop.permute.xlu0 %2824
      %2826 = vrot.lane.b32.xlu0 %v2731, 4
      %v2827 = vpop.permute.xlu0 %2826
      %2828 = vrot.lane.b32.xlu0 %v2733, 4
      %v2829 = vpop.permute.xlu0 %2828
      %2830 = vrot.lane.b32.xlu0 %v2735, 4
      %v2831 = vpop.permute.xlu0 %2830
      %2832 = vrot.lane.b32.xlu0 %v2737, 4
      %v2833 = vpop.permute.xlu0 %2832
      %2834 = vrot.lane.b32.xlu0 %v2739, 4
      %v2835 = vpop.permute.xlu0 %2834
      %2836 = vrot.lane.b32.xlu0 %v2741, 4
      %v2837 = vpop.permute.xlu0 %2836
      %2838 = vrot.lane.b32.xlu0 %v2743, 4
      %v2839 = vpop.permute.xlu0 %2838
      %2840 = vrot.lane.b32.xlu0 %v2745, 4
      %v2841 = vpop.permute.xlu0 %2840
      %2842 = vrot.lane.b32.xlu0 %v2747, 4
      %v2843 = vpop.permute.xlu0 %2842
      %2844 = vrot.lane.b32.xlu0 %v2749, 4
      %v2845 = vpop.permute.xlu0 %2844
      %2846 = vrot.lane.b32.xlu0 %v2751, 4
      %v2847 = vpop.permute.xlu0 %2846
      %2848 = vrot.lane.b32.xlu0 %v2753, 4
      %v2849 = vpop.permute.xlu0 %2848
      %2850 = vrot.lane.b32.xlu0 %v2755, 4
      %v2851 = vpop.permute.xlu0 %2850
      %2852 = vrot.lane.b32.xlu0 %v2757, 4
      %v2853 = vpop.permute.xlu0 %2852
      %2854 = vrot.lane.b32.xlu0 %v2759, 4
      %v2855 = vpop.permute.xlu0 %2854
      %2856 = vrot.lane.b32.xlu0 %v2761, 4
      %v2857 = vpop.permute.xlu0 %2856
      %2858 = vrot.lane.b32.xlu0 %v2763, 4
      %v2859 = vpop.permute.xlu0 %2858
      %2860 = vrot.lane.b32.xlu0 %v2765, 4
      %v2861 = vpop.permute.xlu0 %2860
      %v2894 = vmul.f32 %v2542, %v2799
      %v2895 = vmul.f32 %v2543, %v2801
      %v2896 = vmul.f32 %v2544, %v2803
      %v2897 = vmul.f32 %v2545, %v2805
      %v2898 = vmul.f32 %v2546, %v2807
      %v2899 = vmul.f32 %v2547, %v2809
      %v2900 = vmul.f32 %v2548, %v2811
      %v2901 = vmul.f32 %v2549, %v2813
      %v2902 = vmul.f32 %v2550, %v2815
      %v2903 = vmul.f32 %v2551, %v2817
      %v2904 = vmul.f32 %v2552, %v2819
      %v2905 = vmul.f32 %v2553, %v2821
      %v2906 = vmul.f32 %v2554, %v2823
      %v2907 = vmul.f32 %v2555, %v2825
      %v2908 = vmul.f32 %v2556, %v2827
      %v2909 = vmul.f32 %v2557, %v2829
      %v2910 = vmul.f32 %v2558, %v2831
      %v2911 = vmul.f32 %v2559, %v2833
      %v2912 = vmul.f32 %v2560, %v2835
      %v2913 = vmul.f32 %v2561, %v2837
      %v2914 = vmul.f32 %v2562, %v2839
      %v2915 = vmul.f32 %v2563, %v2841
      %v2916 = vmul.f32 %v2564, %v2843
      %v2917 = vmul.f32 %v2565, %v2845
      %v2918 = vmul.f32 %v2566, %v2847
      %v2919 = vmul.f32 %v2567, %v2849
      %v2920 = vmul.f32 %v2568, %v2851
      %v2921 = vmul.f32 %v2569, %v2853
      %v2922 = vmul.f32 %v2570, %v2855
      %v2923 = vmul.f32 %v2571, %v2857
      %v2924 = vmul.f32 %v2572, %v2859
      %v2925 = vmul.f32 %v2573, %v2861
      %2958 = vrot.lane.b32.xlu0 %v2894, 124
      %v2959 = vpop.permute.xlu0 %2958
      %2960 = vrot.lane.b32.xlu0 %v2895, 124
      %v2961 = vpop.permute.xlu0 %2960
      %2962 = vrot.lane.b32.xlu0 %v2896, 124
      %v2963 = vpop.permute.xlu0 %2962
      %2964 = vrot.lane.b32.xlu0 %v2897, 124
      %v2965 = vpop.permute.xlu0 %2964
      %2966 = vrot.lane.b32.xlu0 %v2898, 124
      %v2967 = vpop.permute.xlu0 %2966
      %2968 = vrot.lane.b32.xlu0 %v2899, 124
      %v2969 = vpop.permute.xlu0 %2968
      %2970 = vrot.lane.b32.xlu0 %v2900, 124
      %v2971 = vpop.permute.xlu0 %2970
      %2972 = vrot.lane.b32.xlu0 %v2901, 124
      %v2973 = vpop.permute.xlu0 %2972
      %2974 = vrot.lane.b32.xlu0 %v2902, 124
      %v2975 = vpop.permute.xlu0 %2974
      %2976 = vrot.lane.b32.xlu0 %v2903, 124
      %v2977 = vpop.permute.xlu0 %2976
      %2978 = vrot.lane.b32.xlu0 %v2904, 124
      %v2979 = vpop.permute.xlu0 %2978
      %2980 = vrot.lane.b32.xlu0 %v2905, 124
      %v2981 = vpop.permute.xlu0 %2980
      %2982 = vrot.lane.b32.xlu0 %v2906, 124
      %v2983 = vpop.permute.xlu0 %2982
      %2984 = vrot.lane.b32.xlu0 %v2907, 124
      %v2985 = vpop.permute.xlu0 %2984
      %2986 = vrot.lane.b32.xlu0 %v2908, 124
      %v2987 = vpop.permute.xlu0 %2986
      %2988 = vrot.lane.b32.xlu0 %v2909, 124
      %v2989 = vpop.permute.xlu0 %2988
      %2990 = vrot.lane.b32.xlu0 %v2910, 124
      %v2991 = vpop.permute.xlu0 %2990
      %2992 = vrot.lane.b32.xlu0 %v2911, 124
      %v2993 = vpop.permute.xlu0 %2992
      %2994 = vrot.lane.b32.xlu0 %v2912, 124
      %v2995 = vpop.permute.xlu0 %2994
      %2996 = vrot.lane.b32.xlu0 %v2913, 124
      %v2997 = vpop.permute.xlu0 %2996
      %2998 = vrot.lane.b32.xlu0 %v2914, 124
      %v2999 = vpop.permute.xlu0 %2998
      %3000 = vrot.lane.b32.xlu0 %v2915, 124
      %v3001 = vpop.permute.xlu0 %3000
      %3002 = vrot.lane.b32.xlu0 %v2916, 124
      %v3003 = vpop.permute.xlu0 %3002
      %3004 = vrot.lane.b32.xlu0 %v2917, 124
      %v3005 = vpop.permute.xlu0 %3004
      %3006 = vrot.lane.b32.xlu0 %v2918, 124
      %v3007 = vpop.permute.xlu0 %3006
      %3008 = vrot.lane.b32.xlu0 %v2919, 124
      %v3009 = vpop.permute.xlu0 %3008
      %3010 = vrot.lane.b32.xlu0 %v2920, 124
      %v3011 = vpop.permute.xlu0 %3010
      %3012 = vrot.lane.b32.xlu0 %v2921, 124
      %v3013 = vpop.permute.xlu0 %3012
      %3014 = vrot.lane.b32.xlu0 %v2922, 124
      %v3015 = vpop.permute.xlu0 %3014
      %3016 = vrot.lane.b32.xlu0 %v2923, 124
      %v3017 = vpop.permute.xlu0 %3016
      %3018 = vrot.lane.b32.xlu0 %v2924, 124
      %v3019 = vpop.permute.xlu0 %3018
      %3020 = vrot.lane.b32.xlu0 %v2925, 124
      %v3021 = vpop.permute.xlu0 %3020
      %v3054 = vadd.f32 %v1794, %v2959
      %v3055 = vadd.f32 %v1795, %v2961
      %v3056 = vadd.f32 %v1796, %v2963
      %v3057 = vadd.f32 %v1797, %v2965
      %v3058 = vadd.f32 %v1798, %v2967
      %v3059 = vadd.f32 %v1799, %v2969
      %v3060 = vadd.f32 %v1800, %v2971
      %v3061 = vadd.f32 %v1801, %v2973
      %v3062 = vadd.f32 %v1802, %v2975
      %v3063 = vadd.f32 %v1803, %v2977
      %v3064 = vadd.f32 %v1804, %v2979
      %v3065 = vadd.f32 %v1805, %v2981
      %v3066 = vadd.f32 %v1806, %v2983
      %v3067 = vadd.f32 %v1807, %v2985
      %v3068 = vadd.f32 %v1808, %v2987
      %v3069 = vadd.f32 %v1809, %v2989
      %v3070 = vadd.f32 %v1810, %v2991
      %v3071 = vadd.f32 %v1811, %v2993
      %v3072 = vadd.f32 %v1812, %v2995
      %v3073 = vadd.f32 %v1813, %v2997
      %v3074 = vadd.f32 %v1814, %v2999
      %v3075 = vadd.f32 %v1815, %v3001
      %v3076 = vadd.f32 %v1816, %v3003
      %v3077 = vadd.f32 %v1817, %v3005
      %v3078 = vadd.f32 %v1818, %v3007
      %v3079 = vadd.f32 %v1819, %v3009
      %v3080 = vadd.f32 %v1820, %v3011
      %v3081 = vadd.f32 %v1821, %v3013
      %v3082 = vadd.f32 %v1822, %v3015
      %v3083 = vadd.f32 %v1823, %v3017
      %v3084 = vadd.f32 %v1824, %v3019
      %v3085 = vadd.f32 %v1825, %v3021
      %v3086 = vmax.f32 %v3054, 0.0
      %v3087 = vmax.f32 %v3055, 0.0
      %v3088 = vmax.f32 %v3056, 0.0
      %v3089 = vmax.f32 %v3057, 0.0
      %v3090 = vmax.f32 %v3058, 0.0
      %v3091 = vmax.f32 %v3059, 0.0
      %v3092 = vmax.f32 %v3060, 0.0
      %v3093 = vmax.f32 %v3061, 0.0
      %v3094 = vmax.f32 %v3062, 0.0
      %v3095 = vmax.f32 %v3063, 0.0
      %v3096 = vmax.f32 %v3064, 0.0
      %v3097 = vmax.f32 %v3065, 0.0
      %v3098 = vmax.f32 %v3066, 0.0
      %v3099 = vmax.f32 %v3067, 0.0
      %v3100 = vmax.f32 %v3068, 0.0
      %v3101 = vmax.f32 %v3069, 0.0
      %v3102 = vmax.f32 %v3070, 0.0
      %v3103 = vmax.f32 %v3071, 0.0
      %v3104 = vmax.f32 %v3072, 0.0
      %v3105 = vmax.f32 %v3073, 0.0
      %v3106 = vmax.f32 %v3074, 0.0
      %v3107 = vmax.f32 %v3075, 0.0
      %v3108 = vmax.f32 %v3076, 0.0
      %v3109 = vmax.f32 %v3077, 0.0
      %v3110 = vmax.f32 %v3078, 0.0
      %v3111 = vmax.f32 %v3079, 0.0
      %v3112 = vmax.f32 %v3080, 0.0
      %v3113 = vmax.f32 %v3081, 0.0
      %v3114 = vmax.f32 %v3082, 0.0
      %v3115 = vmax.f32 %v3083, 0.0
      %v3116 = vmax.f32 %v3084, 0.0
      %v3117 = vmax.f32 %v3085, 0.0
      %v3118 = vsel %vm265, %v3086, 0.0
      %3119 = vadd.xlane.f32.xlu0 %v3118
      %v3120 = vpop.xlane.xlu0 %3119
      %v3121 = vsel %vm265, %v3087, 0.0
      %3122 = vadd.xlane.f32.xlu0 %v3121
      %v3123 = vpop.xlane.xlu0 %3122
      %v3124 = vsel %vm265, %v3088, 0.0
      %3125 = vadd.xlane.f32.xlu0 %v3124
      %v3126 = vpop.xlane.xlu0 %3125
      %v3127 = vsel %vm265, %v3089, 0.0
      %3128 = vadd.xlane.f32.xlu0 %v3127
      %v3129 = vpop.xlane.xlu0 %3128
      %v3130 = vsel %vm265, %v3090, 0.0
      %3131 = vadd.xlane.f32.xlu0 %v3130
      %v3132 = vpop.xlane.xlu0 %3131
      %v3133 = vsel %vm265, %v3091, 0.0
      %3134 = vadd.xlane.f32.xlu0 %v3133
      %v3135 = vpop.xlane.xlu0 %3134
      %v3136 = vsel %vm265, %v3092, 0.0
      %3137 = vadd.xlane.f32.xlu0 %v3136
      %v3138 = vpop.xlane.xlu0 %3137
      %v3139 = vsel %vm265, %v3093, 0.0
      %3140 = vadd.xlane.f32.xlu0 %v3139
      %v3141 = vpop.xlane.xlu0 %3140
      %v3142 = vsel %vm265, %v3094, 0.0
      %3143 = vadd.xlane.f32.xlu0 %v3142
      %v3144 = vpop.xlane.xlu0 %3143
      %v3145 = vsel %vm265, %v3095, 0.0
      %3146 = vadd.xlane.f32.xlu0 %v3145
      %v3147 = vpop.xlane.xlu0 %3146
      %v3148 = vsel %vm265, %v3096, 0.0
      %3149 = vadd.xlane.f32.xlu0 %v3148
      %v3150 = vpop.xlane.xlu0 %3149
      %v3151 = vsel %vm265, %v3097, 0.0
      %3152 = vadd.xlane.f32.xlu0 %v3151
      %v3153 = vpop.xlane.xlu0 %3152
      %v3154 = vsel %vm265, %v3098, 0.0
      %3155 = vadd.xlane.f32.xlu0 %v3154
      %v3156 = vpop.xlane.xlu0 %3155
      %v3157 = vsel %vm265, %v3099, 0.0
      %3158 = vadd.xlane.f32.xlu0 %v3157
      %v3159 = vpop.xlane.xlu0 %3158
      %v3160 = vsel %vm265, %v3100, 0.0
      %3161 = vadd.xlane.f32.xlu0 %v3160
      %v3162 = vpop.xlane.xlu0 %3161
      %v3163 = vsel %vm265, %v3101, 0.0
      %3164 = vadd.xlane.f32.xlu0 %v3163
      %v3165 = vpop.xlane.xlu0 %3164
      %v3166 = vsel %vm265, %v3102, 0.0
      %3167 = vadd.xlane.f32.xlu0 %v3166
      %v3168 = vpop.xlane.xlu0 %3167
      %v3169 = vsel %vm265, %v3103, 0.0
      %3170 = vadd.xlane.f32.xlu0 %v3169
      %v3171 = vpop.xlane.xlu0 %3170
      %v3172 = vsel %vm265, %v3104, 0.0
      %3173 = vadd.xlane.f32.xlu0 %v3172
      %v3174 = vpop.xlane.xlu0 %3173
      %v3175 = vsel %vm265, %v3105, 0.0
      %3176 = vadd.xlane.f32.xlu0 %v3175
      %v3177 = vpop.xlane.xlu0 %3176
      %v3178 = vsel %vm265, %v3106, 0.0
      %3179 = vadd.xlane.f32.xlu0 %v3178
      %v3180 = vpop.xlane.xlu0 %3179
      %v3181 = vsel %vm265, %v3107, 0.0
      %3182 = vadd.xlane.f32.xlu0 %v3181
      %v3183 = vpop.xlane.xlu0 %3182
      %v3184 = vsel %vm265, %v3108, 0.0
      %3185 = vadd.xlane.f32.xlu0 %v3184
      %v3186 = vpop.xlane.xlu0 %3185
      %v3187 = vsel %vm265, %v3109, 0.0
      %3188 = vadd.xlane.f32.xlu0 %v3187
      %v3189 = vpop.xlane.xlu0 %3188
      %v3190 = vsel %vm265, %v3110, 0.0
      %3191 = vadd.xlane.f32.xlu0 %v3190
      %v3192 = vpop.xlane.xlu0 %3191
      %v3193 = vsel %vm265, %v3111, 0.0
      %3194 = vadd.xlane.f32.xlu0 %v3193
      %v3195 = vpop.xlane.xlu0 %3194
      %v3196 = vsel %vm265, %v3112, 0.0
      %3197 = vadd.xlane.f32.xlu0 %v3196
      %v3198 = vpop.xlane.xlu0 %3197
      %v3199 = vsel %vm265, %v3113, 0.0
      %3200 = vadd.xlane.f32.xlu0 %v3199
      %v3201 = vpop.xlane.xlu0 %3200
      %v3202 = vsel %vm265, %v3114, 0.0
      %3203 = vadd.xlane.f32.xlu0 %v3202
      %v3204 = vpop.xlane.xlu0 %3203
      %v3205 = vsel %vm265, %v3115, 0.0
      %3206 = vadd.xlane.f32.xlu0 %v3205
      %v3207 = vpop.xlane.xlu0 %3206
      %v3208 = vsel %vm265, %v3116, 0.0
      %3209 = vadd.xlane.f32.xlu0 %v3208
      %v3210 = vpop.xlane.xlu0 %3209
      %v3211 = vsel %vm265, %v3117, 0.0
      %3212 = vadd.xlane.f32.xlu0 %v3211
      %v3213 = vpop.xlane.xlu0 %3212
      %v3214 = vrcp.pop 4.0
      %v3215 = vmul.f32 %v3120, %v3214
      %v3216 = vmul.f32 %v3123, %v3214
      %v3217 = vmul.f32 %v3126, %v3214
      %v3218 = vmul.f32 %v3129, %v3214
      %v3219 = vmul.f32 %v3132, %v3214
      %v3220 = vmul.f32 %v3135, %v3214
      %v3221 = vmul.f32 %v3138, %v3214
      %v3222 = vmul.f32 %v3141, %v3214
      %v3223 = vmul.f32 %v3144, %v3214
      %v3224 = vmul.f32 %v3147, %v3214
      %v3225 = vmul.f32 %v3150, %v3214
      %v3226 = vmul.f32 %v3153, %v3214
      %v3227 = vmul.f32 %v3156, %v3214
      %v3228 = vmul.f32 %v3159, %v3214
      %v3229 = vmul.f32 %v3162, %v3214
      %v3230 = vmul.f32 %v3165, %v3214
      %v3231 = vmul.f32 %v3168, %v3214
      %v3232 = vmul.f32 %v3171, %v3214
      %v3233 = vmul.f32 %v3174, %v3214
      %v3234 = vmul.f32 %v3177, %v3214
      %v3235 = vmul.f32 %v3180, %v3214
      %v3236 = vmul.f32 %v3183, %v3214
      %v3237 = vmul.f32 %v3186, %v3214
      %v3238 = vmul.f32 %v3189, %v3214
      %v3239 = vmul.f32 %v3192, %v3214
      %v3240 = vmul.f32 %v3195, %v3214
      %v3241 = vmul.f32 %v3198, %v3214
      %v3242 = vmul.f32 %v3201, %v3214
      %v3243 = vmul.f32 %v3204, %v3214
      %v3244 = vmul.f32 %v3207, %v3214
      %v3245 = vmul.f32 %v3210, %v3214
      %v3246 = vmul.f32 %v3213, %v3214
      %v3247 = vsub.f32 %v3086, %v3215
      %v3248 = vsub.f32 %v3087, %v3216
      %v3249 = vsub.f32 %v3088, %v3217
      %v3250 = vsub.f32 %v3089, %v3218
      %v3251 = vsub.f32 %v3090, %v3219
      %v3252 = vsub.f32 %v3091, %v3220
      %v3253 = vsub.f32 %v3092, %v3221
      %v3254 = vsub.f32 %v3093, %v3222
      %v3255 = vsub.f32 %v3094, %v3223
      %v3256 = vsub.f32 %v3095, %v3224
      %v3257 = vsub.f32 %v3096, %v3225
      %v3258 = vsub.f32 %v3097, %v3226
      %v3259 = vsub.f32 %v3098, %v3227
      %v3260 = vsub.f32 %v3099, %v3228
      %v3261 = vsub.f32 %v3100, %v3229
      %v3262 = vsub.f32 %v3101, %v3230
      %v3263 = vsub.f32 %v3102, %v3231
      %v3264 = vsub.f32 %v3103, %v3232
      %v3265 = vsub.f32 %v3104, %v3233
      %v3266 = vsub.f32 %v3105, %v3234
      %v3267 = vsub.f32 %v3106, %v3235
      %v3268 = vsub.f32 %v3107, %v3236
      %v3269 = vsub.f32 %v3108, %v3237
      %v3270 = vsub.f32 %v3109, %v3238
      %v3271 = vsub.f32 %v3110, %v3239
      %v3272 = vsub.f32 %v3111, %v3240
      %v3273 = vsub.f32 %v3112, %v3241
      %v3274 = vsub.f32 %v3113, %v3242
      %v3275 = vsub.f32 %v3114, %v3243
      %v3276 = vsub.f32 %v3115, %v3244
      %v3277 = vsub.f32 %v3116, %v3245
      %v3278 = vsub.f32 %v3117, %v3246
      %v3279 = vmul.f32 %v3247, %v3247
      %v3280 = vmul.f32 %v3248, %v3248
      %v3281 = vmul.f32 %v3249, %v3249
      %v3282 = vmul.f32 %v3250, %v3250
      %v3283 = vmul.f32 %v3251, %v3251
      %v3284 = vmul.f32 %v3252, %v3252
      %v3285 = vmul.f32 %v3253, %v3253
      %v3286 = vmul.f32 %v3254, %v3254
      %v3287 = vmul.f32 %v3255, %v3255
      %v3288 = vmul.f32 %v3256, %v3256
      %v3289 = vmul.f32 %v3257, %v3257
      %v3290 = vmul.f32 %v3258, %v3258
      %v3291 = vmul.f32 %v3259, %v3259
      %v3292 = vmul.f32 %v3260, %v3260
      %v3293 = vmul.f32 %v3261, %v3261
      %v3294 = vmul.f32 %v3262, %v3262
      %v3295 = vmul.f32 %v3263, %v3263
      %v3296 = vmul.f32 %v3264, %v3264
      %v3297 = vmul.f32 %v3265, %v3265
      %v3298 = vmul.f32 %v3266, %v3266
      %v3299 = vmul.f32 %v3267, %v3267
      %v3300 = vmul.f32 %v3268, %v3268
      %v3301 = vmul.f32 %v3269, %v3269
      %v3302 = vmul.f32 %v3270, %v3270
      %v3303 = vmul.f32 %v3271, %v3271
      %v3304 = vmul.f32 %v3272, %v3272
      %v3305 = vmul.f32 %v3273, %v3273
      %v3306 = vmul.f32 %v3274, %v3274
      %v3307 = vmul.f32 %v3275, %v3275
      %v3308 = vmul.f32 %v3276, %v3276
      %v3309 = vmul.f32 %v3277, %v3277
      %v3310 = vmul.f32 %v3278, %v3278
      %v3311 = vsel %vm265, %v3279, 0.0
      %3312 = vadd.xlane.f32.xlu0 %v3311
      %v3313 = vpop.xlane.xlu0 %3312
      %v3314 = vsel %vm265, %v3280, 0.0
      %3315 = vadd.xlane.f32.xlu0 %v3314
      %v3316 = vpop.xlane.xlu0 %3315
      %v3317 = vsel %vm265, %v3281, 0.0
      %3318 = vadd.xlane.f32.xlu0 %v3317
      %v3319 = vpop.xlane.xlu0 %3318
      %v3320 = vsel %vm265, %v3282, 0.0
      %3321 = vadd.xlane.f32.xlu0 %v3320
      %v3322 = vpop.xlane.xlu0 %3321
      %v3323 = vsel %vm265, %v3283, 0.0
      %3324 = vadd.xlane.f32.xlu0 %v3323
      %v3325 = vpop.xlane.xlu0 %3324
      %v3326 = vsel %vm265, %v3284, 0.0
      %3327 = vadd.xlane.f32.xlu0 %v3326
      %v3328 = vpop.xlane.xlu0 %3327
      %v3329 = vsel %vm265, %v3285, 0.0
      %3330 = vadd.xlane.f32.xlu0 %v3329
      %v3331 = vpop.xlane.xlu0 %3330
      %v3332 = vsel %vm265, %v3286, 0.0
      %3333 = vadd.xlane.f32.xlu0 %v3332
      %v3334 = vpop.xlane.xlu0 %3333
      %v3335 = vsel %vm265, %v3287, 0.0
      %3336 = vadd.xlane.f32.xlu0 %v3335
      %v3337 = vpop.xlane.xlu0 %3336
      %v3338 = vsel %vm265, %v3288, 0.0
      %3339 = vadd.xlane.f32.xlu0 %v3338
      %v3340 = vpop.xlane.xlu0 %3339
      %v3341 = vsel %vm265, %v3289, 0.0
      %3342 = vadd.xlane.f32.xlu0 %v3341
      %v3343 = vpop.xlane.xlu0 %3342
      %v3344 = vsel %vm265, %v3290, 0.0
      %3345 = vadd.xlane.f32.xlu0 %v3344
      %v3346 = vpop.xlane.xlu0 %3345
      %v3347 = vsel %vm265, %v3291, 0.0
      %3348 = vadd.xlane.f32.xlu0 %v3347
      %v3349 = vpop.xlane.xlu0 %3348
      %v3350 = vsel %vm265, %v3292, 0.0
      %3351 = vadd.xlane.f32.xlu0 %v3350
      %v3352 = vpop.xlane.xlu0 %3351
      %v3353 = vsel %vm265, %v3293, 0.0
      %3354 = vadd.xlane.f32.xlu0 %v3353
      %v3355 = vpop.xlane.xlu0 %3354
      %v3356 = vsel %vm265, %v3294, 0.0
      %3357 = vadd.xlane.f32.xlu0 %v3356
      %v3358 = vpop.xlane.xlu0 %3357
      %v3359 = vsel %vm265, %v3295, 0.0
      %3360 = vadd.xlane.f32.xlu0 %v3359
      %v3361 = vpop.xlane.xlu0 %3360
      %v3362 = vsel %vm265, %v3296, 0.0
      %3363 = vadd.xlane.f32.xlu0 %v3362
      %v3364 = vpop.xlane.xlu0 %3363
      %v3365 = vsel %vm265, %v3297, 0.0
      %3366 = vadd.xlane.f32.xlu0 %v3365
      %v3367 = vpop.xlane.xlu0 %3366
      %v3368 = vsel %vm265, %v3298, 0.0
      %3369 = vadd.xlane.f32.xlu0 %v3368
      %v3370 = vpop.xlane.xlu0 %3369
      %v3371 = vsel %vm265, %v3299, 0.0
      %3372 = vadd.xlane.f32.xlu0 %v3371
      %v3373 = vpop.xlane.xlu0 %3372
      %v3374 = vsel %vm265, %v3300, 0.0
      %3375 = vadd.xlane.f32.xlu0 %v3374
      %v3376 = vpop.xlane.xlu0 %3375
      %v3377 = vsel %vm265, %v3301, 0.0
      %3378 = vadd.xlane.f32.xlu0 %v3377
      %v3379 = vpop.xlane.xlu0 %3378
      %v3380 = vsel %vm265, %v3302, 0.0
      %3381 = vadd.xlane.f32.xlu0 %v3380
      %v3382 = vpop.xlane.xlu0 %3381
      %v3383 = vsel %vm265, %v3303, 0.0
      %3384 = vadd.xlane.f32.xlu0 %v3383
      %v3385 = vpop.xlane.xlu0 %3384
      %v3386 = vsel %vm265, %v3304, 0.0
      %3387 = vadd.xlane.f32.xlu0 %v3386
      %v3388 = vpop.xlane.xlu0 %3387
      %v3389 = vsel %vm265, %v3305, 0.0
      %3390 = vadd.xlane.f32.xlu0 %v3389
      %v3391 = vpop.xlane.xlu0 %3390
      %v3392 = vsel %vm265, %v3306, 0.0
      %3393 = vadd.xlane.f32.xlu0 %v3392
      %v3394 = vpop.xlane.xlu0 %3393
      %v3395 = vsel %vm265, %v3307, 0.0
      %3396 = vadd.xlane.f32.xlu0 %v3395
      %v3397 = vpop.xlane.xlu0 %3396
      %v3398 = vsel %vm265, %v3308, 0.0
      %3399 = vadd.xlane.f32.xlu0 %v3398
      %v3400 = vpop.xlane.xlu0 %3399
      %v3401 = vsel %vm265, %v3309, 0.0
      %3402 = vadd.xlane.f32.xlu0 %v3401
      %v3403 = vpop.xlane.xlu0 %3402
      %v3404 = vsel %vm265, %v3310, 0.0
      %3405 = vadd.xlane.f32.xlu0 %v3404
      %v3406 = vpop.xlane.xlu0 %3405
      %v3407 = vmul.f32 %v3313, 0.33333334
      %v3408 = vmul.f32 %v3316, 0.33333334
      %v3409 = vmul.f32 %v3319, 0.33333334
      %v3410 = vmul.f32 %v3322, 0.33333334
      %v3411 = vmul.f32 %v3325, 0.33333334
      %v3412 = vmul.f32 %v3328, 0.33333334
      %v3413 = vmul.f32 %v3331, 0.33333334
      %v3414 = vmul.f32 %v3334, 0.33333334
      %v3415 = vmul.f32 %v3337, 0.33333334
      %v3416 = vmul.f32 %v3340, 0.33333334
      %v3417 = vmul.f32 %v3343, 0.33333334
      %v3418 = vmul.f32 %v3346, 0.33333334
      %v3419 = vmul.f32 %v3349, 0.33333334
      %v3420 = vmul.f32 %v3352, 0.33333334
      %v3421 = vmul.f32 %v3355, 0.33333334
      %v3422 = vmul.f32 %v3358, 0.33333334
      %v3423 = vmul.f32 %v3361, 0.33333334
      %v3424 = vmul.f32 %v3364, 0.33333334
      %v3425 = vmul.f32 %v3367, 0.33333334
      %v3426 = vmul.f32 %v3370, 0.33333334
      %v3427 = vmul.f32 %v3373, 0.33333334
      %v3428 = vmul.f32 %v3376, 0.33333334
      %v3429 = vmul.f32 %v3379, 0.33333334
      %v3430 = vmul.f32 %v3382, 0.33333334
      %v3431 = vmul.f32 %v3385, 0.33333334
      %v3432 = vmul.f32 %v3388, 0.33333334
      %v3433 = vmul.f32 %v3391, 0.33333334
      %v3434 = vmul.f32 %v3394, 0.33333334
      %v3435 = vmul.f32 %v3397, 0.33333334
      %v3436 = vmul.f32 %v3400, 0.33333334
      %v3437 = vmul.f32 %v3403, 0.33333334
      %v3438 = vmul.f32 %v3406, 0.33333334
      %v3439 = vrsqrt.pop %v3407
      %v3440 = vmul.f32 %v3407, %v3439
      %vm3441 = vcmp.eq.f32.partialorder %v3407, inf
      %v3442 = vsel %vm3441, %v3407, %v3440
      %vm3443 = vcmp.eq.f32.partialorder %v3407, 0.0
      %v3444 = vand.u32 %v3407, 2147483648
      %v3445 = vsel %vm3443, %v3444, %v3442
      %v3446 = vrsqrt.pop %v3408
      %v3447 = vmul.f32 %v3408, %v3446
      %vm3448 = vcmp.eq.f32.partialorder %v3408, inf
      %v3449 = vsel %vm3448, %v3408, %v3447
      %vm3450 = vcmp.eq.f32.partialorder %v3408, 0.0
      %v3451 = vand.u32 %v3408, 2147483648
      %v3452 = vsel %vm3450, %v3451, %v3449
      %v3453 = vrsqrt.pop %v3409
      %v3454 = vmul.f32 %v3409, %v3453
      %vm3455 = vcmp.eq.f32.partialorder %v3409, inf
      %v3456 = vsel %vm3455, %v3409, %v3454
      %vm3457 = vcmp.eq.f32.partialorder %v3409, 0.0
      %v3458 = vand.u32 %v3409, 2147483648
      %v3459 = vsel %vm3457, %v3458, %v3456
      %v3460 = vrsqrt.pop %v3410
      %v3461 = vmul.f32 %v3410, %v3460
      %vm3462 = vcmp.eq.f32.partialorder %v3410, inf
      %v3463 = vsel %vm3462, %v3410, %v3461
      %vm3464 = vcmp.eq.f32.partialorder %v3410, 0.0
      %v3465 = vand.u32 %v3410, 2147483648
      %v3466 = vsel %vm3464, %v3465, %v3463
      %v3467 = vrsqrt.pop %v3411
      %v3468 = vmul.f32 %v3411, %v3467
      %vm3469 = vcmp.eq.f32.partialorder %v3411, inf
      %v3470 = vsel %vm3469, %v3411, %v3468
      %vm3471 = vcmp.eq.f32.partialorder %v3411, 0.0
      %v3472 = vand.u32 %v3411, 2147483648
      %v3473 = vsel %vm3471, %v3472, %v3470
      %v3474 = vrsqrt.pop %v3412
      %v3475 = vmul.f32 %v3412, %v3474
      %vm3476 = vcmp.eq.f32.partialorder %v3412, inf
      %v3477 = vsel %vm3476, %v3412, %v3475
      %vm3478 = vcmp.eq.f32.partialorder %v3412, 0.0
      %v3479 = vand.u32 %v3412, 2147483648
      %v3480 = vsel %vm3478, %v3479, %v3477
      %v3481 = vrsqrt.pop %v3413
      %v3482 = vmul.f32 %v3413, %v3481
      %vm3483 = vcmp.eq.f32.partialorder %v3413, inf
      %v3484 = vsel %vm3483, %v3413, %v3482
      %vm3485 = vcmp.eq.f32.partialorder %v3413, 0.0
      %v3486 = vand.u32 %v3413, 2147483648
      %v3487 = vsel %vm3485, %v3486, %v3484
      %v3488 = vrsqrt.pop %v3414
      %v3489 = vmul.f32 %v3414, %v3488
      %vm3490 = vcmp.eq.f32.partialorder %v3414, inf
      %v3491 = vsel %vm3490, %v3414, %v3489
      %vm3492 = vcmp.eq.f32.partialorder %v3414, 0.0
      %v3493 = vand.u32 %v3414, 2147483648
      %v3494 = vsel %vm3492, %v3493, %v3491
      %v3495 = vrsqrt.pop %v3415
      %v3496 = vmul.f32 %v3415, %v3495
      %vm3497 = vcmp.eq.f32.partialorder %v3415, inf
      %v3498 = vsel %vm3497, %v3415, %v3496
      %vm3499 = vcmp.eq.f32.partialorder %v3415, 0.0
      %v3500 = vand.u32 %v3415, 2147483648
      %v3501 = vsel %vm3499, %v3500, %v3498
      %v3502 = vrsqrt.pop %v3416
      %v3503 = vmul.f32 %v3416, %v3502
      %vm3504 = vcmp.eq.f32.partialorder %v3416, inf
      %v3505 = vsel %vm3504, %v3416, %v3503
      %vm3506 = vcmp.eq.f32.partialorder %v3416, 0.0
      %v3507 = vand.u32 %v3416, 2147483648
      %v3508 = vsel %vm3506, %v3507, %v3505
      %v3509 = vrsqrt.pop %v3417
      %v3510 = vmul.f32 %v3417, %v3509
      %vm3511 = vcmp.eq.f32.partialorder %v3417, inf
      %v3512 = vsel %vm3511, %v3417, %v3510
      %vm3513 = vcmp.eq.f32.partialorder %v3417, 0.0
      %v3514 = vand.u32 %v3417, 2147483648
      %v3515 = vsel %vm3513, %v3514, %v3512
      %v3516 = vrsqrt.pop %v3418
      %v3517 = vmul.f32 %v3418, %v3516
      %vm3518 = vcmp.eq.f32.partialorder %v3418, inf
      %v3519 = vsel %vm3518, %v3418, %v3517
      %vm3520 = vcmp.eq.f32.partialorder %v3418, 0.0
      %v3521 = vand.u32 %v3418, 2147483648
      %v3522 = vsel %vm3520, %v3521, %v3519
      %v3523 = vrsqrt.pop %v3419
      %v3524 = vmul.f32 %v3419, %v3523
      %vm3525 = vcmp.eq.f32.partialorder %v3419, inf
      %v3526 = vsel %vm3525, %v3419, %v3524
      %vm3527 = vcmp.eq.f32.partialorder %v3419, 0.0
      %v3528 = vand.u32 %v3419, 2147483648
      %v3529 = vsel %vm3527, %v3528, %v3526
      %v3530 = vrsqrt.pop %v3420
      %v3531 = vmul.f32 %v3420, %v3530
      %vm3532 = vcmp.eq.f32.partialorder %v3420, inf
      %v3533 = vsel %vm3532, %v3420, %v3531
      %vm3534 = vcmp.eq.f32.partialorder %v3420, 0.0
      %v3535 = vand.u32 %v3420, 2147483648
      %v3536 = vsel %vm3534, %v3535, %v3533
      %v3537 = vrsqrt.pop %v3421
      %v3538 = vmul.f32 %v3421, %v3537
      %vm3539 = vcmp.eq.f32.partialorder %v3421, inf
      %v3540 = vsel %vm3539, %v3421, %v3538
      %vm3541 = vcmp.eq.f32.partialorder %v3421, 0.0
      %v3542 = vand.u32 %v3421, 2147483648
      %v3543 = vsel %vm3541, %v3542, %v3540
      %v3544 = vrsqrt.pop %v3422
      %v3545 = vmul.f32 %v3422, %v3544
      %vm3546 = vcmp.eq.f32.partialorder %v3422, inf
      %v3547 = vsel %vm3546, %v3422, %v3545
      %vm3548 = vcmp.eq.f32.partialorder %v3422, 0.0
      %v3549 = vand.u32 %v3422, 2147483648
      %v3550 = vsel %vm3548, %v3549, %v3547
      %v3551 = vrsqrt.pop %v3423
      %v3552 = vmul.f32 %v3423, %v3551
      %vm3553 = vcmp.eq.f32.partialorder %v3423, inf
      %v3554 = vsel %vm3553, %v3423, %v3552
      %vm3555 = vcmp.eq.f32.partialorder %v3423, 0.0
      %v3556 = vand.u32 %v3423, 2147483648
      %v3557 = vsel %vm3555, %v3556, %v3554
      %v3558 = vrsqrt.pop %v3424
      %v3559 = vmul.f32 %v3424, %v3558
      %vm3560 = vcmp.eq.f32.partialorder %v3424, inf
      %v3561 = vsel %vm3560, %v3424, %v3559
      %vm3562 = vcmp.eq.f32.partialorder %v3424, 0.0
      %v3563 = vand.u32 %v3424, 2147483648
      %v3564 = vsel %vm3562, %v3563, %v3561
      %v3565 = vrsqrt.pop %v3425
      %v3566 = vmul.f32 %v3425, %v3565
      %vm3567 = vcmp.eq.f32.partialorder %v3425, inf
      %v3568 = vsel %vm3567, %v3425, %v3566
      %vm3569 = vcmp.eq.f32.partialorder %v3425, 0.0
      %v3570 = vand.u32 %v3425, 2147483648
      %v3571 = vsel %vm3569, %v3570, %v3568
      %v3572 = vrsqrt.pop %v3426
      %v3573 = vmul.f32 %v3426, %v3572
      %vm3574 = vcmp.eq.f32.partialorder %v3426, inf
      %v3575 = vsel %vm3574, %v3426, %v3573
      %vm3576 = vcmp.eq.f32.partialorder %v3426, 0.0
      %v3577 = vand.u32 %v3426, 2147483648
      %v3578 = vsel %vm3576, %v3577, %v3575
      %v3579 = vrsqrt.pop %v3427
      %v3580 = vmul.f32 %v3427, %v3579
      %vm3581 = vcmp.eq.f32.partialorder %v3427, inf
      %v3582 = vsel %vm3581, %v3427, %v3580
      %vm3583 = vcmp.eq.f32.partialorder %v3427, 0.0
      %v3584 = vand.u32 %v3427, 2147483648
      %v3585 = vsel %vm3583, %v3584, %v3582
      %v3586 = vrsqrt.pop %v3428
      %v3587 = vmul.f32 %v3428, %v3586
      %vm3588 = vcmp.eq.f32.partialorder %v3428, inf
      %v3589 = vsel %vm3588, %v3428, %v3587
      %vm3590 = vcmp.eq.f32.partialorder %v3428, 0.0
      %v3591 = vand.u32 %v3428, 2147483648
      %v3592 = vsel %vm3590, %v3591, %v3589
      %v3593 = vrsqrt.pop %v3429
      %v3594 = vmul.f32 %v3429, %v3593
      %vm3595 = vcmp.eq.f32.partialorder %v3429, inf
      %v3596 = vsel %vm3595, %v3429, %v3594
      %vm3597 = vcmp.eq.f32.partialorder %v3429, 0.0
      %v3598 = vand.u32 %v3429, 2147483648
      %v3599 = vsel %vm3597, %v3598, %v3596
      %v3600 = vrsqrt.pop %v3430
      %v3601 = vmul.f32 %v3430, %v3600
      %vm3602 = vcmp.eq.f32.partialorder %v3430, inf
      %v3603 = vsel %vm3602, %v3430, %v3601
      %vm3604 = vcmp.eq.f32.partialorder %v3430, 0.0
      %v3605 = vand.u32 %v3430, 2147483648
      %v3606 = vsel %vm3604, %v3605, %v3603
      %v3607 = vrsqrt.pop %v3431
      %v3608 = vmul.f32 %v3431, %v3607
      %vm3609 = vcmp.eq.f32.partialorder %v3431, inf
      %v3610 = vsel %vm3609, %v3431, %v3608
      %vm3611 = vcmp.eq.f32.partialorder %v3431, 0.0
      %v3612 = vand.u32 %v3431, 2147483648
      %v3613 = vsel %vm3611, %v3612, %v3610
      %v3614 = vrsqrt.pop %v3432
      %v3615 = vmul.f32 %v3432, %v3614
      %vm3616 = vcmp.eq.f32.partialorder %v3432, inf
      %v3617 = vsel %vm3616, %v3432, %v3615
      %vm3618 = vcmp.eq.f32.partialorder %v3432, 0.0
      %v3619 = vand.u32 %v3432, 2147483648
      %v3620 = vsel %vm3618, %v3619, %v3617
      %v3621 = vrsqrt.pop %v3433
      %v3622 = vmul.f32 %v3433, %v3621
      %vm3623 = vcmp.eq.f32.partialorder %v3433, inf
      %v3624 = vsel %vm3623, %v3433, %v3622
      %vm3625 = vcmp.eq.f32.partialorder %v3433, 0.0
      %v3626 = vand.u32 %v3433, 2147483648
      %v3627 = vsel %vm3625, %v3626, %v3624
      %v3628 = vrsqrt.pop %v3434
      %v3629 = vmul.f32 %v3434, %v3628
      %vm3630 = vcmp.eq.f32.partialorder %v3434, inf
      %v3631 = vsel %vm3630, %v3434, %v3629
      %vm3632 = vcmp.eq.f32.partialorder %v3434, 0.0
      %v3633 = vand.u32 %v3434, 2147483648
      %v3634 = vsel %vm3632, %v3633, %v3631
      %v3635 = vrsqrt.pop %v3435
      %v3636 = vmul.f32 %v3435, %v3635
      %vm3637 = vcmp.eq.f32.partialorder %v3435, inf
      %v3638 = vsel %vm3637, %v3435, %v3636
      %vm3639 = vcmp.eq.f32.partialorder %v3435, 0.0
      %v3640 = vand.u32 %v3435, 2147483648
      %v3641 = vsel %vm3639, %v3640, %v3638
      %v3642 = vrsqrt.pop %v3436
      %v3643 = vmul.f32 %v3436, %v3642
      %vm3644 = vcmp.eq.f32.partialorder %v3436, inf
      %v3645 = vsel %vm3644, %v3436, %v3643
      %vm3646 = vcmp.eq.f32.partialorder %v3436, 0.0
      %v3647 = vand.u32 %v3436, 2147483648
      %v3648 = vsel %vm3646, %v3647, %v3645
      %v3649 = vrsqrt.pop %v3437
      %v3650 = vmul.f32 %v3437, %v3649
      %vm3651 = vcmp.eq.f32.partialorder %v3437, inf
      %v3652 = vsel %vm3651, %v3437, %v3650
      %vm3653 = vcmp.eq.f32.partialorder %v3437, 0.0
      %v3654 = vand.u32 %v3437, 2147483648
      %v3655 = vsel %vm3653, %v3654, %v3652
      %v3656 = vrsqrt.pop %v3438
      %v3657 = vmul.f32 %v3438, %v3656
      %vm3658 = vcmp.eq.f32.partialorder %v3438, inf
      %v3659 = vsel %vm3658, %v3438, %v3657
      %vm3660 = vcmp.eq.f32.partialorder %v3438, 0.0
      %v3661 = vand.u32 %v3438, 2147483648
      %v3662 = vsel %vm3660, %v3661, %v3659
      %v3663 = vadd.f32 %v3445, 1e-06
      %v3664 = vadd.f32 %v3452, 1e-06
      %v3665 = vadd.f32 %v3459, 1e-06
      %v3666 = vadd.f32 %v3466, 1e-06
      %v3667 = vadd.f32 %v3473, 1e-06
      %v3668 = vadd.f32 %v3480, 1e-06
      %v3669 = vadd.f32 %v3487, 1e-06
      %v3670 = vadd.f32 %v3494, 1e-06
      %v3671 = vadd.f32 %v3501, 1e-06
      %v3672 = vadd.f32 %v3508, 1e-06
      %v3673 = vadd.f32 %v3515, 1e-06
      %v3674 = vadd.f32 %v3522, 1e-06
      %v3675 = vadd.f32 %v3529, 1e-06
      %v3676 = vadd.f32 %v3536, 1e-06
      %v3677 = vadd.f32 %v3543, 1e-06
      %v3678 = vadd.f32 %v3550, 1e-06
      %v3679 = vadd.f32 %v3557, 1e-06
      %v3680 = vadd.f32 %v3564, 1e-06
      %v3681 = vadd.f32 %v3571, 1e-06
      %v3682 = vadd.f32 %v3578, 1e-06
      %v3683 = vadd.f32 %v3585, 1e-06
      %v3684 = vadd.f32 %v3592, 1e-06
      %v3685 = vadd.f32 %v3599, 1e-06
      %v3686 = vadd.f32 %v3606, 1e-06
      %v3687 = vadd.f32 %v3613, 1e-06
      %v3688 = vadd.f32 %v3620, 1e-06
      %v3689 = vadd.f32 %v3627, 1e-06
      %v3690 = vadd.f32 %v3634, 1e-06
      %v3691 = vadd.f32 %v3641, 1e-06
      %v3692 = vadd.f32 %v3648, 1e-06
      %v3693 = vadd.f32 %v3655, 1e-06
      %v3694 = vadd.f32 %v3662, 1e-06
      %v3695 = vrcp.pop %v3663
      %v3696 = vrcp.pop %v3664
      %v3697 = vrcp.pop %v3665
      %v3698 = vrcp.pop %v3666
      %v3699 = vrcp.pop %v3667
      %v3700 = vrcp.pop %v3668
      %v3701 = vrcp.pop %v3669
      %v3702 = vrcp.pop %v3670
      %v3703 = vrcp.pop %v3671
      %v3704 = vrcp.pop %v3672
      %v3705 = vrcp.pop %v3673
      %v3706 = vrcp.pop %v3674
      %v3707 = vrcp.pop %v3675
      %v3708 = vrcp.pop %v3676
      %v3709 = vrcp.pop %v3677
      %v3710 = vrcp.pop %v3678
      %v3711 = vrcp.pop %v3679
      %v3712 = vrcp.pop %v3680
      %v3713 = vrcp.pop %v3681
      %v3714 = vrcp.pop %v3682
      %v3715 = vrcp.pop %v3683
      %v3716 = vrcp.pop %v3684
      %v3717 = vrcp.pop %v3685
      %v3718 = vrcp.pop %v3686
      %v3719 = vrcp.pop %v3687
      %v3720 = vrcp.pop %v3688
      %v3721 = vrcp.pop %v3689
      %v3722 = vrcp.pop %v3690
      %v3723 = vrcp.pop %v3691
      %v3724 = vrcp.pop %v3692
      %v3725 = vrcp.pop %v3693
      %v3726 = vrcp.pop %v3694
      %v3727 = vmul.f32 %v3247, %v3695
      %v3728 = vmul.f32 %v3248, %v3696
      %v3729 = vmul.f32 %v3249, %v3697
      %v3730 = vmul.f32 %v3250, %v3698
      %v3731 = vmul.f32 %v3251, %v3699
      %v3732 = vmul.f32 %v3252, %v3700
      %v3733 = vmul.f32 %v3253, %v3701
      %v3734 = vmul.f32 %v3254, %v3702
      %v3735 = vmul.f32 %v3255, %v3703
      %v3736 = vmul.f32 %v3256, %v3704
      %v3737 = vmul.f32 %v3257, %v3705
      %v3738 = vmul.f32 %v3258, %v3706
      %v3739 = vmul.f32 %v3259, %v3707
      %v3740 = vmul.f32 %v3260, %v3708
      %v3741 = vmul.f32 %v3261, %v3709
      %v3742 = vmul.f32 %v3262, %v3710
      %v3743 = vmul.f32 %v3263, %v3711
      %v3744 = vmul.f32 %v3264, %v3712
      %v3745 = vmul.f32 %v3265, %v3713
      %v3746 = vmul.f32 %v3266, %v3714
      %v3747 = vmul.f32 %v3267, %v3715
      %v3748 = vmul.f32 %v3268, %v3716
      %v3749 = vmul.f32 %v3269, %v3717
      %v3750 = vmul.f32 %v3270, %v3718
      %v3751 = vmul.f32 %v3271, %v3719
      %v3752 = vmul.f32 %v3272, %v3720
      %v3753 = vmul.f32 %v3273, %v3721
      %v3754 = vmul.f32 %v3274, %v3722
      %v3755 = vmul.f32 %v3275, %v3723
      %v3756 = vmul.f32 %v3276, %v3724
      %v3757 = vmul.f32 %v3277, %v3725
      %v3758 = vmul.f32 %v3278, %v3726
      %v3759 = vld [vmem:[%s3] sm:$0x1]
      %v3761 = vlaneseq
      %v3762 = vshrl.u32 %v3761, 7
      %v3763 = vsub.s32 0, %v3762
      %v3764 = vrot.slane %v3759, %v3763
      %v3766 = vmul.f32 %v3727, %v3764
      %v3767 = vmul.f32 %v3728, %v3764
      %v3768 = vmul.f32 %v3729, %v3764
      %v3769 = vmul.f32 %v3730, %v3764
      %v3770 = vmul.f32 %v3731, %v3764
      %v3771 = vmul.f32 %v3732, %v3764
      %v3772 = vmul.f32 %v3733, %v3764
      %v3773 = vmul.f32 %v3734, %v3764
      %v3774 = vmul.f32 %v3735, %v3764
      %v3775 = vmul.f32 %v3736, %v3764
      %v3776 = vmul.f32 %v3737, %v3764
      %v3777 = vmul.f32 %v3738, %v3764
      %v3778 = vmul.f32 %v3739, %v3764
      %v3779 = vmul.f32 %v3740, %v3764
      %v3780 = vmul.f32 %v3741, %v3764
      %v3781 = vmul.f32 %v3742, %v3764
      %v3782 = vmul.f32 %v3743, %v3764
      %v3783 = vmul.f32 %v3744, %v3764
      %v3784 = vmul.f32 %v3745, %v3764
      %v3785 = vmul.f32 %v3746, %v3764
      %v3786 = vmul.f32 %v3747, %v3764
      %v3787 = vmul.f32 %v3748, %v3764
      %v3788 = vmul.f32 %v3749, %v3764
      %v3789 = vmul.f32 %v3750, %v3764
      %v3790 = vmul.f32 %v3751, %v3764
      %v3791 = vmul.f32 %v3752, %v3764
      %v3792 = vmul.f32 %v3753, %v3764
      %v3793 = vmul.f32 %v3754, %v3764
      %v3794 = vmul.f32 %v3755, %v3764
      %v3795 = vmul.f32 %v3756, %v3764
      %v3796 = vmul.f32 %v3757, %v3764
      %v3797 = vmul.f32 %v3758, %v3764
      %v3798 = vld [vmem:[%s4] sm:$0x1]
      %v3800 = vlaneseq
      %v3801 = vshrl.u32 %v3800, 7
      %v3802 = vsub.s32 0, %v3801
      %v3803 = vrot.slane %v3798, %v3802
      %v3805 = vadd.f32 %v3766, %v3803
      %v3806 = vadd.f32 %v3767, %v3803
      %v3807 = vadd.f32 %v3768, %v3803
      %v3808 = vadd.f32 %v3769, %v3803
      %v3809 = vadd.f32 %v3770, %v3803
      %v3810 = vadd.f32 %v3771, %v3803
      %v3811 = vadd.f32 %v3772, %v3803
      %v3812 = vadd.f32 %v3773, %v3803
      %v3813 = vadd.f32 %v3774, %v3803
      %v3814 = vadd.f32 %v3775, %v3803
      %v3815 = vadd.f32 %v3776, %v3803
      %v3816 = vadd.f32 %v3777, %v3803
      %v3817 = vadd.f32 %v3778, %v3803
      %v3818 = vadd.f32 %v3779, %v3803
      %v3819 = vadd.f32 %v3780, %v3803
      %v3820 = vadd.f32 %v3781, %v3803
      %v3821 = vadd.f32 %v3782, %v3803
      %v3822 = vadd.f32 %v3783, %v3803
      %v3823 = vadd.f32 %v3784, %v3803
      %v3824 = vadd.f32 %v3785, %v3803
      %v3825 = vadd.f32 %v3786, %v3803
      %v3826 = vadd.f32 %v3787, %v3803
      %v3827 = vadd.f32 %v3788, %v3803
      %v3828 = vadd.f32 %v3789, %v3803
      %v3829 = vadd.f32 %v3790, %v3803
      %v3830 = vadd.f32 %v3791, %v3803
      %v3831 = vadd.f32 %v3792, %v3803
      %v3832 = vadd.f32 %v3793, %v3803
      %v3833 = vadd.f32 %v3794, %v3803
      %v3834 = vadd.f32 %v3795, %v3803
      %v3835 = vadd.f32 %v3796, %v3803
      %v3836 = vadd.f32 %v3797, %v3803
      %3837 = vst.msk [vmem:[%s224] sm:$0xff] %vm265, %v3805
      %3838 = vst.msk [vmem:[%s224 + $0x8] sm:$0xff] %vm265, %v3806
      %3839 = vst.msk [vmem:[%s224 + $0x10] sm:$0xff] %vm265, %v3807
      %3840 = vst.msk [vmem:[%s224 + $0x18] sm:$0xff] %vm265, %v3808
      %3841 = vst.msk [vmem:[%s224 + $0x20] sm:$0xff] %vm265, %v3809
      %3842 = vst.msk [vmem:[%s224 + $0x28] sm:$0xff] %vm265, %v3810
      %3843 = vst.msk [vmem:[%s224 + $0x30] sm:$0xff] %vm265, %v3811
      %3844 = vst.msk [vmem:[%s224 + $0x38] sm:$0xff] %vm265, %v3812
      %3845 = vst.msk [vmem:[%s224 + $0x40] sm:$0xff] %vm265, %v3813
      %3846 = vst.msk [vmem:[%s224 + $0x48] sm:$0xff] %vm265, %v3814
      %3847 = vst.msk [vmem:[%s224 + $0x50] sm:$0xff] %vm265, %v3815
      %3848 = vst.msk [vmem:[%s224 + $0x58] sm:$0xff] %vm265, %v3816
      %3849 = vst.msk [vmem:[%s224 + $0x60] sm:$0xff] %vm265, %v3817
      %3850 = vst.msk [vmem:[%s224 + $0x68] sm:$0xff] %vm265, %v3818
      %3851 = vst.msk [vmem:[%s224 + $0x70] sm:$0xff] %vm265, %v3819
      %3852 = vst.msk [vmem:[%s224 + $0x78] sm:$0xff] %vm265, %v3820
      %3853 = vst.msk [vmem:[%s224 + $0x80] sm:$0xff] %vm265, %v3821
      %3854 = vst.msk [vmem:[%s224 + $0x88] sm:$0xff] %vm265, %v3822
      %3855 = vst.msk [vmem:[%s224 + $0x90] sm:$0xff] %vm265, %v3823
      %3856 = vst.msk [vmem:[%s224 + $0x98] sm:$0xff] %vm265, %v3824
      %3857 = vst.msk [vmem:[%s224 + $0xa0] sm:$0xff] %vm265, %v3825
      %3858 = vst.msk [vmem:[%s224 + $0xa8] sm:$0xff] %vm265, %v3826
      %3859 = vst.msk [vmem:[%s224 + $0xb0] sm:$0xff] %vm265, %v3827
      %3860 = vst.msk [vmem:[%s224 + $0xb8] sm:$0xff] %vm265, %v3828
      %3861 = vst.msk [vmem:[%s224 + $0xc0] sm:$0xff] %vm265, %v3829
      %3862 = vst.msk [vmem:[%s224 + $0xc8] sm:$0xff] %vm265, %v3830
      %3863 = vst.msk [vmem:[%s224 + $0xd0] sm:$0xff] %vm265, %v3831
      %3864 = vst.msk [vmem:[%s224 + $0xd8] sm:$0xff] %vm265, %v3832
      %3865 = vst.msk [vmem:[%s224 + $0xe0] sm:$0xff] %vm265, %v3833
      %3866 = vst.msk [vmem:[%s224 + $0xe8] sm:$0xff] %vm265, %v3834
      %3867 = vst.msk [vmem:[%s224 + $0xf0] sm:$0xff] %vm265, %v3835
      %3868 = vst.msk [vmem:[%s224 + $0xf8] sm:$0xff] %vm265, %v3836
      %p3869 = scmp.lt.s32.totalorder %s16, 1
      %s3870 = scalar_select %p3869, %s16, 1
      %s3871 = smul.addr %s3870, 32
      %s3872 = smul.addr %s3871, 8
      %s3873 = scalar_lea.vmem %s5, %s3872
      // Predicated region
      $region41: #{tpu_custom_call.1} parent=39 // pred_check
        %p3874 = pneg %p144
      $region42: #{tpu_custom_call.1} parent=39 // pred_check_branch
        %3876 = sbr.rel (%p3874) target = $region44
      $region43: #{tpu_custom_call.1} parent=39 // pred_region
        _
      $region44: #{tpu_custom_call.1} parent=39 // pred_fallthru
        _
    $region40: #{tpu_custom_call.1} parent=5 // pred_fallthru
      _
    %p3877 = scmp.le.s32.totalorder 2, %s11
    // Predicated region
    $region45: #{tpu_custom_call.1} parent=5 // pred_check
      %p3878 = pneg %p3877
    $region46: #{tpu_custom_call.1} parent=5 // pred_check_branch
      %3880 = sbr.rel (%p3878) target = $region48
    $region47: #{tpu_custom_call.1} parent=5 // pred_region
      %s3881 = ssub.s32 %s11, 2
      // Predicated region
      $region49: #{tpu_custom_call.1} parent=47 // pred_check
        %p3882 = pneg %p150
      $region50: #{tpu_custom_call.1} parent=47 // pred_check_branch
        %3884 = sbr.rel (%p3882) target = $region52
      $region51: #{tpu_custom_call.1} parent=47 // pred_region
        %p3885 = scmp.lt.s32.totalorder %s17, 1
        %s3886 = scalar_select %p3885, %s17, 1
        %s3887 = smul.addr %s3886, 32
        %s3888 = smul.addr %s3887, 8
        %s3889 = scalar_lea.vmem %s5, %s3888
      $region52: #{tpu_custom_call.1} parent=47 // pred_fallthru
        _
    $region48: #{tpu_custom_call.1} parent=5 // pred_fallthru
      _
  $region6: #{tpu_custom_call.1} parent=0 // loop_footer
    %s15 = sadd.s32 1, %s11
  $region7: #{tpu_custom_call.1} parent=0 // loop_footer_branch
    %10 = sbr.rel target = $region3
  $region8: #{tpu_custom_call.1} parent=0 // loop_exit
    _

</llo_original>
